<compile_context>
chip_gen: v6e
topology: v6e:2x2x1
jax: 0.10.0
libtpu: 0.0.40
codegen_flags: <defaults>
</compile_context>

<pallas_src>
import jax
import jax.numpy as jnp
import numpy as np
from jax import lax
from jax.experimental import pallas as pl
from jax.experimental.pallas import tpu as pltpu


# ----------------------------- Pallas kernel ---------------------------------
def _make_encoder_kernel(T, B, H, n_layers):
    """Whole bidirectional multi-layer GRU encoder in a single kernel call."""

    def kernel(*refs):
        x_ref = refs[0]                          # (T*B, D0)
        w_refs = refs[1:1 + 4 * n_layers]        # per layer: Wih, Whh, bih, bhh
        out_ref = refs[1 + 4 * n_layers]         # (T*B, 2H)  last-layer output
        hid_ref = refs[2 + 4 * n_layers]         # (2B, H)    final fwd/bwd states
        act_ref = refs[3 + 4 * n_layers]         # VMEM scratch (T*B, 2H)

        # init_hidden(): zeros + 0.001 (compile-time constant, no input DMA).
        h_init = jnp.full((2 * B, H), 0.001, dtype=jnp.float32)

        layer_in = x_ref[...]                    # (T*B, D_l) input of this layer
        h = h_init
        for l in range(n_layers):
            wih = w_refs[4 * l][...]             # (D_l, 6H) = [fwd | bwd]
            whh = w_refs[4 * l + 1][...]         # (H,   6H)
            bih = w_refs[4 * l + 2][...]         # (1,   6H)
            bhh = w_refs[4 * l + 3][...]         # (1,   6H)

            # Hoisted input projection: all T steps, both directions, one matmul.
            gi_all = jnp.dot(layer_in, wih,
                             preferred_element_type=jnp.float32) + bih   # (T*B, 6H)

            dst = out_ref if l == n_layers - 1 else act_ref
            h = h_init                           # rows [0:B]=fwd, [B:2B]=bwd

            for t in range(T):                   # fully unrolled, static indices
                tb = T - 1 - t                   # time index processed by bwd dir

                # Stack fwd/bwd input-gate slices along batch axis: (2B, 3H).
                gi = jnp.concatenate(
                    [gi_all[t * B:(t + 1) * B, 0:3 * H],
                     gi_all[tb * B:(tb + 1) * B, 3 * H:6 * H]], axis=0)

                # One fused recurrent matmul for both directions (N = 6H).
                gh_all = jnp.dot(h, whh,
                                 preferred_element_type=jnp.float32) + bhh
                gh = jnp.concatenate(
                    [gh_all[0:B, 0:3 * H], gh_all[B:2 * B, 3 * H:6 * H]], axis=0)

                # PyTorch gate order (r, z, n); b_hn stays inside r * gh_n.
                r = jax.nn.sigmoid(gi[:, 0:H] + gh[:, 0:H])
                z = jax.nn.sigmoid(gi[:, H:2 * H] + gh[:, H:2 * H])
                n = jnp.tanh(gi[:, 2 * H:3 * H] + r * gh[:, 2 * H:3 * H])
                h = (1.0 - z) * n + z * h        # (2B, H)

                # fwd hidden of time t -> cols [0:H]; bwd hidden of time tb -> [H:2H]
                dst[t * B:(t + 1) * B, 0:H] = h[0:B]
                dst[tb * B:(tb + 1) * B, H:2 * H] = h[B:2 * B]

            if l < n_layers - 1:
                layer_in = dst[...]              # (T*B, 2H): next layer's input

        hid_ref[...] = h                         # last layer's final fwd/bwd states

    return kernel


# ----------------------------- Encoder forward --------------------------------
def encoder_forward(x, params, n_layers, hidden_dim):
    """Matches Encoder.forward for type_rnn == 'GRU': returns (out, hidden[-2:])."""
    T, B, D = x.shape
    H = hidden_dim

    x_flat = jnp.asarray(x, jnp.float32).reshape(T * B, D)

    # Fuse fwd/bwd weights per layer into single (D,6H)/(H,6H)/(1,6H) operands.
    weight_args = []
    for layer in range(n_layers):
        wih_f, whh_f, bih_f, bhh_f = (jnp.asarray(a, jnp.float32)
                                      for a in params[layer]["fwd"])
        wih_b, whh_b, bih_b, bhh_b = (jnp.asarray(a, jnp.float32)
                                      for a in params[layer]["bwd"])
        weight_args += [
            jnp.concatenate([wih_f.T, wih_b.T], axis=1),          # (D_l, 6H)
            jnp.concatenate([whh_f.T, whh_b.T], axis=1),          # (H,   6H)
            jnp.concatenate([bih_f, bih_b]).reshape(1, 6 * H),    # (1,   6H)
            jnp.concatenate([bhh_f, bhh_b]).reshape(1, 6 * H),    # (1,   6H)
        ]

    kernel = _make_encoder_kernel(T, B, H, n_layers)

    in_specs = [pl.BlockSpec(x_flat.shape, lambda i: (0, 0))]
    in_specs += [pl.BlockSpec(w.shape, lambda i: (0, 0)) for w in weight_args]

    out_flat, hid_flat = pl.pallas_call(
        kernel,
        grid=(1,),                               # single step; time loop is in-kernel
        in_specs=in_specs,
        out_specs=[pl.BlockSpec((T * B, 2 * H), lambda i: (0, 0)),
                   pl.BlockSpec((2 * B, H), lambda i: (0, 0))],
        out_shape=[jax.ShapeDtypeStruct((T * B, 2 * H), jnp.float32),
                   jax.ShapeDtypeStruct((2 * B, H), jnp.float32)],
        scratch_shapes=[pltpu.VMEM((T * B, 2 * H), jnp.float32)],
        compiler_params=pltpu.CompilerParams(
            dimension_semantics=("arbitrary",)),
    )(x_flat, *weight_args)

    out = out_flat.reshape(T, B, 2 * H)          # (T, B, 2H)
    hidden_last = hid_flat.reshape(2, B, H)      # (2, B, H) == torch hidden[-2:]
    return out, hidden_last


# ----------------------------- pure-JAX reference ------------------------------
def _gru_dir_ref(x, w_ih, w_hh, b_ih, b_hh, h0, reverse):
    H = h0.shape[-1]
    xs = x[::-1] if reverse else x

    def step(h, x_t):
        gi = x_t @ w_ih.T + b_ih
        gh = h @ w_hh.T + b_hh
        r = jax.nn.sigmoid(gi[:, :H] + gh[:, :H])
        z = jax.nn.sigmoid(gi[:, H:2 * H] + gh[:, H:2 * H])
        n = jnp.tanh(gi[:, 2 * H:] + r * gh[:, 2 * H:])
        h_new = (1.0 - z) * n + z * h
        return h_new, h_new

    hN, out = lax.scan(step, h0, xs)
    if reverse:
        out = out[::-1]
    return out, hN


def encoder_forward_ref(x, params, n_layers, hidden_dim):
    T, B, _ = x.shape
    h0_all = jnp.full((2 * n_layers, B, hidden_dim), 0.001, jnp.float32)
    layer_in = x
    finals = []
    for layer in range(n_layers):
        of, hf = _gru_dir_ref(layer_in, *params[layer]["fwd"],
                              h0_all[2 * layer], reverse=False)
        ob, hb = _gru_dir_ref(layer_in, *params[layer]["bwd"],
                              h0_all[2 * layer + 1], reverse=True)
        layer_in = jnp.concatenate([of, ob], axis=-1)
        finals.extend([hf, hb])
    hidden = jnp.stack(finals, axis=0)
    return layer_in, hidden[-2:]


# ----------------------------- param init -------------------------------------
def init_gru_params(key, input_size, hidden_dim, n_layers):
    """Deterministic U(-1/sqrt(H), 1/sqrt(H)) init, same shapes as nn.GRU."""
    k = 1.0 / np.sqrt(hidden_dim)
    params = []
    for layer in range(n_layers):
        d_in = input_size if layer == 0 else 2 * hidden_dim
        layer_p = {}
        for dname in ("fwd", "bwd"):
            key, k1, k2, k3, k4 = jax.random.split(key, 5)
            layer_p[dname] = (
                jax.random.uniform(k1, (3 * hidden_dim, d_in), jnp.float32, -k, k),
                jax.random.uniform(k2, (3 * hidden_dim, hidden_dim), jnp.float32, -k, k),
                jax.random.uniform(k3, (3 * hidden_dim,), jnp.float32, -k, k),
                jax.random.uniform(k4, (3 * hidden_dim,), jnp.float32, -k, k),
            )
        params.append(layer_p)
    return params


# ----------------------------- main --------------------------------------------
if __name__ == "__main__":
    # config: input_size=16, hidden_dim=32, n_layers=2, type_rnn='GRU'
    SEQ, BATCH, INPUT_SIZE, HIDDEN, N_LAYERS = 8, 2, 16, 32, 2

    key = jax.random.PRNGKey(0)
    key, xkey = jax.random.split(key)
    x = jax.random.normal(xkey, (SEQ, BATCH, INPUT_SIZE), jnp.float32)

    params = init_gru_params(key, INPUT_SIZE, HIDDEN, N_LAYERS)

    out, hid = encoder_forward(x, params, N_LAYERS, HIDDEN)
    out = jax.block_until_ready(out)
    hid = jax.block_until_ready(hid)

    assert out.shape == (SEQ, BATCH, 2 * HIDDEN)
    assert hid.shape == (2, BATCH, HIDDEN)

    out_ref, hid_ref = encoder_forward_ref(x, params, N_LAYERS, HIDDEN)
    np.testing.assert_allclose(np.asarray(out), np.asarray(out_ref),
                               rtol=5e-3, atol=5e-3)
    np.testing.assert_allclose(np.asarray(hid), np.asarray(hid_ref),
                               rtol=5e-3, atol=5e-3)

    print("KERNEL_OK")
</pallas_src>

<mosaic_0001>
module attributes {stable_mosaic.version = 11 : i64} {
  func.func @kernel(%arg0: i32, %arg1: memref<16x16xf32, #tpu.memory_space<vmem>>, %arg2: memref<16x192xf32, #tpu.memory_space<vmem>>, %arg3: memref<32x192xf32, #tpu.memory_space<vmem>>, %arg4: memref<1x192xf32, #tpu.memory_space<vmem>>, %arg5: memref<1x192xf32, #tpu.memory_space<vmem>>, %arg6: memref<64x192xf32, #tpu.memory_space<vmem>>, %arg7: memref<32x192xf32, #tpu.memory_space<vmem>>, %arg8: memref<1x192xf32, #tpu.memory_space<vmem>>, %arg9: memref<1x192xf32, #tpu.memory_space<vmem>>, %arg10: memref<16x64xf32, #tpu.memory_space<vmem>>, %arg11: memref<4x32xf32, #tpu.memory_space<vmem>>, %arg12: memref<16x64xf32, #tpu.memory_space<vmem>>) attributes {dimension_semantics = [#tpu.dimension_semantics<arbitrary>], iteration_bounds = array<i64: 1>, scalar_prefetch = 0 : i64, scratch_operands = 1 : i64, tpu.core_type = #tpu.core_type<tc>, window_params = [{pipeline_mode = #tpu.pipeline_mode<synchronous>, transform_indices = @transform_0, window_bounds = array<i64: 16, 16>}, {pipeline_mode = #tpu.pipeline_mode<synchronous>, transform_indices = @transform_1, window_bounds = array<i64: 16, 192>}, {pipeline_mode = #tpu.pipeline_mode<synchronous>, transform_indices = @transform_2, window_bounds = array<i64: 32, 192>}, {pipeline_mode = #tpu.pipeline_mode<synchronous>, transform_indices = @transform_3, window_bounds = array<i64: 1, 192>}, {pipeline_mode = #tpu.pipeline_mode<synchronous>, transform_indices = @transform_4, window_bounds = array<i64: 1, 192>}, {pipeline_mode = #tpu.pipeline_mode<synchronous>, transform_indices = @transform_5, window_bounds = array<i64: 64, 192>}, {pipeline_mode = #tpu.pipeline_mode<synchronous>, transform_indices = @transform_6, window_bounds = array<i64: 32, 192>}, {pipeline_mode = #tpu.pipeline_mode<synchronous>, transform_indices = @transform_7, window_bounds = array<i64: 1, 192>}, {pipeline_mode = #tpu.pipeline_mode<synchronous>, transform_indices = @transform_8, window_bounds = array<i64: 1, 192>}, {pipeline_mode = #tpu.pipeline_mode<synchronous>, transform_indices = @transform_9, window_bounds = array<i64: 16, 64>}, {pipeline_mode = #tpu.pipeline_mode<synchronous>, transform_indices = @transform_10, window_bounds = array<i64: 4, 32>}]} {
    %cst = arith.constant 1.000000e-03 : f32
    %0 = vector.broadcast %cst : f32 to vector<4x32xf32>
    %c0 = arith.constant 0 : index
    %c0_0 = arith.constant 0 : index
    %1 = vector.load %arg1[%c0, %c0_0] : memref<16x16xf32, #tpu.memory_space<vmem>>, vector<16x16xf32>
    %c0_1 = arith.constant 0 : index
    %c0_2 = arith.constant 0 : index
    %2 = vector.load %arg2[%c0_1, %c0_2] : memref<16x192xf32, #tpu.memory_space<vmem>>, vector<16x192xf32>
    %c0_3 = arith.constant 0 : index
    %c0_4 = arith.constant 0 : index
    %3 = vector.load %arg3[%c0_3, %c0_4] : memref<32x192xf32, #tpu.memory_space<vmem>>, vector<32x192xf32>
    %c0_5 = arith.constant 0 : index
    %c0_6 = arith.constant 0 : index
    %4 = vector.load %arg4[%c0_5, %c0_6] : memref<1x192xf32, #tpu.memory_space<vmem>>, vector<1x192xf32>
    %c0_7 = arith.constant 0 : index
    %c0_8 = arith.constant 0 : index
    %5 = vector.load %arg5[%c0_7, %c0_8] : memref<1x192xf32, #tpu.memory_space<vmem>>, vector<1x192xf32>
    %cst_9 = arith.constant dense<0.000000e+00> : vector<16x192xf32>
    %6 = tpu.matmul %1, %2, %cst_9 {dimension_numbers = #tpu.dot_dimension_numbers<[1], [0], [0], [1], [0, 0, 1, 1], [], []>} : vector<16x16xf32>, vector<16x192xf32>, vector<16x192xf32> -> vector<16x192xf32>
    %7 = vector.broadcast %4 : vector<1x192xf32> to vector<16x192xf32>
    %8 = arith.addf %6, %7 : vector<16x192xf32>
    %9 = vector.extract_strided_slice %8 {offsets = [0, 0], sizes = [2, 96], strides = [1, 1]} : vector<16x192xf32> to vector<2x96xf32>
    %10 = vector.extract_strided_slice %8 {offsets = [14, 96], sizes = [2, 96], strides = [1, 1]} : vector<16x192xf32> to vector<2x96xf32>
    %11 = tpu.concatenate %9, %10 in 0 : vector<2x96xf32>, vector<2x96xf32> -> vector<4x96xf32>
    %cst_10 = arith.constant dense<0.000000e+00> : vector<4x192xf32>
    %12 = tpu.matmul %0, %3, %cst_10 {dimension_numbers = #tpu.dot_dimension_numbers<[1], [0], [0], [1], [0, 0, 1, 1], [], []>} : vector<4x32xf32>, vector<32x192xf32>, vector<4x192xf32> -> vector<4x192xf32>
    %13 = vector.broadcast %5 : vector<1x192xf32> to vector<4x192xf32>
    %14 = arith.addf %12, %13 : vector<4x192xf32>
    %15 = vector.extract_strided_slice %14 {offsets = [0, 0], sizes = [2, 96], strides = [1, 1]} : vector<4x192xf32> to vector<2x96xf32>
    %16 = vector.extract_strided_slice %14 {offsets = [2, 96], sizes = [2, 96], strides = [1, 1]} : vector<4x192xf32> to vector<2x96xf32>
    %17 = tpu.concatenate %15, %16 in 0 : vector<2x96xf32>, vector<2x96xf32> -> vector<4x96xf32>
    %18 = vector.extract_strided_slice %11 {offsets = [0, 0], sizes = [4, 32], strides = [1, 1]} : vector<4x96xf32> to vector<4x32xf32>
    %19 = vector.extract_strided_slice %17 {offsets = [0, 0], sizes = [4, 32], strides = [1, 1]} : vector<4x96xf32> to vector<4x32xf32>
    %20 = arith.addf %18, %19 : vector<4x32xf32>
    %21 = arith.negf %20 : vector<4x32xf32>
    %22 = math.exp %21 : vector<4x32xf32>
    %cst_11 = arith.constant 1.000000e+00 : f32
    %23 = vector.broadcast %cst_11 : f32 to vector<4x32xf32>
    %24 = arith.addf %23, %22 : vector<4x32xf32>
    %25 = arith.divf %23, %24 : vector<4x32xf32>
    %26 = vector.extract_strided_slice %11 {offsets = [0, 32], sizes = [4, 32], strides = [1, 1]} : vector<4x96xf32> to vector<4x32xf32>
    %27 = vector.extract_strided_slice %17 {offsets = [0, 32], sizes = [4, 32], strides = [1, 1]} : vector<4x96xf32> to vector<4x32xf32>
    %28 = arith.addf %26, %27 : vector<4x32xf32>
    %29 = arith.negf %28 : vector<4x32xf32>
    %30 = math.exp %29 : vector<4x32xf32>
    %cst_12 = arith.constant 1.000000e+00 : f32
    %31 = vector.broadcast %cst_12 : f32 to vector<4x32xf32>
    %32 = arith.addf %31, %30 : vector<4x32xf32>
    %33 = arith.divf %31, %32 : vector<4x32xf32>
    %34 = vector.extract_strided_slice %11 {offsets = [0, 64], sizes = [4, 32], strides = [1, 1]} : vector<4x96xf32> to vector<4x32xf32>
    %35 = vector.extract_strided_slice %17 {offsets = [0, 64], sizes = [4, 32], strides = [1, 1]} : vector<4x96xf32> to vector<4x32xf32>
    %36 = arith.mulf %25, %35 : vector<4x32xf32>
    %37 = arith.addf %34, %36 : vector<4x32xf32>
    %38 = math.tanh %37 : vector<4x32xf32>
    %cst_13 = arith.constant 1.000000e+00 : f32
    %39 = vector.broadcast %cst_13 : f32 to vector<4x32xf32>
    %40 = arith.subf %39, %33 : vector<4x32xf32>
    %41 = arith.mulf %40, %38 : vector<4x32xf32>
    %42 = arith.mulf %33, %0 : vector<4x32xf32>
    %43 = arith.addf %41, %42 : vector<4x32xf32>
    %44 = vector.extract_strided_slice %43 {offsets = [0, 0], sizes = [2, 32], strides = [1, 1]} : vector<4x32xf32> to vector<2x32xf32>
    %c0_14 = arith.constant 0 : index
    %c0_15 = arith.constant 0 : index
    %45 = vector.load %arg12[%c0_14, %c0_15] : memref<16x64xf32, #tpu.memory_space<vmem>>, vector<2x32xf32>
    tpu.vector_store %arg12[%c0_14, %c0_15], %44 {strides = array<i32>} : memref<16x64xf32, #tpu.memory_space<vmem>>, vector<2x32xf32>,
    %46 = vector.extract_strided_slice %43 {offsets = [2, 0], sizes = [2, 32], strides = [1, 1]} : vector<4x32xf32> to vector<2x32xf32>
    %c14 = arith.constant 14 : index
    %c32 = arith.constant 32 : index
    %47 = vector.load %arg12[%c14, %c32] : memref<16x64xf32, #tpu.memory_space<vmem>>, vector<2x32xf32>
    tpu.vector_store %arg12[%c14, %c32], %46 {strides = array<i32>} : memref<16x64xf32, #tpu.memory_space<vmem>>, vector<2x32xf32>,
    %48 = vector.extract_strided_slice %8 {offsets = [2, 0], sizes = [2, 96], strides = [1, 1]} : vector<16x192xf32> to vector<2x96xf32>
    %49 = vector.extract_strided_slice %8 {offsets = [12, 96], sizes = [2, 96], strides = [1, 1]} : vector<16x192xf32> to vector<2x96xf32>
    %50 = tpu.concatenate %48, %49 in 0 : vector<2x96xf32>, vector<2x96xf32> -> vector<4x96xf32>
    %cst_16 = arith.constant dense<0.000000e+00> : vector<4x192xf32>
    %51 = tpu.matmul %43, %3, %cst_16 {dimension_numbers = #tpu.dot_dimension_numbers<[1], [0], [0], [1], [0, 0, 1, 1], [], []>} : vector<4x32xf32>, vector<32x192xf32>, vector<4x192xf32> -> vector<4x192xf32>
    %52 = vector.broadcast %5 : vector<1x192xf32> to vector<4x192xf32>
    %53 = arith.addf %51, %52 : vector<4x192xf32>
    %54 = vector.extract_strided_slice %53 {offsets = [0, 0], sizes = [2, 96], strides = [1, 1]} : vector<4x192xf32> to vector<2x96xf32>
    %55 = vector.extract_strided_slice %53 {offsets = [2, 96], sizes = [2, 96], strides = [1, 1]} : vector<4x192xf32> to vector<2x96xf32>
    %56 = tpu.concatenate %54, %55 in 0 : vector<2x96xf32>, vector<2x96xf32> -> vector<4x96xf32>
    %57 = vector.extract_strided_slice %50 {offsets = [0, 0], sizes = [4, 32], strides = [1, 1]} : vector<4x96xf32> to vector<4x32xf32>
    %58 = vector.extract_strided_slice %56 {offsets = [0, 0], sizes = [4, 32], strides = [1, 1]} : vector<4x96xf32> to vector<4x32xf32>
    %59 = arith.addf %57, %58 : vector<4x32xf32>
    %60 = arith.negf %59 : vector<4x32xf32>
    %61 = math.exp %60 : vector<4x32xf32>
    %cst_17 = arith.constant 1.000000e+00 : f32
    %62 = vector.broadcast %cst_17 : f32 to vector<4x32xf32>
    %63 = arith.addf %62, %61 : vector<4x32xf32>
    %64 = arith.divf %62, %63 : vector<4x32xf32>
    %65 = vector.extract_strided_slice %50 {offsets = [0, 32], sizes = [4, 32], strides = [1, 1]} : vector<4x96xf32> to vector<4x32xf32>
    %66 = vector.extract_strided_slice %56 {offsets = [0, 32], sizes = [4, 32], strides = [1, 1]} : vector<4x96xf32> to vector<4x32xf32>
    %67 = arith.addf %65, %66 : vector<4x32xf32>
    %68 = arith.negf %67 : vector<4x32xf32>
    %69 = math.exp %68 : vector<4x32xf32>
    %cst_18 = arith.constant 1.000000e+00 : f32
    %70 = vector.broadcast %cst_18 : f32 to vector<4x32xf32>
    %71 = arith.addf %70, %69 : vector<4x32xf32>
    %72 = arith.divf %70, %71 : vector<4x32xf32>
    %73 = vector.extract_strided_slice %50 {offsets = [0, 64], sizes = [4, 32], strides = [1, 1]} : vector<4x96xf32> to vector<4x32xf32>
    %74 = vector.extract_strided_slice %56 {offsets = [0, 64], sizes = [4, 32], strides = [1, 1]} : vector<4x96xf32> to vector<4x32xf32>
    %75 = arith.mulf %64, %74 : vector<4x32xf32>
    %76 = arith.addf %73, %75 : vector<4x32xf32>
    %77 = math.tanh %76 : vector<4x32xf32>
    %cst_19 = arith.constant 1.000000e+00 : f32
    %78 = vector.broadcast %cst_19 : f32 to vector<4x32xf32>
    %79 = arith.subf %78, %72 : vector<4x32xf32>
    %80 = arith.mulf %79, %77 : vector<4x32xf32>
    %81 = arith.mulf %72, %43 : vector<4x32xf32>
    %82 = arith.addf %80, %81 : vector<4x32xf32>
    %83 = vector.extract_strided_slice %82 {offsets = [0, 0], sizes = [2, 32], strides = [1, 1]} : vector<4x32xf32> to vector<2x32xf32>
    %c2 = arith.constant 2 : index
    %c0_20 = arith.constant 0 : index
    %84 = vector.load %arg12[%c2, %c0_20] : memref<16x64xf32, #tpu.memory_space<vmem>>, vector<2x32xf32>
    tpu.vector_store %arg12[%c2, %c0_20], %83 {strides = array<i32>} : memref<16x64xf32, #tpu.memory_space<vmem>>, vector<2x32xf32>,
    %85 = vector.extract_strided_slice %82 {offsets = [2, 0], sizes = [2, 32], strides = [1, 1]} : vector<4x32xf32> to vector<2x32xf32>
    %c12 = arith.constant 12 : index
    %c32_21 = arith.constant 32 : index
    %86 = vector.load %arg12[%c12, %c32_21] : memref<16x64xf32, #tpu.memory_space<vmem>>, vector<2x32xf32>
    tpu.vector_store %arg12[%c12, %c32_21], %85 {strides = array<i32>} : memref<16x64xf32, #tpu.memory_space<vmem>>, vector<2x32xf32>,
    %87 = vector.extract_strided_slice %8 {offsets = [4, 0], sizes = [2, 96], strides = [1, 1]} : vector<16x192xf32> to vector<2x96xf32>
    %88 = vector.extract_strided_slice %8 {offsets = [10, 96], sizes = [2, 96], strides = [1, 1]} : vector<16x192xf32> to vector<2x96xf32>
    %89 = tpu.concatenate %87, %88 in 0 : vector<2x96xf32>, vector<2x96xf32> -> vector<4x96xf32>
    %cst_22 = arith.constant dense<0.000000e+00> : vector<4x192xf32>
    %90 = tpu.matmul %82, %3, %cst_22 {dimension_numbers = #tpu.dot_dimension_numbers<[1], [0], [0], [1], [0, 0, 1, 1], [], []>} : vector<4x32xf32>, vector<32x192xf32>, vector<4x192xf32> -> vector<4x192xf32>
    %91 = vector.broadcast %5 : vector<1x192xf32> to vector<4x192xf32>
    %92 = arith.addf %90, %91 : vector<4x192xf32>
    %93 = vector.extract_strided_slice %92 {offsets = [0, 0], sizes = [2, 96], strides = [1, 1]} : vector<4x192xf32> to vector<2x96xf32>
    %94 = vector.extract_strided_slice %92 {offsets = [2, 96], sizes = [2, 96], strides = [1, 1]} : vector<4x192xf32> to vector<2x96xf32>
    %95 = tpu.concatenate %93, %94 in 0 : vector<2x96xf32>, vector<2x96xf32> -> vector<4x96xf32>
    %96 = vector.extract_strided_slice %89 {offsets = [0, 0], sizes = [4, 32], strides = [1, 1]} : vector<4x96xf32> to vector<4x32xf32>
    %97 = vector.extract_strided_slice %95 {offsets = [0, 0], sizes = [4, 32], strides = [1, 1]} : vector<4x96xf32> to vector<4x32xf32>
    %98 = arith.addf %96, %97 : vector<4x32xf32>
    %99 = arith.negf %98 : vector<4x32xf32>
    %100 = math.exp %99 : vector<4x32xf32>
    %cst_23 = arith.constant 1.000000e+00 : f32
    %101 = vector.broadcast %cst_23 : f32 to vector<4x32xf32>
    %102 = arith.addf %101, %100 : vector<4x32xf32>
    %103 = arith.divf %101, %102 : vector<4x32xf32>
    %104 = vector.extract_strided_slice %89 {offsets = [0, 32], sizes = [4, 32], strides = [1, 1]} : vector<4x96xf32> to vector<4x32xf32>
    %105 = vector.extract_strided_slice %95 {offsets = [0, 32], sizes = [4, 32], strides = [1, 1]} : vector<4x96xf32> to vector<4x32xf32>
    %106 = arith.addf %104, %105 : vector<4x32xf32>
    %107 = arith.negf %106 : vector<4x32xf32>
    %108 = math.exp %107 : vector<4x32xf32>
    %cst_24 = arith.constant 1.000000e+00 : f32
    %109 = vector.broadcast %cst_24 : f32 to vector<4x32xf32>
    %110 = arith.addf %109, %108 : vector<4x32xf32>
    %111 = arith.divf %109, %110 : vector<4x32xf32>
    %112 = vector.extract_strided_slice %89 {offsets = [0, 64], sizes = [4, 32], strides = [1, 1]} : vector<4x96xf32> to vector<4x32xf32>
    %113 = vector.extract_strided_slice %95 {offsets = [0, 64], sizes = [4, 32], strides = [1, 1]} : vector<4x96xf32> to vector<4x32xf32>
    %114 = arith.mulf %103, %113 : vector<4x32xf32>
    %115 = arith.addf %112, %114 : vector<4x32xf32>
    %116 = math.tanh %115 : vector<4x32xf32>
    %cst_25 = arith.constant 1.000000e+00 : f32
    %117 = vector.broadcast %cst_25 : f32 to vector<4x32xf32>
    %118 = arith.subf %117, %111 : vector<4x32xf32>
    %119 = arith.mulf %118, %116 : vector<4x32xf32>
    %120 = arith.mulf %111, %82 : vector<4x32xf32>
    %121 = arith.addf %119, %120 : vector<4x32xf32>
    %122 = vector.extract_strided_slice %121 {offsets = [0, 0], sizes = [2, 32], strides = [1, 1]} : vector<4x32xf32> to vector<2x32xf32>
    %c4 = arith.constant 4 : index
    %c0_26 = arith.constant 0 : index
    %123 = vector.load %arg12[%c4, %c0_26] : memref<16x64xf32, #tpu.memory_space<vmem>>, vector<2x32xf32>
    tpu.vector_store %arg12[%c4, %c0_26], %122 {strides = array<i32>} : memref<16x64xf32, #tpu.memory_space<vmem>>, vector<2x32xf32>,
    %124 = vector.extract_strided_slice %121 {offsets = [2, 0], sizes = [2, 32], strides = [1, 1]} : vector<4x32xf32> to vector<2x32xf32>
    %c10 = arith.constant 10 : index
    %c32_27 = arith.constant 32 : index
    %125 = vector.load %arg12[%c10, %c32_27] : memref<16x64xf32, #tpu.memory_space<vmem>>, vector<2x32xf32>
    tpu.vector_store %arg12[%c10, %c32_27], %124 {strides = array<i32>} : memref<16x64xf32, #tpu.memory_space<vmem>>, vector<2x32xf32>,
    %126 = vector.extract_strided_slice %8 {offsets = [6, 0], sizes = [2, 96], strides = [1, 1]} : vector<16x192xf32> to vector<2x96xf32>
    %127 = vector.extract_strided_slice %8 {offsets = [8, 96], sizes = [2, 96], strides = [1, 1]} : vector<16x192xf32> to vector<2x96xf32>
    %128 = tpu.concatenate %126, %127 in 0 : vector<2x96xf32>, vector<2x96xf32> -> vector<4x96xf32>
    %cst_28 = arith.constant dense<0.000000e+00> : vector<4x192xf32>
    %129 = tpu.matmul %121, %3, %cst_28 {dimension_numbers = #tpu.dot_dimension_numbers<[1], [0], [0], [1], [0, 0, 1, 1], [], []>} : vector<4x32xf32>, vector<32x192xf32>, vector<4x192xf32> -> vector<4x192xf32>
    %130 = vector.broadcast %5 : vector<1x192xf32> to vector<4x192xf32>
    %131 = arith.addf %129, %130 : vector<4x192xf32>
    %132 = vector.extract_strided_slice %131 {offsets = [0, 0], sizes = [2, 96], strides = [1, 1]} : vector<4x192xf32> to vector<2x96xf32>
    %133 = vector.extract_strided_slice %131 {offsets = [2, 96], sizes = [2, 96], strides = [1, 1]} : vector<4x192xf32> to vector<2x96xf32>
    %134 = tpu.concatenate %132, %133 in 0 : vector<2x96xf32>, vector<2x96xf32> -> vector<4x96xf32>
    %135 = vector.extract_strided_slice %128 {offsets = [0, 0], sizes = [4, 32], strides = [1, 1]} : vector<4x96xf32> to vector<4x32xf32>
    %136 = vector.extract_strided_slice %134 {offsets = [0, 0], sizes = [4, 32], strides = [1, 1]} : vector<4x96xf32> to vector<4x32xf32>
    %137 = arith.addf %135, %136 : vector<4x32xf32>
    %138 = arith.negf %137 : vector<4x32xf32>
    %139 = math.exp %138 : vector<4x32xf32>
    %cst_29 = arith.constant 1.000000e+00 : f32
    %140 = vector.broadcast %cst_29 : f32 to vector<4x32xf32>
    %141 = arith.addf %140, %139 : vector<4x32xf32>
    %142 = arith.divf %140, %141 : vector<4x32xf32>
    %143 = vector.extract_strided_slice %128 {offsets = [0, 32], sizes = [4, 32], strides = [1, 1]} : vector<4x96xf32> to vector<4x32xf32>
    %144 = vector.extract_strided_slice %134 {offsets = [0, 32], sizes = [4, 32], strides = [1, 1]} : vector<4x96xf32> to vector<4x32xf32>
    %145 = arith.addf %143, %144 : vector<4x32xf32>
    %146 = arith.negf %145 : vector<4x32xf32>
    %147 = math.exp %146 : vector<4x32xf32>
    %cst_30 = arith.constant 1.000000e+00 : f32
    %148 = vector.broadcast %cst_30 : f32 to vector<4x32xf32>
    %149 = arith.addf %148, %147 : vector<4x32xf32>
    %150 = arith.divf %148, %149 : vector<4x32xf32>
    %151 = vector.extract_strided_slice %128 {offsets = [0, 64], sizes = [4, 32], strides = [1, 1]} : vector<4x96xf32> to vector<4x32xf32>
    %152 = vector.extract_strided_slice %134 {offsets = [0, 64], sizes = [4, 32], strides = [1, 1]} : vector<4x96xf32> to vector<4x32xf32>
    %153 = arith.mulf %142, %152 : vector<4x32xf32>
    %154 = arith.addf %151, %153 : vector<4x32xf32>
    %155 = math.tanh %154 : vector<4x32xf32>
    %cst_31 = arith.constant 1.000000e+00 : f32
    %156 = vector.broadcast %cst_31 : f32 to vector<4x32xf32>
    %157 = arith.subf %156, %150 : vector<4x32xf32>
    %158 = arith.mulf %157, %155 : vector<4x32xf32>
    %159 = arith.mulf %150, %121 : vector<4x32xf32>
    %160 = arith.addf %158, %159 : vector<4x32xf32>
    %161 = vector.extract_strided_slice %160 {offsets = [0, 0], sizes = [2, 32], strides = [1, 1]} : vector<4x32xf32> to vector<2x32xf32>
    %c6 = arith.constant 6 : index
    %c0_32 = arith.constant 0 : index
    %162 = vector.load %arg12[%c6, %c0_32] : memref<16x64xf32, #tpu.memory_space<vmem>>, vector<2x32xf32>
    tpu.vector_store %arg12[%c6, %c0_32], %161 {strides = array<i32>} : memref<16x64xf32, #tpu.memory_space<vmem>>, vector<2x32xf32>,
    %163 = vector.extract_strided_slice %160 {offsets = [2, 0], sizes = [2, 32], strides = [1, 1]} : vector<4x32xf32> to vector<2x32xf32>
    %c8 = arith.constant 8 : index
    %c32_33 = arith.constant 32 : index
    %164 = vector.load %arg12[%c8, %c32_33] : memref<16x64xf32, #tpu.memory_space<vmem>>, vector<2x32xf32>
    tpu.vector_store %arg12[%c8, %c32_33], %163 {strides = array<i32>} : memref<16x64xf32, #tpu.memory_space<vmem>>, vector<2x32xf32>,
    %165 = vector.extract_strided_slice %8 {offsets = [8, 0], sizes = [2, 96], strides = [1, 1]} : vector<16x192xf32> to vector<2x96xf32>
    %166 = vector.extract_strided_slice %8 {offsets = [6, 96], sizes = [2, 96], strides = [1, 1]} : vector<16x192xf32> to vector<2x96xf32>
    %167 = tpu.concatenate %165, %166 in 0 : vector<2x96xf32>, vector<2x96xf32> -> vector<4x96xf32>
    %cst_34 = arith.constant dense<0.000000e+00> : vector<4x192xf32>
    %168 = tpu.matmul %160, %3, %cst_34 {dimension_numbers = #tpu.dot_dimension_numbers<[1], [0], [0], [1], [0, 0, 1, 1], [], []>} : vector<4x32xf32>, vector<32x192xf32>, vector<4x192xf32> -> vector<4x192xf32>
    %169 = vector.broadcast %5 : vector<1x192xf32> to vector<4x192xf32>
    %170 = arith.addf %168, %169 : vector<4x192xf32>
    %171 = vector.extract_strided_slice %170 {offsets = [0, 0], sizes = [2, 96], strides = [1, 1]} : vector<4x192xf32> to vector<2x96xf32>
    %172 = vector.extract_strided_slice %170 {offsets = [2, 96], sizes = [2, 96], strides = [1, 1]} : vector<4x192xf32> to vector<2x96xf32>
    %173 = tpu.concatenate %171, %172 in 0 : vector<2x96xf32>, vector<2x96xf32> -> vector<4x96xf32>
    %174 = vector.extract_strided_slice %167 {offsets = [0, 0], sizes = [4, 32], strides = [1, 1]} : vector<4x96xf32> to vector<4x32xf32>
    %175 = vector.extract_strided_slice %173 {offsets = [0, 0], sizes = [4, 32], strides = [1, 1]} : vector<4x96xf32> to vector<4x32xf32>
    %176 = arith.addf %174, %175 : vector<4x32xf32>
    %177 = arith.negf %176 : vector<4x32xf32>
    %178 = math.exp %177 : vector<4x32xf32>
    %cst_35 = arith.constant 1.000000e+00 : f32
    %179 = vector.broadcast %cst_35 : f32 to vector<4x32xf32>
    %180 = arith.addf %179, %178 : vector<4x32xf32>
    %181 = arith.divf %179, %180 : vector<4x32xf32>
    %182 = vector.extract_strided_slice %167 {offsets = [0, 32], sizes = [4, 32], strides = [1, 1]} : vector<4x96xf32> to vector<4x32xf32>
    %183 = vector.extract_strided_slice %173 {offsets = [0, 32], sizes = [4, 32], strides = [1, 1]} : vector<4x96xf32> to vector<4x32xf32>
    %184 = arith.addf %182, %183 : vector<4x32xf32>
    %185 = arith.negf %184 : vector<4x32xf32>
    %186 = math.exp %185 : vector<4x32xf32>
    %cst_36 = arith.constant 1.000000e+00 : f32
    %187 = vector.broadcast %cst_36 : f32 to vector<4x32xf32>
    %188 = arith.addf %187, %186 : vector<4x32xf32>
    %189 = arith.divf %187, %188 : vector<4x32xf32>
    %190 = vector.extract_strided_slice %167 {offsets = [0, 64], sizes = [4, 32], strides = [1, 1]} : vector<4x96xf32> to vector<4x32xf32>
    %191 = vector.extract_strided_slice %173 {offsets = [0, 64], sizes = [4, 32], strides = [1, 1]} : vector<4x96xf32> to vector<4x32xf32>
    %192 = arith.mulf %181, %191 : vector<4x32xf32>
    %193 = arith.addf %190, %192 : vector<4x32xf32>
    %194 = math.tanh %193 : vector<4x32xf32>
    %cst_37 = arith.constant 1.000000e+00 : f32
    %195 = vector.broadcast %cst_37 : f32 to vector<4x32xf32>
    %196 = arith.subf %195, %189 : vector<4x32xf32>
    %197 = arith.mulf %196, %194 : vector<4x32xf32>
    %198 = arith.mulf %189, %160 : vector<4x32xf32>
    %199 = arith.addf %197, %198 : vector<4x32xf32>
    %200 = vector.extract_strided_slice %199 {offsets = [0, 0], sizes = [2, 32], strides = [1, 1]} : vector<4x32xf32> to vector<2x32xf32>
    %c8_38 = arith.constant 8 : index
    %c0_39 = arith.constant 0 : index
    %201 = vector.load %arg12[%c8_38, %c0_39] : memref<16x64xf32, #tpu.memory_space<vmem>>, vector<2x32xf32>
    tpu.vector_store %arg12[%c8_38, %c0_39], %200 {strides = array<i32>} : memref<16x64xf32, #tpu.memory_space<vmem>>, vector<2x32xf32>,
    %202 = vector.extract_strided_slice %199 {offsets = [2, 0], sizes = [2, 32], strides = [1, 1]} : vector<4x32xf32> to vector<2x32xf32>
    %c6_40 = arith.constant 6 : index
    %c32_41 = arith.constant 32 : index
    %203 = vector.load %arg12[%c6_40, %c32_41] : memref<16x64xf32, #tpu.memory_space<vmem>>, vector<2x32xf32>
    tpu.vector_store %arg12[%c6_40, %c32_41], %202 {strides = array<i32>} : memref<16x64xf32, #tpu.memory_space<vmem>>, vector<2x32xf32>,
    %204 = vector.extract_strided_slice %8 {offsets = [10, 0], sizes = [2, 96], strides = [1, 1]} : vector<16x192xf32> to vector<2x96xf32>
    %205 = vector.extract_strided_slice %8 {offsets = [4, 96], sizes = [2, 96], strides = [1, 1]} : vector<16x192xf32> to vector<2x96xf32>
    %206 = tpu.concatenate %204, %205 in 0 : vector<2x96xf32>, vector<2x96xf32> -> vector<4x96xf32>
    %cst_42 = arith.constant dense<0.000000e+00> : vector<4x192xf32>
    %207 = tpu.matmul %199, %3, %cst_42 {dimension_numbers = #tpu.dot_dimension_numbers<[1], [0], [0], [1], [0, 0, 1, 1], [], []>} : vector<4x32xf32>, vector<32x192xf32>, vector<4x192xf32> -> vector<4x192xf32>
    %208 = vector.broadcast %5 : vector<1x192xf32> to vector<4x192xf32>
    %209 = arith.addf %207, %208 : vector<4x192xf32>
    %210 = vector.extract_strided_slice %209 {offsets = [0, 0], sizes = [2, 96], strides = [1, 1]} : vector<4x192xf32> to vector<2x96xf32>
    %211 = vector.extract_strided_slice %209 {offsets = [2, 96], sizes = [2, 96], strides = [1, 1]} : vector<4x192xf32> to vector<2x96xf32>
    %212 = tpu.concatenate %210, %211 in 0 : vector<2x96xf32>, vector<2x96xf32> -> vector<4x96xf32>
    %213 = vector.extract_strided_slice %206 {offsets = [0, 0], sizes = [4, 32], strides = [1, 1]} : vector<4x96xf32> to vector<4x32xf32>
    %214 = vector.extract_strided_slice %212 {offsets = [0, 0], sizes = [4, 32], strides = [1, 1]} : vector<4x96xf32> to vector<4x32xf32>
    %215 = arith.addf %213, %214 : vector<4x32xf32>
    %216 = arith.negf %215 : vector<4x32xf32>
    %217 = math.exp %216 : vector<4x32xf32>
    %cst_43 = arith.constant 1.000000e+00 : f32
    %218 = vector.broadcast %cst_43 : f32 to vector<4x32xf32>
    %219 = arith.addf %218, %217 : vector<4x32xf32>
    %220 = arith.divf %218, %219 : vector<4x32xf32>
    %221 = vector.extract_strided_slice %206 {offsets = [0, 32], sizes = [4, 32], strides = [1, 1]} : vector<4x96xf32> to vector<4x32xf32>
    %222 = vector.extract_strided_slice %212 {offsets = [0, 32], sizes = [4, 32], strides = [1, 1]} : vector<4x96xf32> to vector<4x32xf32>
    %223 = arith.addf %221, %222 : vector<4x32xf32>
    %224 = arith.negf %223 : vector<4x32xf32>
    %225 = math.exp %224 : vector<4x32xf32>
    %cst_44 = arith.constant 1.000000e+00 : f32
    %226 = vector.broadcast %cst_44 : f32 to vector<4x32xf32>
    %227 = arith.addf %226, %225 : vector<4x32xf32>
    %228 = arith.divf %226, %227 : vector<4x32xf32>
    %229 = vector.extract_strided_slice %206 {offsets = [0, 64], sizes = [4, 32], strides = [1, 1]} : vector<4x96xf32> to vector<4x32xf32>
    %230 = vector.extract_strided_slice %212 {offsets = [0, 64], sizes = [4, 32], strides = [1, 1]} : vector<4x96xf32> to vector<4x32xf32>
    %231 = arith.mulf %220, %230 : vector<4x32xf32>
    %232 = arith.addf %229, %231 : vector<4x32xf32>
    %233 = math.tanh %232 : vector<4x32xf32>
    %cst_45 = arith.constant 1.000000e+00 : f32
    %234 = vector.broadcast %cst_45 : f32 to vector<4x32xf32>
    %235 = arith.subf %234, %228 : vector<4x32xf32>
    %236 = arith.mulf %235, %233 : vector<4x32xf32>
    %237 = arith.mulf %228, %199 : vector<4x32xf32>
    %238 = arith.addf %236, %237 : vector<4x32xf32>
    %239 = vector.extract_strided_slice %238 {offsets = [0, 0], sizes = [2, 32], strides = [1, 1]} : vector<4x32xf32> to vector<2x32xf32>
    %c10_46 = arith.constant 10 : index
    %c0_47 = arith.constant 0 : index
    %240 = vector.load %arg12[%c10_46, %c0_47] : memref<16x64xf32, #tpu.memory_space<vmem>>, vector<2x32xf32>
    tpu.vector_store %arg12[%c10_46, %c0_47], %239 {strides = array<i32>} : memref<16x64xf32, #tpu.memory_space<vmem>>, vector<2x32xf32>,
    %241 = vector.extract_strided_slice %238 {offsets = [2, 0], sizes = [2, 32], strides = [1, 1]} : vector<4x32xf32> to vector<2x32xf32>
    %c4_48 = arith.constant 4 : index
    %c32_49 = arith.constant 32 : index
    %242 = vector.load %arg12[%c4_48, %c32_49] : memref<16x64xf32, #tpu.memory_space<vmem>>, vector<2x32xf32>
    tpu.vector_store %arg12[%c4_48, %c32_49], %241 {strides = array<i32>} : memref<16x64xf32, #tpu.memory_space<vmem>>, vector<2x32xf32>,
    %243 = vector.extract_strided_slice %8 {offsets = [12, 0], sizes = [2, 96], strides = [1, 1]} : vector<16x192xf32> to vector<2x96xf32>
    %244 = vector.extract_strided_slice %8 {offsets = [2, 96], sizes = [2, 96], strides = [1, 1]} : vector<16x192xf32> to vector<2x96xf32>
    %245 = tpu.concatenate %243, %244 in 0 : vector<2x96xf32>, vector<2x96xf32> -> vector<4x96xf32>
    %cst_50 = arith.constant dense<0.000000e+00> : vector<4x192xf32>
    %246 = tpu.matmul %238, %3, %cst_50 {dimension_numbers = #tpu.dot_dimension_numbers<[1], [0], [0], [1], [0, 0, 1, 1], [], []>} : vector<4x32xf32>, vector<32x192xf32>, vector<4x192xf32> -> vector<4x192xf32>
    %247 = vector.broadcast %5 : vector<1x192xf32> to vector<4x192xf32>
    %248 = arith.addf %246, %247 : vector<4x192xf32>
    %249 = vector.extract_strided_slice %248 {offsets = [0, 0], sizes = [2, 96], strides = [1, 1]} : vector<4x192xf32> to vector<2x96xf32>
    %250 = vector.extract_strided_slice %248 {offsets = [2, 96], sizes = [2, 96], strides = [1, 1]} : vector<4x192xf32> to vector<2x96xf32>
    %251 = tpu.concatenate %249, %250 in 0 : vector<2x96xf32>, vector<2x96xf32> -> vector<4x96xf32>
    %252 = vector.extract_strided_slice %245 {offsets = [0, 0], sizes = [4, 32], strides = [1, 1]} : vector<4x96xf32> to vector<4x32xf32>
    %253 = vector.extract_strided_slice %251 {offsets = [0, 0], sizes = [4, 32], strides = [1, 1]} : vector<4x96xf32> to vector<4x32xf32>
    %254 = arith.addf %252, %253 : vector<4x32xf32>
    %255 = arith.negf %254 : vector<4x32xf32>
    %256 = math.exp %255 : vector<4x32xf32>
    %cst_51 = arith.constant 1.000000e+00 : f32
    %257 = vector.broadcast %cst_51 : f32 to vector<4x32xf32>
    %258 = arith.addf %257, %256 : vector<4x32xf32>
    %259 = arith.divf %257, %258 : vector<4x32xf32>
    %260 = vector.extract_strided_slice %245 {offsets = [0, 32], sizes = [4, 32], strides = [1, 1]} : vector<4x96xf32> to vector<4x32xf32>
    %261 = vector.extract_strided_slice %251 {offsets = [0, 32], sizes = [4, 32], strides = [1, 1]} : vector<4x96xf32> to vector<4x32xf32>
    %262 = arith.addf %260, %261 : vector<4x32xf32>
    %263 = arith.negf %262 : vector<4x32xf32>
    %264 = math.exp %263 : vector<4x32xf32>
    %cst_52 = arith.constant 1.000000e+00 : f32
    %265 = vector.broadcast %cst_52 : f32 to vector<4x32xf32>
    %266 = arith.addf %265, %264 : vector<4x32xf32>
    %267 = arith.divf %265, %266 : vector<4x32xf32>
    %268 = vector.extract_strided_slice %245 {offsets = [0, 64], sizes = [4, 32], strides = [1, 1]} : vector<4x96xf32> to vector<4x32xf32>
    %269 = vector.extract_strided_slice %251 {offsets = [0, 64], sizes = [4, 32], strides = [1, 1]} : vector<4x96xf32> to vector<4x32xf32>
    %270 = arith.mulf %259, %269 : vector<4x32xf32>
    %271 = arith.addf %268, %270 : vector<4x32xf32>
    %272 = math.tanh %271 : vector<4x32xf32>
    %cst_53 = arith.constant 1.000000e+00 : f32
    %273 = vector.broadcast %cst_53 : f32 to vector<4x32xf32>
    %274 = arith.subf %273, %267 : vector<4x32xf32>
    %275 = arith.mulf %274, %272 : vector<4x32xf32>
    %276 = arith.mulf %267, %238 : vector<4x32xf32>
    %277 = arith.addf %275, %276 : vector<4x32xf32>
    %278 = vector.extract_strided_slice %277 {offsets = [0, 0], sizes = [2, 32], strides = [1, 1]} : vector<4x32xf32> to vector<2x32xf32>
    %c12_54 = arith.constant 12 : index
    %c0_55 = arith.constant 0 : index
    %279 = vector.load %arg12[%c12_54, %c0_55] : memref<16x64xf32, #tpu.memory_space<vmem>>, vector<2x32xf32>
    tpu.vector_store %arg12[%c12_54, %c0_55], %278 {strides = array<i32>} : memref<16x64xf32, #tpu.memory_space<vmem>>, vector<2x32xf32>,
    %280 = vector.extract_strided_slice %277 {offsets = [2, 0], sizes = [2, 32], strides = [1, 1]} : vector<4x32xf32> to vector<2x32xf32>
    %c2_56 = arith.constant 2 : index
    %c32_57 = arith.constant 32 : index
    %281 = vector.load %arg12[%c2_56, %c32_57] : memref<16x64xf32, #tpu.memory_space<vmem>>, vector<2x32xf32>
    tpu.vector_store %arg12[%c2_56, %c32_57], %280 {strides = array<i32>} : memref<16x64xf32, #tpu.memory_space<vmem>>, vector<2x32xf32>,
    %282 = vector.extract_strided_slice %8 {offsets = [14, 0], sizes = [2, 96], strides = [1, 1]} : vector<16x192xf32> to vector<2x96xf32>
    %283 = vector.extract_strided_slice %8 {offsets = [0, 96], sizes = [2, 96], strides = [1, 1]} : vector<16x192xf32> to vector<2x96xf32>
    %284 = tpu.concatenate %282, %283 in 0 : vector<2x96xf32>, vector<2x96xf32> -> vector<4x96xf32>
    %cst_58 = arith.constant dense<0.000000e+00> : vector<4x192xf32>
    %285 = tpu.matmul %277, %3, %cst_58 {dimension_numbers = #tpu.dot_dimension_numbers<[1], [0], [0], [1], [0, 0, 1, 1], [], []>} : vector<4x32xf32>, vector<32x192xf32>, vector<4x192xf32> -> vector<4x192xf32>
    %286 = vector.broadcast %5 : vector<1x192xf32> to vector<4x192xf32>
    %287 = arith.addf %285, %286 : vector<4x192xf32>
    %288 = vector.extract_strided_slice %287 {offsets = [0, 0], sizes = [2, 96], strides = [1, 1]} : vector<4x192xf32> to vector<2x96xf32>
    %289 = vector.extract_strided_slice %287 {offsets = [2, 96], sizes = [2, 96], strides = [1, 1]} : vector<4x192xf32> to vector<2x96xf32>
    %290 = tpu.concatenate %288, %289 in 0 : vector<2x96xf32>, vector<2x96xf32> -> vector<4x96xf32>
    %291 = vector.extract_strided_slice %284 {offsets = [0, 0], sizes = [4, 32], strides = [1, 1]} : vector<4x96xf32> to vector<4x32xf32>
    %292 = vector.extract_strided_slice %290 {offsets = [0, 0], sizes = [4, 32], strides = [1, 1]} : vector<4x96xf32> to vector<4x32xf32>
    %293 = arith.addf %291, %292 : vector<4x32xf32>
    %294 = arith.negf %293 : vector<4x32xf32>
    %295 = math.exp %294 : vector<4x32xf32>
    %cst_59 = arith.constant 1.000000e+00 : f32
    %296 = vector.broadcast %cst_59 : f32 to vector<4x32xf32>
    %297 = arith.addf %296, %295 : vector<4x32xf32>
    %298 = arith.divf %296, %297 : vector<4x32xf32>
    %299 = vector.extract_strided_slice %284 {offsets = [0, 32], sizes = [4, 32], strides = [1, 1]} : vector<4x96xf32> to vector<4x32xf32>
    %300 = vector.extract_strided_slice %290 {offsets = [0, 32], sizes = [4, 32], strides = [1, 1]} : vector<4x96xf32> to vector<4x32xf32>
    %301 = arith.addf %299, %300 : vector<4x32xf32>
    %302 = arith.negf %301 : vector<4x32xf32>
    %303 = math.exp %302 : vector<4x32xf32>
    %cst_60 = arith.constant 1.000000e+00 : f32
    %304 = vector.broadcast %cst_60 : f32 to vector<4x32xf32>
    %305 = arith.addf %304, %303 : vector<4x32xf32>
    %306 = arith.divf %304, %305 : vector<4x32xf32>
    %307 = vector.extract_strided_slice %284 {offsets = [0, 64], sizes = [4, 32], strides = [1, 1]} : vector<4x96xf32> to vector<4x32xf32>
    %308 = vector.extract_strided_slice %290 {offsets = [0, 64], sizes = [4, 32], strides = [1, 1]} : vector<4x96xf32> to vector<4x32xf32>
    %309 = arith.mulf %298, %308 : vector<4x32xf32>
    %310 = arith.addf %307, %309 : vector<4x32xf32>
    %311 = math.tanh %310 : vector<4x32xf32>
    %cst_61 = arith.constant 1.000000e+00 : f32
    %312 = vector.broadcast %cst_61 : f32 to vector<4x32xf32>
    %313 = arith.subf %312, %306 : vector<4x32xf32>
    %314 = arith.mulf %313, %311 : vector<4x32xf32>
    %315 = arith.mulf %306, %277 : vector<4x32xf32>
    %316 = arith.addf %314, %315 : vector<4x32xf32>
    %317 = vector.extract_strided_slice %316 {offsets = [0, 0], sizes = [2, 32], strides = [1, 1]} : vector<4x32xf32> to vector<2x32xf32>
    %c14_62 = arith.constant 14 : index
    %c0_63 = arith.constant 0 : index
    %318 = vector.load %arg12[%c14_62, %c0_63] : memref<16x64xf32, #tpu.memory_space<vmem>>, vector<2x32xf32>
    tpu.vector_store %arg12[%c14_62, %c0_63], %317 {strides = array<i32>} : memref<16x64xf32, #tpu.memory_space<vmem>>, vector<2x32xf32>,
    %319 = vector.extract_strided_slice %316 {offsets = [2, 0], sizes = [2, 32], strides = [1, 1]} : vector<4x32xf32> to vector<2x32xf32>
    %c0_64 = arith.constant 0 : index
    %c32_65 = arith.constant 32 : index
    %320 = vector.load %arg12[%c0_64, %c32_65] : memref<16x64xf32, #tpu.memory_space<vmem>>, vector<2x32xf32>
    tpu.vector_store %arg12[%c0_64, %c32_65], %319 {strides = array<i32>} : memref<16x64xf32, #tpu.memory_space<vmem>>, vector<2x32xf32>,
    %c0_66 = arith.constant 0 : index
    %c0_67 = arith.constant 0 : index
    %321 = vector.load %arg12[%c0_66, %c0_67] : memref<16x64xf32, #tpu.memory_space<vmem>>, vector<16x64xf32>
    %c0_68 = arith.constant 0 : index
    %c0_69 = arith.constant 0 : index
    %322 = vector.load %arg6[%c0_68, %c0_69] : memref<64x192xf32, #tpu.memory_space<vmem>>, vector<64x192xf32>
    %c0_70 = arith.constant 0 : index
    %c0_71 = arith.constant 0 : index
    %323 = vector.load %arg7[%c0_70, %c0_71] : memref<32x192xf32, #tpu.memory_space<vmem>>, vector<32x192xf32>
    %c0_72 = arith.constant 0 : index
    %c0_73 = arith.constant 0 : index
    %324 = vector.load %arg8[%c0_72, %c0_73] : memref<1x192xf32, #tpu.memory_space<vmem>>, vector<1x192xf32>
    %c0_74 = arith.constant 0 : index
    %c0_75 = arith.constant 0 : index
    %325 = vector.load %arg9[%c0_74, %c0_75] : memref<1x192xf32, #tpu.memory_space<vmem>>, vector<1x192xf32>
    %cst_76 = arith.constant dense<0.000000e+00> : vector<16x192xf32>
    %326 = tpu.matmul %321, %322, %cst_76 {dimension_numbers = #tpu.dot_dimension_numbers<[1], [0], [0], [1], [0, 0, 1, 1], [], []>} : vector<16x64xf32>, vector<64x192xf32>, vector<16x192xf32> -> vector<16x192xf32>
    %327 = vector.broadcast %324 : vector<1x192xf32> to vector<16x192xf32>
    %328 = arith.addf %326, %327 : vector<16x192xf32>
    %329 = vector.extract_strided_slice %328 {offsets = [0, 0], sizes = [2, 96], strides = [1, 1]} : vector<16x192xf32> to vector<2x96xf32>
    %330 = vector.extract_strided_slice %328 {offsets = [14, 96], sizes = [2, 96], strides = [1, 1]} : vector<16x192xf32> to vector<2x96xf32>
    %331 = tpu.concatenate %329, %330 in 0 : vector<2x96xf32>, vector<2x96xf32> -> vector<4x96xf32>
    %cst_77 = arith.constant dense<0.000000e+00> : vector<4x192xf32>
    %332 = tpu.matmul %0, %323, %cst_77 {dimension_numbers = #tpu.dot_dimension_numbers<[1], [0], [0], [1], [0, 0, 1, 1], [], []>} : vector<4x32xf32>, vector<32x192xf32>, vector<4x192xf32> -> vector<4x192xf32>
    %333 = vector.broadcast %325 : vector<1x192xf32> to vector<4x192xf32>
    %334 = arith.addf %332, %333 : vector<4x192xf32>
    %335 = vector.extract_strided_slice %334 {offsets = [0, 0], sizes = [2, 96], strides = [1, 1]} : vector<4x192xf32> to vector<2x96xf32>
    %336 = vector.extract_strided_slice %334 {offsets = [2, 96], sizes = [2, 96], strides = [1, 1]} : vector<4x192xf32> to vector<2x96xf32>
    %337 = tpu.concatenate %335, %336 in 0 : vector<2x96xf32>, vector<2x96xf32> -> vector<4x96xf32>
    %338 = vector.extract_strided_slice %331 {offsets = [0, 0], sizes = [4, 32], strides = [1, 1]} : vector<4x96xf32> to vector<4x32xf32>
    %339 = vector.extract_strided_slice %337 {offsets = [0, 0], sizes = [4, 32], strides = [1, 1]} : vector<4x96xf32> to vector<4x32xf32>
    %340 = arith.addf %338, %339 : vector<4x32xf32>
    %341 = arith.negf %340 : vector<4x32xf32>
    %342 = math.exp %341 : vector<4x32xf32>
    %cst_78 = arith.constant 1.000000e+00 : f32
    %343 = vector.broadcast %cst_78 : f32 to vector<4x32xf32>
    %344 = arith.addf %343, %342 : vector<4x32xf32>
    %345 = arith.divf %343, %344 : vector<4x32xf32>
    %346 = vector.extract_strided_slice %331 {offsets = [0, 32], sizes = [4, 32], strides = [1, 1]} : vector<4x96xf32> to vector<4x32xf32>
    %347 = vector.extract_strided_slice %337 {offsets = [0, 32], sizes = [4, 32], strides = [1, 1]} : vector<4x96xf32> to vector<4x32xf32>
    %348 = arith.addf %346, %347 : vector<4x32xf32>
    %349 = arith.negf %348 : vector<4x32xf32>
    %350 = math.exp %349 : vector<4x32xf32>
    %cst_79 = arith.constant 1.000000e+00 : f32
    %351 = vector.broadcast %cst_79 : f32 to vector<4x32xf32>
    %352 = arith.addf %351, %350 : vector<4x32xf32>
    %353 = arith.divf %351, %352 : vector<4x32xf32>
    %354 = vector.extract_strided_slice %331 {offsets = [0, 64], sizes = [4, 32], strides = [1, 1]} : vector<4x96xf32> to vector<4x32xf32>
    %355 = vector.extract_strided_slice %337 {offsets = [0, 64], sizes = [4, 32], strides = [1, 1]} : vector<4x96xf32> to vector<4x32xf32>
    %356 = arith.mulf %345, %355 : vector<4x32xf32>
    %357 = arith.addf %354, %356 : vector<4x32xf32>
    %358 = math.tanh %357 : vector<4x32xf32>
    %cst_80 = arith.constant 1.000000e+00 : f32
    %359 = vector.broadcast %cst_80 : f32 to vector<4x32xf32>
    %360 = arith.subf %359, %353 : vector<4x32xf32>
    %361 = arith.mulf %360, %358 : vector<4x32xf32>
    %362 = arith.mulf %353, %0 : vector<4x32xf32>
    %363 = arith.addf %361, %362 : vector<4x32xf32>
    %364 = vector.extract_strided_slice %363 {offsets = [0, 0], sizes = [2, 32], strides = [1, 1]} : vector<4x32xf32> to vector<2x32xf32>
    %c0_81 = arith.constant 0 : index
    %c0_82 = arith.constant 0 : index
    %365 = vector.load %arg10[%c0_81, %c0_82] : memref<16x64xf32, #tpu.memory_space<vmem>>, vector<2x32xf32>
    tpu.vector_store %arg10[%c0_81, %c0_82], %364 {strides = array<i32>} : memref<16x64xf32, #tpu.memory_space<vmem>>, vector<2x32xf32>,
    %366 = vector.extract_strided_slice %363 {offsets = [2, 0], sizes = [2, 32], strides = [1, 1]} : vector<4x32xf32> to vector<2x32xf32>
    %c14_83 = arith.constant 14 : index
    %c32_84 = arith.constant 32 : index
    %367 = vector.load %arg10[%c14_83, %c32_84] : memref<16x64xf32, #tpu.memory_space<vmem>>, vector<2x32xf32>
    tpu.vector_store %arg10[%c14_83, %c32_84], %366 {strides = array<i32>} : memref<16x64xf32, #tpu.memory_space<vmem>>, vector<2x32xf32>,
    %368 = vector.extract_strided_slice %328 {offsets = [2, 0], sizes = [2, 96], strides = [1, 1]} : vector<16x192xf32> to vector<2x96xf32>
    %369 = vector.extract_strided_slice %328 {offsets = [12, 96], sizes = [2, 96], strides = [1, 1]} : vector<16x192xf32> to vector<2x96xf32>
    %370 = tpu.concatenate %368, %369 in 0 : vector<2x96xf32>, vector<2x96xf32> -> vector<4x96xf32>
    %cst_85 = arith.constant dense<0.000000e+00> : vector<4x192xf32>
    %371 = tpu.matmul %363, %323, %cst_85 {dimension_numbers = #tpu.dot_dimension_numbers<[1], [0], [0], [1], [0, 0, 1, 1], [], []>} : vector<4x32xf32>, vector<32x192xf32>, vector<4x192xf32> -> vector<4x192xf32>
    %372 = vector.broadcast %325 : vector<1x192xf32> to vector<4x192xf32>
    %373 = arith.addf %371, %372 : vector<4x192xf32>
    %374 = vector.extract_strided_slice %373 {offsets = [0, 0], sizes = [2, 96], strides = [1, 1]} : vector<4x192xf32> to vector<2x96xf32>
    %375 = vector.extract_strided_slice %373 {offsets = [2, 96], sizes = [2, 96], strides = [1, 1]} : vector<4x192xf32> to vector<2x96xf32>
    %376 = tpu.concatenate %374, %375 in 0 : vector<2x96xf32>, vector<2x96xf32> -> vector<4x96xf32>
    %377 = vector.extract_strided_slice %370 {offsets = [0, 0], sizes = [4, 32], strides = [1, 1]} : vector<4x96xf32> to vector<4x32xf32>
    %378 = vector.extract_strided_slice %376 {offsets = [0, 0], sizes = [4, 32], strides = [1, 1]} : vector<4x96xf32> to vector<4x32xf32>
    %379 = arith.addf %377, %378 : vector<4x32xf32>
    %380 = arith.negf %379 : vector<4x32xf32>
    %381 = math.exp %380 : vector<4x32xf32>
    %cst_86 = arith.constant 1.000000e+00 : f32
    %382 = vector.broadcast %cst_86 : f32 to vector<4x32xf32>
    %383 = arith.addf %382, %381 : vector<4x32xf32>
    %384 = arith.divf %382, %383 : vector<4x32xf32>
    %385 = vector.extract_strided_slice %370 {offsets = [0, 32], sizes = [4, 32], strides = [1, 1]} : vector<4x96xf32> to vector<4x32xf32>
    %386 = vector.extract_strided_slice %376 {offsets = [0, 32], sizes = [4, 32], strides = [1, 1]} : vector<4x96xf32> to vector<4x32xf32>
    %387 = arith.addf %385, %386 : vector<4x32xf32>
    %388 = arith.negf %387 : vector<4x32xf32>
    %389 = math.exp %388 : vector<4x32xf32>
    %cst_87 = arith.constant 1.000000e+00 : f32
    %390 = vector.broadcast %cst_87 : f32 to vector<4x32xf32>
    %391 = arith.addf %390, %389 : vector<4x32xf32>
    %392 = arith.divf %390, %391 : vector<4x32xf32>
    %393 = vector.extract_strided_slice %370 {offsets = [0, 64], sizes = [4, 32], strides = [1, 1]} : vector<4x96xf32> to vector<4x32xf32>
    %394 = vector.extract_strided_slice %376 {offsets = [0, 64], sizes = [4, 32], strides = [1, 1]} : vector<4x96xf32> to vector<4x32xf32>
    %395 = arith.mulf %384, %394 : vector<4x32xf32>
    %396 = arith.addf %393, %395 : vector<4x32xf32>
    %397 = math.tanh %396 : vector<4x32xf32>
    %cst_88 = arith.constant 1.000000e+00 : f32
    %398 = vector.broadcast %cst_88 : f32 to vector<4x32xf32>
    %399 = arith.subf %398, %392 : vector<4x32xf32>
    %400 = arith.mulf %399, %397 : vector<4x32xf32>
    %401 = arith.mulf %392, %363 : vector<4x32xf32>
    %402 = arith.addf %400, %401 : vector<4x32xf32>
    %403 = vector.extract_strided_slice %402 {offsets = [0, 0], sizes = [2, 32], strides = [1, 1]} : vector<4x32xf32> to vector<2x32xf32>
    %c2_89 = arith.constant 2 : index
    %c0_90 = arith.constant 0 : index
    %404 = vector.load %arg10[%c2_89, %c0_90] : memref<16x64xf32, #tpu.memory_space<vmem>>, vector<2x32xf32>
    tpu.vector_store %arg10[%c2_89, %c0_90], %403 {strides = array<i32>} : memref<16x64xf32, #tpu.memory_space<vmem>>, vector<2x32xf32>,
    %405 = vector.extract_strided_slice %402 {offsets = [2, 0], sizes = [2, 32], strides = [1, 1]} : vector<4x32xf32> to vector<2x32xf32>
    %c12_91 = arith.constant 12 : index
    %c32_92 = arith.constant 32 : index
    %406 = vector.load %arg10[%c12_91, %c32_92] : memref<16x64xf32, #tpu.memory_space<vmem>>, vector<2x32xf32>
    tpu.vector_store %arg10[%c12_91, %c32_92], %405 {strides = array<i32>} : memref<16x64xf32, #tpu.memory_space<vmem>>, vector<2x32xf32>,
    %407 = vector.extract_strided_slice %328 {offsets = [4, 0], sizes = [2, 96], strides = [1, 1]} : vector<16x192xf32> to vector<2x96xf32>
    %408 = vector.extract_strided_slice %328 {offsets = [10, 96], sizes = [2, 96], strides = [1, 1]} : vector<16x192xf32> to vector<2x96xf32>
    %409 = tpu.concatenate %407, %408 in 0 : vector<2x96xf32>, vector<2x96xf32> -> vector<4x96xf32>
    %cst_93 = arith.constant dense<0.000000e+00> : vector<4x192xf32>
    %410 = tpu.matmul %402, %323, %cst_93 {dimension_numbers = #tpu.dot_dimension_numbers<[1], [0], [0], [1], [0, 0, 1, 1], [], []>} : vector<4x32xf32>, vector<32x192xf32>, vector<4x192xf32> -> vector<4x192xf32>
    %411 = vector.broadcast %325 : vector<1x192xf32> to vector<4x192xf32>
    %412 = arith.addf %410, %411 : vector<4x192xf32>
    %413 = vector.extract_strided_slice %412 {offsets = [0, 0], sizes = [2, 96], strides = [1, 1]} : vector<4x192xf32> to vector<2x96xf32>
    %414 = vector.extract_strided_slice %412 {offsets = [2, 96], sizes = [2, 96], strides = [1, 1]} : vector<4x192xf32> to vector<2x96xf32>
    %415 = tpu.concatenate %413, %414 in 0 : vector<2x96xf32>, vector<2x96xf32> -> vector<4x96xf32>
    %416 = vector.extract_strided_slice %409 {offsets = [0, 0], sizes = [4, 32], strides = [1, 1]} : vector<4x96xf32> to vector<4x32xf32>
    %417 = vector.extract_strided_slice %415 {offsets = [0, 0], sizes = [4, 32], strides = [1, 1]} : vector<4x96xf32> to vector<4x32xf32>
    %418 = arith.addf %416, %417 : vector<4x32xf32>
    %419 = arith.negf %418 : vector<4x32xf32>
    %420 = math.exp %419 : vector<4x32xf32>
    %cst_94 = arith.constant 1.000000e+00 : f32
    %421 = vector.broadcast %cst_94 : f32 to vector<4x32xf32>
    %422 = arith.addf %421, %420 : vector<4x32xf32>
    %423 = arith.divf %421, %422 : vector<4x32xf32>
    %424 = vector.extract_strided_slice %409 {offsets = [0, 32], sizes = [4, 32], strides = [1, 1]} : vector<4x96xf32> to vector<4x32xf32>
    %425 = vector.extract_strided_slice %415 {offsets = [0, 32], sizes = [4, 32], strides = [1, 1]} : vector<4x96xf32> to vector<4x32xf32>
    %426 = arith.addf %424, %425 : vector<4x32xf32>
    %427 = arith.negf %426 : vector<4x32xf32>
    %428 = math.exp %427 : vector<4x32xf32>
    %cst_95 = arith.constant 1.000000e+00 : f32
    %429 = vector.broadcast %cst_95 : f32 to vector<4x32xf32>
    %430 = arith.addf %429, %428 : vector<4x32xf32>
    %431 = arith.divf %429, %430 : vector<4x32xf32>
    %432 = vector.extract_strided_slice %409 {offsets = [0, 64], sizes = [4, 32], strides = [1, 1]} : vector<4x96xf32> to vector<4x32xf32>
    %433 = vector.extract_strided_slice %415 {offsets = [0, 64], sizes = [4, 32], strides = [1, 1]} : vector<4x96xf32> to vector<4x32xf32>
    %434 = arith.mulf %423, %433 : vector<4x32xf32>
    %435 = arith.addf %432, %434 : vector<4x32xf32>
    %436 = math.tanh %435 : vector<4x32xf32>
    %cst_96 = arith.constant 1.000000e+00 : f32
    %437 = vector.broadcast %cst_96 : f32 to vector<4x32xf32>
    %438 = arith.subf %437, %431 : vector<4x32xf32>
    %439 = arith.mulf %438, %436 : vector<4x32xf32>
    %440 = arith.mulf %431, %402 : vector<4x32xf32>
    %441 = arith.addf %439, %440 : vector<4x32xf32>
    %442 = vector.extract_strided_slice %441 {offsets = [0, 0], sizes = [2, 32], strides = [1, 1]} : vector<4x32xf32> to vector<2x32xf32>
    %c4_97 = arith.constant 4 : index
    %c0_98 = arith.constant 0 : index
    %443 = vector.load %arg10[%c4_97, %c0_98] : memref<16x64xf32, #tpu.memory_space<vmem>>, vector<2x32xf32>
    tpu.vector_store %arg10[%c4_97, %c0_98], %442 {strides = array<i32>} : memref<16x64xf32, #tpu.memory_space<vmem>>, vector<2x32xf32>,
    %444 = vector.extract_strided_slice %441 {offsets = [2, 0], sizes = [2, 32], strides = [1, 1]} : vector<4x32xf32> to vector<2x32xf32>
    %c10_99 = arith.constant 10 : index
    %c32_100 = arith.constant 32 : index
    %445 = vector.load %arg10[%c10_99, %c32_100] : memref<16x64xf32, #tpu.memory_space<vmem>>, vector<2x32xf32>
    tpu.vector_store %arg10[%c10_99, %c32_100], %444 {strides = array<i32>} : memref<16x64xf32, #tpu.memory_space<vmem>>, vector<2x32xf32>,
    %446 = vector.extract_strided_slice %328 {offsets = [6, 0], sizes = [2, 96], strides = [1, 1]} : vector<16x192xf32> to vector<2x96xf32>
    %447 = vector.extract_strided_slice %328 {offsets = [8, 96], sizes = [2, 96], strides = [1, 1]} : vector<16x192xf32> to vector<2x96xf32>
    %448 = tpu.concatenate %446, %447 in 0 : vector<2x96xf32>, vector<2x96xf32> -> vector<4x96xf32>
    %cst_101 = arith.constant dense<0.000000e+00> : vector<4x192xf32>
    %449 = tpu.matmul %441, %323, %cst_101 {dimension_numbers = #tpu.dot_dimension_numbers<[1], [0], [0], [1], [0, 0, 1, 1], [], []>} : vector<4x32xf32>, vector<32x192xf32>, vector<4x192xf32> -> vector<4x192xf32>
    %450 = vector.broadcast %325 : vector<1x192xf32> to vector<4x192xf32>
    %451 = arith.addf %449, %450 : vector<4x192xf32>
    %452 = vector.extract_strided_slice %451 {offsets = [0, 0], sizes = [2, 96], strides = [1, 1]} : vector<4x192xf32> to vector<2x96xf32>
    %453 = vector.extract_strided_slice %451 {offsets = [2, 96], sizes = [2, 96], strides = [1, 1]} : vector<4x192xf32> to vector<2x96xf32>
    %454 = tpu.concatenate %452, %453 in 0 : vector<2x96xf32>, vector<2x96xf32> -> vector<4x96xf32>
    %455 = vector.extract_strided_slice %448 {offsets = [0, 0], sizes = [4, 32], strides = [1, 1]} : vector<4x96xf32> to vector<4x32xf32>
    %456 = vector.extract_strided_slice %454 {offsets = [0, 0], sizes = [4, 32], strides = [1, 1]} : vector<4x96xf32> to vector<4x32xf32>
    %457 = arith.addf %455, %456 : vector<4x32xf32>
    %458 = arith.negf %457 : vector<4x32xf32>
    %459 = math.exp %458 : vector<4x32xf32>
    %cst_102 = arith.constant 1.000000e+00 : f32
    %460 = vector.broadcast %cst_102 : f32 to vector<4x32xf32>
    %461 = arith.addf %460, %459 : vector<4x32xf32>
    %462 = arith.divf %460, %461 : vector<4x32xf32>
    %463 = vector.extract_strided_slice %448 {offsets = [0, 32], sizes = [4, 32], strides = [1, 1]} : vector<4x96xf32> to vector<4x32xf32>
    %464 = vector.extract_strided_slice %454 {offsets = [0, 32], sizes = [4, 32], strides = [1, 1]} : vector<4x96xf32> to vector<4x32xf32>
    %465 = arith.addf %463, %464 : vector<4x32xf32>
    %466 = arith.negf %465 : vector<4x32xf32>
    %467 = math.exp %466 : vector<4x32xf32>
    %cst_103 = arith.constant 1.000000e+00 : f32
    %468 = vector.broadcast %cst_103 : f32 to vector<4x32xf32>
    %469 = arith.addf %468, %467 : vector<4x32xf32>
    %470 = arith.divf %468, %469 : vector<4x32xf32>
    %471 = vector.extract_strided_slice %448 {offsets = [0, 64], sizes = [4, 32], strides = [1, 1]} : vector<4x96xf32> to vector<4x32xf32>
    %472 = vector.extract_strided_slice %454 {offsets = [0, 64], sizes = [4, 32], strides = [1, 1]} : vector<4x96xf32> to vector<4x32xf32>
    %473 = arith.mulf %462, %472 : vector<4x32xf32>
    %474 = arith.addf %471, %473 : vector<4x32xf32>
    %475 = math.tanh %474 : vector<4x32xf32>
    %cst_104 = arith.constant 1.000000e+00 : f32
    %476 = vector.broadcast %cst_104 : f32 to vector<4x32xf32>
    %477 = arith.subf %476, %470 : vector<4x32xf32>
    %478 = arith.mulf %477, %475 : vector<4x32xf32>
    %479 = arith.mulf %470, %441 : vector<4x32xf32>
    %480 = arith.addf %478, %479 : vector<4x32xf32>
    %481 = vector.extract_strided_slice %480 {offsets = [0, 0], sizes = [2, 32], strides = [1, 1]} : vector<4x32xf32> to vector<2x32xf32>
    %c6_105 = arith.constant 6 : index
    %c0_106 = arith.constant 0 : index
    %482 = vector.load %arg10[%c6_105, %c0_106] : memref<16x64xf32, #tpu.memory_space<vmem>>, vector<2x32xf32>
    tpu.vector_store %arg10[%c6_105, %c0_106], %481 {strides = array<i32>} : memref<16x64xf32, #tpu.memory_space<vmem>>, vector<2x32xf32>,
    %483 = vector.extract_strided_slice %480 {offsets = [2, 0], sizes = [2, 32], strides = [1, 1]} : vector<4x32xf32> to vector<2x32xf32>
    %c8_107 = arith.constant 8 : index
    %c32_108 = arith.constant 32 : index
    %484 = vector.load %arg10[%c8_107, %c32_108] : memref<16x64xf32, #tpu.memory_space<vmem>>, vector<2x32xf32>
    tpu.vector_store %arg10[%c8_107, %c32_108], %483 {strides = array<i32>} : memref<16x64xf32, #tpu.memory_space<vmem>>, vector<2x32xf32>,
    %485 = vector.extract_strided_slice %328 {offsets = [8, 0], sizes = [2, 96], strides = [1, 1]} : vector<16x192xf32> to vector<2x96xf32>
    %486 = vector.extract_strided_slice %328 {offsets = [6, 96], sizes = [2, 96], strides = [1, 1]} : vector<16x192xf32> to vector<2x96xf32>
    %487 = tpu.concatenate %485, %486 in 0 : vector<2x96xf32>, vector<2x96xf32> -> vector<4x96xf32>
    %cst_109 = arith.constant dense<0.000000e+00> : vector<4x192xf32>
    %488 = tpu.matmul %480, %323, %cst_109 {dimension_numbers = #tpu.dot_dimension_numbers<[1], [0], [0], [1], [0, 0, 1, 1], [], []>} : vector<4x32xf32>, vector<32x192xf32>, vector<4x192xf32> -> vector<4x192xf32>
    %489 = vector.broadcast %325 : vector<1x192xf32> to vector<4x192xf32>
    %490 = arith.addf %488, %489 : vector<4x192xf32>
    %491 = vector.extract_strided_slice %490 {offsets = [0, 0], sizes = [2, 96], strides = [1, 1]} : vector<4x192xf32> to vector<2x96xf32>
    %492 = vector.extract_strided_slice %490 {offsets = [2, 96], sizes = [2, 96], strides = [1, 1]} : vector<4x192xf32> to vector<2x96xf32>
    %493 = tpu.concatenate %491, %492 in 0 : vector<2x96xf32>, vector<2x96xf32> -> vector<4x96xf32>
    %494 = vector.extract_strided_slice %487 {offsets = [0, 0], sizes = [4, 32], strides = [1, 1]} : vector<4x96xf32> to vector<4x32xf32>
    %495 = vector.extract_strided_slice %493 {offsets = [0, 0], sizes = [4, 32], strides = [1, 1]} : vector<4x96xf32> to vector<4x32xf32>
    %496 = arith.addf %494, %495 : vector<4x32xf32>
    %497 = arith.negf %496 : vector<4x32xf32>
    %498 = math.exp %497 : vector<4x32xf32>
    %cst_110 = arith.constant 1.000000e+00 : f32
    %499 = vector.broadcast %cst_110 : f32 to vector<4x32xf32>
    %500 = arith.addf %499, %498 : vector<4x32xf32>
    %501 = arith.divf %499, %500 : vector<4x32xf32>
    %502 = vector.extract_strided_slice %487 {offsets = [0, 32], sizes = [4, 32], strides = [1, 1]} : vector<4x96xf32> to vector<4x32xf32>
    %503 = vector.extract_strided_slice %493 {offsets = [0, 32], sizes = [4, 32], strides = [1, 1]} : vector<4x96xf32> to vector<4x32xf32>
    %504 = arith.addf %502, %503 : vector<4x32xf32>
    %505 = arith.negf %504 : vector<4x32xf32>
    %506 = math.exp %505 : vector<4x32xf32>
    %cst_111 = arith.constant 1.000000e+00 : f32
    %507 = vector.broadcast %cst_111 : f32 to vector<4x32xf32>
    %508 = arith.addf %507, %506 : vector<4x32xf32>
    %509 = arith.divf %507, %508 : vector<4x32xf32>
    %510 = vector.extract_strided_slice %487 {offsets = [0, 64], sizes = [4, 32], strides = [1, 1]} : vector<4x96xf32> to vector<4x32xf32>
    %511 = vector.extract_strided_slice %493 {offsets = [0, 64], sizes = [4, 32], strides = [1, 1]} : vector<4x96xf32> to vector<4x32xf32>
    %512 = arith.mulf %501, %511 : vector<4x32xf32>
    %513 = arith.addf %510, %512 : vector<4x32xf32>
    %514 = math.tanh %513 : vector<4x32xf32>
    %cst_112 = arith.constant 1.000000e+00 : f32
    %515 = vector.broadcast %cst_112 : f32 to vector<4x32xf32>
    %516 = arith.subf %515, %509 : vector<4x32xf32>
    %517 = arith.mulf %516, %514 : vector<4x32xf32>
    %518 = arith.mulf %509, %480 : vector<4x32xf32>
    %519 = arith.addf %517, %518 : vector<4x32xf32>
    %520 = vector.extract_strided_slice %519 {offsets = [0, 0], sizes = [2, 32], strides = [1, 1]} : vector<4x32xf32> to vector<2x32xf32>
    %c8_113 = arith.constant 8 : index
    %c0_114 = arith.constant 0 : index
    %521 = vector.load %arg10[%c8_113, %c0_114] : memref<16x64xf32, #tpu.memory_space<vmem>>, vector<2x32xf32>
    tpu.vector_store %arg10[%c8_113, %c0_114], %520 {strides = array<i32>} : memref<16x64xf32, #tpu.memory_space<vmem>>, vector<2x32xf32>,
    %522 = vector.extract_strided_slice %519 {offsets = [2, 0], sizes = [2, 32], strides = [1, 1]} : vector<4x32xf32> to vector<2x32xf32>
    %c6_115 = arith.constant 6 : index
    %c32_116 = arith.constant 32 : index
    %523 = vector.load %arg10[%c6_115, %c32_116] : memref<16x64xf32, #tpu.memory_space<vmem>>, vector<2x32xf32>
    tpu.vector_store %arg10[%c6_115, %c32_116], %522 {strides = array<i32>} : memref<16x64xf32, #tpu.memory_space<vmem>>, vector<2x32xf32>,
    %524 = vector.extract_strided_slice %328 {offsets = [10, 0], sizes = [2, 96], strides = [1, 1]} : vector<16x192xf32> to vector<2x96xf32>
    %525 = vector.extract_strided_slice %328 {offsets = [4, 96], sizes = [2, 96], strides = [1, 1]} : vector<16x192xf32> to vector<2x96xf32>
    %526 = tpu.concatenate %524, %525 in 0 : vector<2x96xf32>, vector<2x96xf32> -> vector<4x96xf32>
    %cst_117 = arith.constant dense<0.000000e+00> : vector<4x192xf32>
    %527 = tpu.matmul %519, %323, %cst_117 {dimension_numbers = #tpu.dot_dimension_numbers<[1], [0], [0], [1], [0, 0, 1, 1], [], []>} : vector<4x32xf32>, vector<32x192xf32>, vector<4x192xf32> -> vector<4x192xf32>
    %528 = vector.broadcast %325 : vector<1x192xf32> to vector<4x192xf32>
    %529 = arith.addf %527, %528 : vector<4x192xf32>
    %530 = vector.extract_strided_slice %529 {offsets = [0, 0], sizes = [2, 96], strides = [1, 1]} : vector<4x192xf32> to vector<2x96xf32>
    %531 = vector.extract_strided_slice %529 {offsets = [2, 96], sizes = [2, 96], strides = [1, 1]} : vector<4x192xf32> to vector<2x96xf32>
    %532 = tpu.concatenate %530, %531 in 0 : vector<2x96xf32>, vector<2x96xf32> -> vector<4x96xf32>
    %533 = vector.extract_strided_slice %526 {offsets = [0, 0], sizes = [4, 32], strides = [1, 1]} : vector<4x96xf32> to vector<4x32xf32>
    %534 = vector.extract_strided_slice %532 {offsets = [0, 0], sizes = [4, 32], strides = [1, 1]} : vector<4x96xf32> to vector<4x32xf32>
    %535 = arith.addf %533, %534 : vector<4x32xf32>
    %536 = arith.negf %535 : vector<4x32xf32>
    %537 = math.exp %536 : vector<4x32xf32>
    %cst_118 = arith.constant 1.000000e+00 : f32
    %538 = vector.broadcast %cst_118 : f32 to vector<4x32xf32>
    %539 = arith.addf %538, %537 : vector<4x32xf32>
    %540 = arith.divf %538, %539 : vector<4x32xf32>
    %541 = vector.extract_strided_slice %526 {offsets = [0, 32], sizes = [4, 32], strides = [1, 1]} : vector<4x96xf32> to vector<4x32xf32>
    %542 = vector.extract_strided_slice %532 {offsets = [0, 32], sizes = [4, 32], strides = [1, 1]} : vector<4x96xf32> to vector<4x32xf32>
    %543 = arith.addf %541, %542 : vector<4x32xf32>
    %544 = arith.negf %543 : vector<4x32xf32>
    %545 = math.exp %544 : vector<4x32xf32>
    %cst_119 = arith.constant 1.000000e+00 : f32
    %546 = vector.broadcast %cst_119 : f32 to vector<4x32xf32>
    %547 = arith.addf %546, %545 : vector<4x32xf32>
    %548 = arith.divf %546, %547 : vector<4x32xf32>
    %549 = vector.extract_strided_slice %526 {offsets = [0, 64], sizes = [4, 32], strides = [1, 1]} : vector<4x96xf32> to vector<4x32xf32>
    %550 = vector.extract_strided_slice %532 {offsets = [0, 64], sizes = [4, 32], strides = [1, 1]} : vector<4x96xf32> to vector<4x32xf32>
    %551 = arith.mulf %540, %550 : vector<4x32xf32>
    %552 = arith.addf %549, %551 : vector<4x32xf32>
    %553 = math.tanh %552 : vector<4x32xf32>
    %cst_120 = arith.constant 1.000000e+00 : f32
    %554 = vector.broadcast %cst_120 : f32 to vector<4x32xf32>
    %555 = arith.subf %554, %548 : vector<4x32xf32>
    %556 = arith.mulf %555, %553 : vector<4x32xf32>
    %557 = arith.mulf %548, %519 : vector<4x32xf32>
    %558 = arith.addf %556, %557 : vector<4x32xf32>
    %559 = vector.extract_strided_slice %558 {offsets = [0, 0], sizes = [2, 32], strides = [1, 1]} : vector<4x32xf32> to vector<2x32xf32>
    %c10_121 = arith.constant 10 : index
    %c0_122 = arith.constant 0 : index
    %560 = vector.load %arg10[%c10_121, %c0_122] : memref<16x64xf32, #tpu.memory_space<vmem>>, vector<2x32xf32>
    tpu.vector_store %arg10[%c10_121, %c0_122], %559 {strides = array<i32>} : memref<16x64xf32, #tpu.memory_space<vmem>>, vector<2x32xf32>,
    %561 = vector.extract_strided_slice %558 {offsets = [2, 0], sizes = [2, 32], strides = [1, 1]} : vector<4x32xf32> to vector<2x32xf32>
    %c4_123 = arith.constant 4 : index
    %c32_124 = arith.constant 32 : index
    %562 = vector.load %arg10[%c4_123, %c32_124] : memref<16x64xf32, #tpu.memory_space<vmem>>, vector<2x32xf32>
    tpu.vector_store %arg10[%c4_123, %c32_124], %561 {strides = array<i32>} : memref<16x64xf32, #tpu.memory_space<vmem>>, vector<2x32xf32>,
    %563 = vector.extract_strided_slice %328 {offsets = [12, 0], sizes = [2, 96], strides = [1, 1]} : vector<16x192xf32> to vector<2x96xf32>
    %564 = vector.extract_strided_slice %328 {offsets = [2, 96], sizes = [2, 96], strides = [1, 1]} : vector<16x192xf32> to vector<2x96xf32>
    %565 = tpu.concatenate %563, %564 in 0 : vector<2x96xf32>, vector<2x96xf32> -> vector<4x96xf32>
    %cst_125 = arith.constant dense<0.000000e+00> : vector<4x192xf32>
    %566 = tpu.matmul %558, %323, %cst_125 {dimension_numbers = #tpu.dot_dimension_numbers<[1], [0], [0], [1], [0, 0, 1, 1], [], []>} : vector<4x32xf32>, vector<32x192xf32>, vector<4x192xf32> -> vector<4x192xf32>
    %567 = vector.broadcast %325 : vector<1x192xf32> to vector<4x192xf32>
    %568 = arith.addf %566, %567 : vector<4x192xf32>
    %569 = vector.extract_strided_slice %568 {offsets = [0, 0], sizes = [2, 96], strides = [1, 1]} : vector<4x192xf32> to vector<2x96xf32>
    %570 = vector.extract_strided_slice %568 {offsets = [2, 96], sizes = [2, 96], strides = [1, 1]} : vector<4x192xf32> to vector<2x96xf32>
    %571 = tpu.concatenate %569, %570 in 0 : vector<2x96xf32>, vector<2x96xf32> -> vector<4x96xf32>
    %572 = vector.extract_strided_slice %565 {offsets = [0, 0], sizes = [4, 32], strides = [1, 1]} : vector<4x96xf32> to vector<4x32xf32>
    %573 = vector.extract_strided_slice %571 {offsets = [0, 0], sizes = [4, 32], strides = [1, 1]} : vector<4x96xf32> to vector<4x32xf32>
    %574 = arith.addf %572, %573 : vector<4x32xf32>
    %575 = arith.negf %574 : vector<4x32xf32>
    %576 = math.exp %575 : vector<4x32xf32>
    %cst_126 = arith.constant 1.000000e+00 : f32
    %577 = vector.broadcast %cst_126 : f32 to vector<4x32xf32>
    %578 = arith.addf %577, %576 : vector<4x32xf32>
    %579 = arith.divf %577, %578 : vector<4x32xf32>
    %580 = vector.extract_strided_slice %565 {offsets = [0, 32], sizes = [4, 32], strides = [1, 1]} : vector<4x96xf32> to vector<4x32xf32>
    %581 = vector.extract_strided_slice %571 {offsets = [0, 32], sizes = [4, 32], strides = [1, 1]} : vector<4x96xf32> to vector<4x32xf32>
    %582 = arith.addf %580, %581 : vector<4x32xf32>
    %583 = arith.negf %582 : vector<4x32xf32>
    %584 = math.exp %583 : vector<4x32xf32>
    %cst_127 = arith.constant 1.000000e+00 : f32
    %585 = vector.broadcast %cst_127 : f32 to vector<4x32xf32>
    %586 = arith.addf %585, %584 : vector<4x32xf32>
    %587 = arith.divf %585, %586 : vector<4x32xf32>
    %588 = vector.extract_strided_slice %565 {offsets = [0, 64], sizes = [4, 32], strides = [1, 1]} : vector<4x96xf32> to vector<4x32xf32>
    %589 = vector.extract_strided_slice %571 {offsets = [0, 64], sizes = [4, 32], strides = [1, 1]} : vector<4x96xf32> to vector<4x32xf32>
    %590 = arith.mulf %579, %589 : vector<4x32xf32>
    %591 = arith.addf %588, %590 : vector<4x32xf32>
    %592 = math.tanh %591 : vector<4x32xf32>
    %cst_128 = arith.constant 1.000000e+00 : f32
    %593 = vector.broadcast %cst_128 : f32 to vector<4x32xf32>
    %594 = arith.subf %593, %587 : vector<4x32xf32>
    %595 = arith.mulf %594, %592 : vector<4x32xf32>
    %596 = arith.mulf %587, %558 : vector<4x32xf32>
    %597 = arith.addf %595, %596 : vector<4x32xf32>
    %598 = vector.extract_strided_slice %597 {offsets = [0, 0], sizes = [2, 32], strides = [1, 1]} : vector<4x32xf32> to vector<2x32xf32>
    %c12_129 = arith.constant 12 : index
    %c0_130 = arith.constant 0 : index
    %599 = vector.load %arg10[%c12_129, %c0_130] : memref<16x64xf32, #tpu.memory_space<vmem>>, vector<2x32xf32>
    tpu.vector_store %arg10[%c12_129, %c0_130], %598 {strides = array<i32>} : memref<16x64xf32, #tpu.memory_space<vmem>>, vector<2x32xf32>,
    %600 = vector.extract_strided_slice %597 {offsets = [2, 0], sizes = [2, 32], strides = [1, 1]} : vector<4x32xf32> to vector<2x32xf32>
    %c2_131 = arith.constant 2 : index
    %c32_132 = arith.constant 32 : index
    %601 = vector.load %arg10[%c2_131, %c32_132] : memref<16x64xf32, #tpu.memory_space<vmem>>, vector<2x32xf32>
    tpu.vector_store %arg10[%c2_131, %c32_132], %600 {strides = array<i32>} : memref<16x64xf32, #tpu.memory_space<vmem>>, vector<2x32xf32>,
    %602 = vector.extract_strided_slice %328 {offsets = [14, 0], sizes = [2, 96], strides = [1, 1]} : vector<16x192xf32> to vector<2x96xf32>
    %603 = vector.extract_strided_slice %328 {offsets = [0, 96], sizes = [2, 96], strides = [1, 1]} : vector<16x192xf32> to vector<2x96xf32>
    %604 = tpu.concatenate %602, %603 in 0 : vector<2x96xf32>, vector<2x96xf32> -> vector<4x96xf32>
    %cst_133 = arith.constant dense<0.000000e+00> : vector<4x192xf32>
    %605 = tpu.matmul %597, %323, %cst_133 {dimension_numbers = #tpu.dot_dimension_numbers<[1], [0], [0], [1], [0, 0, 1, 1], [], []>} : vector<4x32xf32>, vector<32x192xf32>, vector<4x192xf32> -> vector<4x192xf32>
    %606 = vector.broadcast %325 : vector<1x192xf32> to vector<4x192xf32>
    %607 = arith.addf %605, %606 : vector<4x192xf32>
    %608 = vector.extract_strided_slice %607 {offsets = [0, 0], sizes = [2, 96], strides = [1, 1]} : vector<4x192xf32> to vector<2x96xf32>
    %609 = vector.extract_strided_slice %607 {offsets = [2, 96], sizes = [2, 96], strides = [1, 1]} : vector<4x192xf32> to vector<2x96xf32>
    %610 = tpu.concatenate %608, %609 in 0 : vector<2x96xf32>, vector<2x96xf32> -> vector<4x96xf32>
    %611 = vector.extract_strided_slice %604 {offsets = [0, 0], sizes = [4, 32], strides = [1, 1]} : vector<4x96xf32> to vector<4x32xf32>
    %612 = vector.extract_strided_slice %610 {offsets = [0, 0], sizes = [4, 32], strides = [1, 1]} : vector<4x96xf32> to vector<4x32xf32>
    %613 = arith.addf %611, %612 : vector<4x32xf32>
    %614 = arith.negf %613 : vector<4x32xf32>
    %615 = math.exp %614 : vector<4x32xf32>
    %cst_134 = arith.constant 1.000000e+00 : f32
    %616 = vector.broadcast %cst_134 : f32 to vector<4x32xf32>
    %617 = arith.addf %616, %615 : vector<4x32xf32>
    %618 = arith.divf %616, %617 : vector<4x32xf32>
    %619 = vector.extract_strided_slice %604 {offsets = [0, 32], sizes = [4, 32], strides = [1, 1]} : vector<4x96xf32> to vector<4x32xf32>
    %620 = vector.extract_strided_slice %610 {offsets = [0, 32], sizes = [4, 32], strides = [1, 1]} : vector<4x96xf32> to vector<4x32xf32>
    %621 = arith.addf %619, %620 : vector<4x32xf32>
    %622 = arith.negf %621 : vector<4x32xf32>
    %623 = math.exp %622 : vector<4x32xf32>
    %cst_135 = arith.constant 1.000000e+00 : f32
    %624 = vector.broadcast %cst_135 : f32 to vector<4x32xf32>
    %625 = arith.addf %624, %623 : vector<4x32xf32>
    %626 = arith.divf %624, %625 : vector<4x32xf32>
    %627 = vector.extract_strided_slice %604 {offsets = [0, 64], sizes = [4, 32], strides = [1, 1]} : vector<4x96xf32> to vector<4x32xf32>
    %628 = vector.extract_strided_slice %610 {offsets = [0, 64], sizes = [4, 32], strides = [1, 1]} : vector<4x96xf32> to vector<4x32xf32>
    %629 = arith.mulf %618, %628 : vector<4x32xf32>
    %630 = arith.addf %627, %629 : vector<4x32xf32>
    %631 = math.tanh %630 : vector<4x32xf32>
    %cst_136 = arith.constant 1.000000e+00 : f32
    %632 = vector.broadcast %cst_136 : f32 to vector<4x32xf32>
    %633 = arith.subf %632, %626 : vector<4x32xf32>
    %634 = arith.mulf %633, %631 : vector<4x32xf32>
    %635 = arith.mulf %626, %597 : vector<4x32xf32>
    %636 = arith.addf %634, %635 : vector<4x32xf32>
    %637 = vector.extract_strided_slice %636 {offsets = [0, 0], sizes = [2, 32], strides = [1, 1]} : vector<4x32xf32> to vector<2x32xf32>
    %c14_137 = arith.constant 14 : index
    %c0_138 = arith.constant 0 : index
    %638 = vector.load %arg10[%c14_137, %c0_138] : memref<16x64xf32, #tpu.memory_space<vmem>>, vector<2x32xf32>
    tpu.vector_store %arg10[%c14_137, %c0_138], %637 {strides = array<i32>} : memref<16x64xf32, #tpu.memory_space<vmem>>, vector<2x32xf32>,
    %639 = vector.extract_strided_slice %636 {offsets = [2, 0], sizes = [2, 32], strides = [1, 1]} : vector<4x32xf32> to vector<2x32xf32>
    %c0_139 = arith.constant 0 : index
    %c32_140 = arith.constant 32 : index
    %640 = vector.load %arg10[%c0_139, %c32_140] : memref<16x64xf32, #tpu.memory_space<vmem>>, vector<2x32xf32>
    tpu.vector_store %arg10[%c0_139, %c32_140], %639 {strides = array<i32>} : memref<16x64xf32, #tpu.memory_space<vmem>>, vector<2x32xf32>,
    %c0_141 = arith.constant 0 : index
    %c0_142 = arith.constant 0 : index
    %641 = vector.load %arg11[%c0_141, %c0_142] : memref<4x32xf32, #tpu.memory_space<vmem>>, vector<4x32xf32>
    tpu.vector_store %arg11[%c0_141, %c0_142], %636 {strides = array<i32>} : memref<4x32xf32, #tpu.memory_space<vmem>>, vector<4x32xf32>,
    return
  }
  func.func @transform_0(%arg0: i32) -> (i32, i32) {
    %c0_i32 = arith.constant 0 : i32
    %c0_i32_0 = arith.constant 0 : i32
    %c0_i32_1 = arith.constant 0 : i32
    return %c0_i32, %c0_i32_0 : i32, i32
  }
  func.func @transform_1(%arg0: i32) -> (i32, i32) {
    %c0_i32 = arith.constant 0 : i32
    %c0_i32_0 = arith.constant 0 : i32
    %c0_i32_1 = arith.constant 0 : i32
    return %c0_i32, %c0_i32_0 : i32, i32
  }
  func.func @transform_2(%arg0: i32) -> (i32, i32) {
    %c0_i32 = arith.constant 0 : i32
    %c0_i32_0 = arith.constant 0 : i32
    %c0_i32_1 = arith.constant 0 : i32
    return %c0_i32, %c0_i32_0 : i32, i32
  }
  func.func @transform_3(%arg0: i32) -> (i32, i32) {
    %c0_i32 = arith.constant 0 : i32
    %c0_i32_0 = arith.constant 0 : i32
    %c0_i32_1 = arith.constant 0 : i32
    return %c0_i32, %c0_i32_0 : i32, i32
  }
  func.func @transform_4(%arg0: i32) -> (i32, i32) {
    %c0_i32 = arith.constant 0 : i32
    %c0_i32_0 = arith.constant 0 : i32
    %c0_i32_1 = arith.constant 0 : i32
    return %c0_i32, %c0_i32_0 : i32, i32
  }
  func.func @transform_5(%arg0: i32) -> (i32, i32) {
    %c0_i32 = arith.constant 0 : i32
    %c0_i32_0 = arith.constant 0 : i32
    %c0_i32_1 = arith.constant 0 : i32
    return %c0_i32, %c0_i32_0 : i32, i32
  }
  func.func @transform_6(%arg0: i32) -> (i32, i32) {
    %c0_i32 = arith.constant 0 : i32
    %c0_i32_0 = arith.constant 0 : i32
    %c0_i32_1 = arith.constant 0 : i32
    return %c0_i32, %c0_i32_0 : i32, i32
  }
  func.func @transform_7(%arg0: i32) -> (i32, i32) {
    %c0_i32 = arith.constant 0 : i32
    %c0_i32_0 = arith.constant 0 : i32
    %c0_i32_1 = arith.constant 0 : i32
    return %c0_i32, %c0_i32_0 : i32, i32
  }
  func.func @transform_8(%arg0: i32) -> (i32, i32) {
    %c0_i32 = arith.constant 0 : i32
    %c0_i32_0 = arith.constant 0 : i32
    %c0_i32_1 = arith.constant 0 : i32
    return %c0_i32, %c0_i32_0 : i32, i32
  }
  func.func @transform_9(%arg0: i32) -> (i32, i32) {
    %c0_i32 = arith.constant 0 : i32
    %c0_i32_0 = arith.constant 0 : i32
    %c0_i32_1 = arith.constant 0 : i32
    return %c0_i32, %c0_i32_0 : i32, i32
  }
  func.func @transform_10(%arg0: i32) -> (i32, i32) {
    %c0_i32 = arith.constant 0 : i32
    %c0_i32_0 = arith.constant 0 : i32
    %c0_i32_1 = arith.constant 0 : i32
    return %c0_i32, %c0_i32_0 : i32, i32
  }
}

</mosaic_0001>

<llo_original>
// kernel: tpu_custom_call.1
$region0: #{tpu_custom_call.1}
  #allocation0 [shape = 'u32[]', space=smem, size = 0x4, offset = 0x4, fixed_abs, tag = 'smem constant byte address 0x4 - core index']
  #allocation1 [shape = 'u32[144,128]{1,0:T(1,128)}', space=vmem, size = 0x12000, scoped, tag = 'internal scratch']
  #allocation2 [shape = 'f32[16,64]{1,0:T(8,128)}', space=vmem, size = 0x2000, scoped, tag = 'scratch operand']
  %s0 = inlined_call_operand.hbm [shape: f32[16,16], index: 0, kind: input, shape index: {}]
  %s1 = inlined_call_operand.hbm [shape: f32[16,192], index: 1, kind: input, shape index: {}]
  %s2 = inlined_call_operand.hbm [shape: f32[32,192], index: 2, kind: input, shape index: {}]
  %s3 = inlined_call_operand.vmem [shape: f32[1,192], index: 3, kind: input, shape index: {}]
  %s4 = inlined_call_operand.vmem [shape: f32[1,192], index: 4, kind: input, shape index: {}]
  %s5 = inlined_call_operand.hbm [shape: f32[64,192], index: 5, kind: input, shape index: {}]
  %s6 = inlined_call_operand.hbm [shape: f32[32,192], index: 6, kind: input, shape index: {}]
  %s7 = inlined_call_operand.vmem [shape: f32[1,192], index: 7, kind: input, shape index: {}]
  %s8 = inlined_call_operand.vmem [shape: f32[1,192], index: 8, kind: input, shape index: {}]
  %s9 = inlined_call_operand.hbm [shape: f32[16,64], index: 9, kind: output, shape index: {0}]
  %s10 = inlined_call_operand.hbm [shape: f32[4,32], index: 10, kind: output, shape index: {1}]
  %11 = xla_tuple %s9, %s10
  %s12 = sld [smem:[#allocation0]]
  $region74: #{tpu_custom_call.1} parent=0
    _
  %s14 = ssub.s32 1, %s12
  %s15 = scalar_select 0, %s14, %s12
  $region1: #{tpu_custom_call.1} parent=0
    #allocation3 [shape = 'u8[8192]{0}', space=vmem, size = 0x2000, scoped, tag = 'input window, operand 0, single buffered']
    #allocation4 [shape = 's32[1]{0}', space=sflag, size = 0x4, scoped, tag = 'scoped memory for tpu_custom_call.1']
    #allocation5 [shape = 's32[1]{0}', space=sflag, size = 0x4, scoped, tag = 'scoped memory for tpu_custom_call.1']
    #allocation6 [shape = 'u8[16384]{0}', space=vmem, size = 0x4000, scoped, tag = 'input window, operand 1, single buffered']
    #allocation7 [shape = 's32[1]{0}', space=sflag, size = 0x4, scoped, tag = 'scoped memory for tpu_custom_call.1']
    #allocation8 [shape = 'u8[32768]{0}', space=vmem, size = 0x8000, scoped, tag = 'input window, operand 2, single buffered']
    #allocation9 [shape = 'u8[65536]{0}', space=vmem, size = 0x10000, scoped, tag = 'input window, operand 5, single buffered']
    #allocation10 [shape = 's32[1]{0}', space=sflag, size = 0x4, scoped, tag = 'scoped memory for tpu_custom_call.1']
    #allocation11 [shape = 'u8[32768]{0}', space=vmem, size = 0x8000, scoped, tag = 'input window, operand 6, single buffered']
    #allocation12 [shape = 'u8[8192]{0}', space=vmem, size = 0x2000, scoped, tag = 'output window, operand 0, single buffered']
    #allocation13 [shape = 'u8[2048]{0}', space=vmem, size = 0x800, scoped, tag = 'output window, operand 1, single buffered']
    #allocation14 [shape = 's32[1]{0}', space=sflag, size = 0x4, scoped, tag = 'scoped memory for tpu_custom_call.1']
    %16 = vsyncpa [#allocation4], 0
    %17 = vsyncpa [#allocation7], 0
    %18 = vsyncpa [#allocation10], 0
    %19 = vsyncpa [#allocation5], 0
    %20 = vsyncpa [#allocation14], 0
    // Predicated region
    $region2: #{tpu_custom_call.1} parent=1 // pred_check
      _
    $region3: #{tpu_custom_call.1} parent=1 // pred_check_branch
      %22 = sbr.rel (0) target = $region5
    $region4: #{tpu_custom_call.1} parent=1 // pred_region
      %s24 = ssub.s32 256, 256
      %25 = vsyncadd [#allocation4], %s24
      %s26 = sshll.u32 [#allocation3], 4
      %s27 = int_to_ptr.vmem [resolvable:$true] %s26
      %32 = dma.hbm_to_vmem [thread:$0]  %s0, 256, %s27, [#allocation4], 128, 128, 8
    $region5: #{tpu_custom_call.1} parent=1 // pred_fallthru
      _
    // Predicated region
    $region6: #{tpu_custom_call.1} parent=1 // pred_check
      _
    $region7: #{tpu_custom_call.1} parent=1 // pred_check_branch
      %34 = sbr.rel (0) target = $region9
    $region8: #{tpu_custom_call.1} parent=1 // pred_region
      %s36 = ssub.s32 512, 512
      %37 = vsyncadd [#allocation7], %s36
      %s38 = sshll.u32 [#allocation6], 4
      %s39 = int_to_ptr.vmem [resolvable:$true] %s38
      %44 = dma.hbm_to_vmem [thread:$0]  %s1, 512, %s39, [#allocation7], 256, 256, 16
    $region9: #{tpu_custom_call.1} parent=1 // pred_fallthru
      _
    // Predicated region
    $region10: #{tpu_custom_call.1} parent=1 // pred_check
      _
    $region11: #{tpu_custom_call.1} parent=1 // pred_check_branch
      %46 = sbr.rel (0) target = $region13
    $region12: #{tpu_custom_call.1} parent=1 // pred_region
      %s48 = ssub.s32 1024, 1024
      %49 = vsyncadd [#allocation7], %s48
      %s50 = sshll.u32 [#allocation8], 4
      %s51 = int_to_ptr.vmem [resolvable:$true] %s50
      %56 = dma.hbm_to_vmem [thread:$0]  %s2, 1024, %s51, [#allocation7], 256, 256, 16
    $region13: #{tpu_custom_call.1} parent=1 // pred_fallthru
      _
    // Predicated region
    $region14: #{tpu_custom_call.1} parent=1 // pred_check
      _
    $region15: #{tpu_custom_call.1} parent=1 // pred_check_branch
      %58 = sbr.rel (0) target = $region17
    $region16: #{tpu_custom_call.1} parent=1 // pred_region
      _
    $region17: #{tpu_custom_call.1} parent=1 // pred_fallthru
      _
    // Predicated region
    $region18: #{tpu_custom_call.1} parent=1 // pred_check
      _
    $region19: #{tpu_custom_call.1} parent=1 // pred_check_branch
      %60 = sbr.rel (0) target = $region21
    $region20: #{tpu_custom_call.1} parent=1 // pred_region
      _
    $region21: #{tpu_custom_call.1} parent=1 // pred_fallthru
      _
    // Predicated region
    $region22: #{tpu_custom_call.1} parent=1 // pred_check
      _
    $region23: #{tpu_custom_call.1} parent=1 // pred_check_branch
      %62 = sbr.rel (0) target = $region25
    $region24: #{tpu_custom_call.1} parent=1 // pred_region
      %s64 = ssub.s32 2048, 2048
      %65 = vsyncadd [#allocation10], %s64
      %s66 = sshll.u32 [#allocation9], 4
      %s67 = int_to_ptr.vmem [resolvable:$true] %s66
      %72 = dma.hbm_to_vmem [thread:$0]  %s5, 2048, %s67, [#allocation10], 256, 256, 16
    $region25: #{tpu_custom_call.1} parent=1 // pred_fallthru
      _
    // Predicated region
    $region26: #{tpu_custom_call.1} parent=1 // pred_check
      _
    $region27: #{tpu_custom_call.1} parent=1 // pred_check_branch
      %74 = sbr.rel (0) target = $region29
    $region28: #{tpu_custom_call.1} parent=1 // pred_region
      %s76 = ssub.s32 1024, 1024
      %77 = vsyncadd [#allocation10], %s76
      %s78 = sshll.u32 [#allocation11], 4
      %s79 = int_to_ptr.vmem [resolvable:$true] %s78
      %84 = dma.hbm_to_vmem [thread:$0]  %s6, 1024, %s79, [#allocation10], 256, 256, 16
    $region29: #{tpu_custom_call.1} parent=1 // pred_fallthru
      _
    // Predicated region
    $region30: #{tpu_custom_call.1} parent=1 // pred_check
      _
    $region31: #{tpu_custom_call.1} parent=1 // pred_check_branch
      %86 = sbr.rel (0) target = $region33
    $region32: #{tpu_custom_call.1} parent=1 // pred_region
      _
    $region33: #{tpu_custom_call.1} parent=1 // pred_fallthru
      _
    // Predicated region
    $region34: #{tpu_custom_call.1} parent=1 // pred_check
      _
    $region35: #{tpu_custom_call.1} parent=1 // pred_check_branch
      %88 = sbr.rel (0) target = $region37
    $region36: #{tpu_custom_call.1} parent=1 // pred_region
      _
    $region37: #{tpu_custom_call.1} parent=1 // pred_fallthru
      _
    // Predicated region
    $region38: #{tpu_custom_call.1} parent=1 // pred_check
      _
    $region39: #{tpu_custom_call.1} parent=1 // pred_check_branch
      %90 = sbr.rel (0) target = $region41
    $region40: #{tpu_custom_call.1} parent=1 // pred_region
      %91 = dma.done [#allocation4], 256
    $region41: #{tpu_custom_call.1} parent=1 // pred_fallthru
      _
    // Predicated region
    $region42: #{tpu_custom_call.1} parent=1 // pred_check
      _
    $region43: #{tpu_custom_call.1} parent=1 // pred_check_branch
      %93 = sbr.rel (0) target = $region45
    $region44: #{tpu_custom_call.1} parent=1 // pred_region
      %94 = dma.done [#allocation7], 512
    $region45: #{tpu_custom_call.1} parent=1 // pred_fallthru
      _
    // Predicated region
    $region46: #{tpu_custom_call.1} parent=1 // pred_check
      _
    $region47: #{tpu_custom_call.1} parent=1 // pred_check_branch
      %96 = sbr.rel (0) target = $region49
    $region48: #{tpu_custom_call.1} parent=1 // pred_region
      %97 = dma.done [#allocation7], 1024
    $region49: #{tpu_custom_call.1} parent=1 // pred_fallthru
      _
    // Predicated region
    $region50: #{tpu_custom_call.1} parent=1 // pred_check
      _
    $region51: #{tpu_custom_call.1} parent=1 // pred_check_branch
      %99 = sbr.rel (0) target = $region53
    $region52: #{tpu_custom_call.1} parent=1 // pred_region
      %100 = dma.done [#allocation10], 2048
    $region53: #{tpu_custom_call.1} parent=1 // pred_fallthru
      _
    // Predicated region
    $region54: #{tpu_custom_call.1} parent=1 // pred_check
      _
    $region55: #{tpu_custom_call.1} parent=1 // pred_check_branch
      %102 = sbr.rel (0) target = $region57
    $region56: #{tpu_custom_call.1} parent=1 // pred_region
      %103 = dma.done [#allocation10], 1024
    $region57: #{tpu_custom_call.1} parent=1 // pred_fallthru
      _
    %v104 = vld [vmem:[#allocation3] sm:$0xff]
    %v105 = vld [vmem:[#allocation3 + $0x8] sm:$0xff]
    %v106 = vld [vmem:[#allocation6] sm:$0xff]
    %v107 = vld [vmem:[#allocation6 + $0x8] sm:$0xff]
    %v108 = vld [vmem:[#allocation6 + $0x10] sm:$0xff]
    %v109 = vld [vmem:[#allocation6 + $0x18] sm:$0xff]
    %v110 = vld [vmem:[#allocation8] sm:$0xff]
    %v111 = vld [vmem:[#allocation8 + $0x8] sm:$0xff]
    %v112 = vld [vmem:[#allocation8 + $0x10] sm:$0xff]
    %v113 = vld [vmem:[#allocation8 + $0x18] sm:$0xff]
    %v114 = vld [vmem:[#allocation8 + $0x20] sm:$0xff]
    %v115 = vld [vmem:[#allocation8 + $0x28] sm:$0xff]
    %v116 = vld [vmem:[#allocation8 + $0x30] sm:$0xff]
    %v117 = vld [vmem:[#allocation8 + $0x38] sm:$0xff]
    %v118 = vld [vmem:[%s3] sm:$0x3]
    %v119 = vld [vmem:[%s4] sm:$0x3]
    %v121 = vlaneseq
    %v122 = vshrl.u32 %v121, 7
    %v123 = vsub.s32 0, %v122
    %v124 = vrot.slane %v118, %v123
    %v125 = vlaneseq
    %v126 = vshrl.u32 %v125, 7
    %v127 = vsub.s32 1, %v126
    %v128 = vrot.slane %v118, %v127
    %vm131 = vcmask 130048
    %v133 = vsel %vm131, %v104, 0
    %v136 = vsel %vm131, %v105, 0
    %138 = vmatprep.subr.mxu0 0.0
    %139 = vmatpush1.msra.mxu0 0.0
    %140 = vmatprep.subr.mxu0 0.0
    %141 = vmatpush1.msra.mxu0 0.0
    %142 = vmatprep.subr.mxu0 0.0
    %143 = vmatpush1.msra.mxu0 0.0
    %144 = vmatprep.subr.mxu0 0.0
    %145 = vmatpush1.msra.mxu0 0.0
    %146 = vmatprep.subr.mxu0 0.0
    %147 = vmatpush1.msra.mxu0 0.0
    %148 = vmatprep.subr.mxu0 0.0
    %149 = vmatpush1.msra.mxu0 0.0
    %150 = vmatprep.subr.mxu0 0.0
    %151 = vmatpush1.msra.mxu0 0.0
    %152 = vmatprep.subr.mxu0 0.0
    %153 = vmatpush1.msra.mxu0 0.0
    %154 = vmatprep.subr.mxu0 0.0
    %155 = vmatpush1.msra.mxu0 0.0
    %156 = vmatprep.subr.mxu0 0.0
    %157 = vmatpush1.msra.mxu0 0.0
    %158 = vmatprep.subr.mxu0 0.0
    %159 = vmatpush1.msra.mxu0 0.0
    %160 = vmatprep.subr.mxu0 0.0
    %161 = vmatpush1.msra.mxu0 0.0
    %162 = vmatprep.subr.mxu0 0.0
    %163 = vmatpush1.msra.mxu0 0.0
    %164 = vmatprep.subr.mxu0 0.0
    %165 = vmatpush1.msra.mxu0 0.0
    %166 = vmatprep.subr.mxu0 %v109
    %167 = vmatpush1.msra.mxu0 %v108
    %168 = vmatprep.subr.mxu0 %v107
    %169 = vmatpush1.msra.mxu0 %v106
    %170 = vmatprep.subr.mxu0 0.0
    %171 = vmatpush2.msra.mxu0 0.0
    %172 = vmatprep.subr.mxu0 0.0
    %173 = vmatpush2.msra.mxu0 0.0
    %174 = vmatprep.subr.mxu0 0.0
    %175 = vmatpush2.msra.mxu0 0.0
    %176 = vmatprep.subr.mxu0 0.0
    %177 = vmatpush2.msra.mxu0 0.0
    %178 = vmatprep.subr.mxu0 0.0
    %179 = vmatpush2.msra.mxu0 0.0
    %180 = vmatprep.subr.mxu0 0.0
    %181 = vmatpush2.msra.mxu0 0.0
    %182 = vmatprep.subr.mxu0 0.0
    %183 = vmatpush2.msra.mxu0 0.0
    %184 = vmatprep.subr.mxu0 0.0
    %185 = vmatpush2.msra.mxu0 0.0
    %186 = vmatprep.subr.mxu0 0.0
    %187 = vmatpush2.msra.mxu0 0.0
    %188 = vmatprep.subr.mxu0 0.0
    %189 = vmatpush2.msra.mxu0 0.0
    %190 = vmatprep.subr.mxu0 0.0
    %191 = vmatpush2.msra.mxu0 0.0
    %192 = vmatprep.subr.mxu0 0.0
    %193 = vmatpush2.msra.mxu0 0.0
    %194 = vmatprep.subr.mxu0 0.0
    %195 = vmatpush2.msra.mxu0 0.0
    %196 = vmatprep.subr.mxu0 0.0
    %197 = vmatpush2.msra.mxu0 0.0
    %198 = vmatprep.subr.mxu0 0.0
    %199 = vmatpush2.msra.mxu0 0.0
    %200 = vmatprep.subr.mxu0 0.0
    %201 = vmatpush2.msra.mxu0 0.0
    %202 = vmatprep.mubr.f32.mxu0 0.0
    %203 = vmatmul.mubr.f32.gmra.mxu0 %v133
    %v204 = vpop.f32.mrf.mxu0
    %v205 = vadd.f32 %v124, %v204
    %v206 = vpop.f32.mrf.mxu0
    %v207 = vadd.f32 %v128, %v206
    %208 = vmatprep.mubr.f32.mxu0 0.0
    %209 = vmatmul.mubr.f32.gmra.mxu0 %v136
    %v210 = vpop.f32.mrf.mxu0
    %v211 = vadd.f32 %v124, %v210
    %v212 = vpop.f32.mrf.mxu0
    %v213 = vadd.f32 %v128, %v212
    %214 = vdwg.mxu0
    %v217 = vrot.slane %v211, 4
    %v218 = vrot.slane %v213, 4
    %219 = vrot.lane.b32.xlu0 %v217, 32
    %v220 = vpop.permute.xlu0 %219
    %221 = vrot.lane.b32.xlu0 %v218, 32
    %v222 = vpop.permute.xlu0 %221
    %vm223 = vcmask 261120
    %v224 = vsel %vm223, %v220, %v222
    %vm226 = vcmask 1041408
    %v227 = vsel %vm226, %v205, %v224
    %v229 = vlaneseq
    %v230 = vshrl.u32 %v229, 7
    %v231 = vsub.s32 0, %v230
    %v232 = vrot.slane %v119, %v231
    %v233 = vlaneseq
    %v234 = vshrl.u32 %v233, 7
    %v235 = vsub.s32 1, %v234
    %v236 = vrot.slane %v119, %v235
    %v240 = vsel %vm223, 0.001, 0
    %242 = vmatprep.subr.mxu0 0.0
    %243 = vmatpush1.msra.mxu0 0.0
    %244 = vmatprep.subr.mxu0 0.0
    %245 = vmatpush1.msra.mxu0 0.0
    %246 = vmatprep.subr.mxu0 0.0
    %247 = vmatpush1.msra.mxu0 0.0
    %248 = vmatprep.subr.mxu0 0.0
    %249 = vmatpush1.msra.mxu0 0.0
    %250 = vmatprep.subr.mxu0 0.0
    %251 = vmatpush1.msra.mxu0 0.0
    %252 = vmatprep.subr.mxu0 0.0
    %253 = vmatpush1.msra.mxu0 0.0
    %254 = vmatprep.subr.mxu0 0.0
    %255 = vmatpush1.msra.mxu0 0.0
    %256 = vmatprep.subr.mxu0 0.0
    %257 = vmatpush1.msra.mxu0 0.0
    %258 = vmatprep.subr.mxu0 0.0
    %259 = vmatpush1.msra.mxu0 0.0
    %260 = vmatprep.subr.mxu0 0.0
    %261 = vmatpush1.msra.mxu0 0.0
    %262 = vmatprep.subr.mxu0 0.0
    %263 = vmatpush1.msra.mxu0 0.0
    %264 = vmatprep.subr.mxu0 0.0
    %265 = vmatpush1.msra.mxu0 0.0
    %266 = vmatprep.subr.mxu0 %v117
    %267 = vmatpush1.msra.mxu0 %v116
    %268 = vmatprep.subr.mxu0 %v115
    %269 = vmatpush1.msra.mxu0 %v114
    %270 = vmatprep.subr.mxu0 %v113
    %271 = vmatpush1.msra.mxu0 %v112
    %272 = vmatprep.subr.mxu0 %v111
    %273 = vmatpush1.msra.mxu0 %v110
    %274 = vmatprep.subr.mxu0 0.0
    %275 = vmatpush2.msra.mxu0 0.0
    %276 = vmatprep.subr.mxu0 0.0
    %277 = vmatpush2.msra.mxu0 0.0
    %278 = vmatprep.subr.mxu0 0.0
    %279 = vmatpush2.msra.mxu0 0.0
    %280 = vmatprep.subr.mxu0 0.0
    %281 = vmatpush2.msra.mxu0 0.0
    %282 = vmatprep.subr.mxu0 0.0
    %283 = vmatpush2.msra.mxu0 0.0
    %284 = vmatprep.subr.mxu0 0.0
    %285 = vmatpush2.msra.mxu0 0.0
    %286 = vmatprep.subr.mxu0 0.0
    %287 = vmatpush2.msra.mxu0 0.0
    %288 = vmatprep.subr.mxu0 0.0
    %289 = vmatpush2.msra.mxu0 0.0
    %290 = vmatprep.subr.mxu0 0.0
    %291 = vmatpush2.msra.mxu0 0.0
    %292 = vmatprep.subr.mxu0 0.0
    %293 = vmatpush2.msra.mxu0 0.0
    %294 = vmatprep.subr.mxu0 0.0
    %295 = vmatpush2.msra.mxu0 0.0
    %296 = vmatprep.subr.mxu0 0.0
    %297 = vmatpush2.msra.mxu0 0.0
    %298 = vmatprep.subr.mxu0 0.0
    %299 = vmatpush2.msra.mxu0 0.0
    %300 = vmatprep.subr.mxu0 0.0
    %301 = vmatpush2.msra.mxu0 0.0
    %302 = vmatprep.subr.mxu0 0.0
    %303 = vmatpush2.msra.mxu0 0.0
    %304 = vmatprep.subr.mxu0 0.0
    %305 = vmatpush2.msra.mxu0 0.0
    %306 = vmatprep.mubr.f32.mxu0 0.0
    %307 = vmatmul.mubr.f32.gmra.mxu0 %v240
    %v308 = vpop.f32.mrf.mxu0
    %v309 = vadd.f32 %v232, %v308
    %v310 = vpop.f32.mrf.mxu0
    %v311 = vadd.f32 %v236, %v310
    %312 = vdwg.mxu0
    %315 = vrot.lane.b32.xlu0 %v309, 32
    %v316 = vpop.permute.xlu0 %315
    %317 = vrot.lane.b32.xlu0 %v311, 32
    %v318 = vpop.permute.xlu0 %317
    %v319 = vsel %vm223, %v316, %v318
    %v321 = vsel %vm226, %v309, %v319
    %v322 = vadd.f32 %v227, %v321
    %v323 = vxor.u32 %v322, 2147483648
    %v324 = vmul.f32 %v323, 1.442695
    %v325 = vpow.pop %v324
    %v326 = vadd.f32 %v325, 1.0
    %v327 = vrcp.pop %v326
    %v328 = vmul.f32 1.0, %v327
    %330 = vrot.lane.b32.xlu0 %v321, 64
    %v331 = vpop.permute.xlu0 %330
    %v333 = vmul.f32 %v328, %v331
    %335 = vrot.lane.b32.xlu0 %v333, 64
    %v336 = vpop.permute.xlu0 %335
    %v338 = vadd.f32 %v227, %v336
    %v339 = vtanh.pop %v338
    %v340 = vsub.f32 1.0, %v328
    %342 = vrot.lane.b32.xlu0 %v339, 96
    %v343 = vpop.permute.xlu0 %342
    %v345 = vmul.f32 %v340, %v343
    %v346 = vmul.f32 %v328, 0.001
    %v347 = vadd.f32 %v345, %v346
    %349 = vrot.lane.b32.xlu0 %v347, 96
    %v350 = vpop.permute.xlu0 %349
    %vm352 = vcmask 254976
    %353 = vst.msk [vmem:[#allocation2] sm:$0x3] %vm352, %v350
    %vm354 = vcmask 519426
    %355 = vst.msk [vmem:[#allocation2 + $0xc] sm:$0xc] %vm354, %v347
    %v357 = vrot.slane %v205, 2
    %v359 = vrot.slane %v211, 2
    %v360 = vrot.slane %v213, 2
    %361 = vrot.lane.b32.xlu0 %v359, 32
    %v362 = vpop.permute.xlu0 %361
    %363 = vrot.lane.b32.xlu0 %v360, 32
    %v364 = vpop.permute.xlu0 %363
    %v365 = vsel %vm223, %v362, %v364
    %v367 = vsel %vm226, %v357, %v365
    %v368 = vsel %vm223, %v350, 0
    %370 = vmatprep.subr.mxu0 0.0
    %371 = vmatpush1.msra.mxu0 0.0
    %372 = vmatprep.subr.mxu0 0.0
    %373 = vmatpush1.msra.mxu0 0.0
    %374 = vmatprep.subr.mxu0 0.0
    %375 = vmatpush1.msra.mxu0 0.0
    %376 = vmatprep.subr.mxu0 0.0
    %377 = vmatpush1.msra.mxu0 0.0
    %378 = vmatprep.subr.mxu0 0.0
    %379 = vmatpush1.msra.mxu0 0.0
    %380 = vmatprep.subr.mxu0 0.0
    %381 = vmatpush1.msra.mxu0 0.0
    %382 = vmatprep.subr.mxu0 0.0
    %383 = vmatpush1.msra.mxu0 0.0
    %384 = vmatprep.subr.mxu0 0.0
    %385 = vmatpush1.msra.mxu0 0.0
    %386 = vmatprep.subr.mxu0 0.0
    %387 = vmatpush1.msra.mxu0 0.0
    %388 = vmatprep.subr.mxu0 0.0
    %389 = vmatpush1.msra.mxu0 0.0
    %390 = vmatprep.subr.mxu0 0.0
    %391 = vmatpush1.msra.mxu0 0.0
    %392 = vmatprep.subr.mxu0 0.0
    %393 = vmatpush1.msra.mxu0 0.0
    %394 = vmatprep.subr.mxu0 %v117
    %395 = vmatpush1.msra.mxu0 %v116
    %396 = vmatprep.subr.mxu0 %v115
    %397 = vmatpush1.msra.mxu0 %v114
    %398 = vmatprep.subr.mxu0 %v113
    %399 = vmatpush1.msra.mxu0 %v112
    %400 = vmatprep.subr.mxu0 %v111
    %401 = vmatpush1.msra.mxu0 %v110
    %402 = vmatprep.subr.mxu0 0.0
    %403 = vmatpush2.msra.mxu0 0.0
    %404 = vmatprep.subr.mxu0 0.0
    %405 = vmatpush2.msra.mxu0 0.0
    %406 = vmatprep.subr.mxu0 0.0
    %407 = vmatpush2.msra.mxu0 0.0
    %408 = vmatprep.subr.mxu0 0.0
    %409 = vmatpush2.msra.mxu0 0.0
    %410 = vmatprep.subr.mxu0 0.0
    %411 = vmatpush2.msra.mxu0 0.0
    %412 = vmatprep.subr.mxu0 0.0
    %413 = vmatpush2.msra.mxu0 0.0
    %414 = vmatprep.subr.mxu0 0.0
    %415 = vmatpush2.msra.mxu0 0.0
    %416 = vmatprep.subr.mxu0 0.0
    %417 = vmatpush2.msra.mxu0 0.0
    %418 = vmatprep.subr.mxu0 0.0
    %419 = vmatpush2.msra.mxu0 0.0
    %420 = vmatprep.subr.mxu0 0.0
    %421 = vmatpush2.msra.mxu0 0.0
    %422 = vmatprep.subr.mxu0 0.0
    %423 = vmatpush2.msra.mxu0 0.0
    %424 = vmatprep.subr.mxu0 0.0
    %425 = vmatpush2.msra.mxu0 0.0
    %426 = vmatprep.subr.mxu0 0.0
    %427 = vmatpush2.msra.mxu0 0.0
    %428 = vmatprep.subr.mxu0 0.0
    %429 = vmatpush2.msra.mxu0 0.0
    %430 = vmatprep.subr.mxu0 0.0
    %431 = vmatpush2.msra.mxu0 0.0
    %432 = vmatprep.subr.mxu0 0.0
    %433 = vmatpush2.msra.mxu0 0.0
    %434 = vmatprep.mubr.f32.mxu0 0.0
    %435 = vmatmul.mubr.f32.gmra.mxu0 %v368
    %v436 = vpop.f32.mrf.mxu0
    %v437 = vadd.f32 %v232, %v436
    %v438 = vpop.f32.mrf.mxu0
    %v439 = vadd.f32 %v236, %v438
    %440 = vdwg.mxu0
    %443 = vrot.lane.b32.xlu0 %v437, 32
    %v444 = vpop.permute.xlu0 %443
    %445 = vrot.lane.b32.xlu0 %v439, 32
    %v446 = vpop.permute.xlu0 %445
    %v447 = vsel %vm223, %v444, %v446
    %v449 = vsel %vm226, %v437, %v447
    %v450 = vadd.f32 %v367, %v449
    %v451 = vxor.u32 %v450, 2147483648
    %v452 = vmul.f32 %v451, 1.442695
    %v453 = vpow.pop %v452
    %v454 = vadd.f32 %v453, 1.0
    %v455 = vrcp.pop %v454
    %v456 = vmul.f32 1.0, %v455
    %458 = vrot.lane.b32.xlu0 %v449, 64
    %v459 = vpop.permute.xlu0 %458
    %v461 = vmul.f32 %v456, %v459
    %463 = vrot.lane.b32.xlu0 %v461, 64
    %v464 = vpop.permute.xlu0 %463
    %v466 = vadd.f32 %v367, %v464
    %v467 = vtanh.pop %v466
    %v468 = vsub.f32 1.0, %v456
    %470 = vrot.lane.b32.xlu0 %v467, 96
    %v471 = vpop.permute.xlu0 %470
    %v473 = vmul.f32 %v468, %v471
    %v474 = vmul.f32 %v456, %v347
    %v475 = vadd.f32 %v473, %v474
    %477 = vrot.lane.b32.xlu0 %v475, 96
    %v478 = vpop.permute.xlu0 %477
    %480 = vst.msk [vmem:[#allocation2 + $0x2] sm:$0x3] %vm352, %v478
    %481 = vst.msk [vmem:[#allocation2 + $0xa] sm:$0xc] %vm354, %v475
    %v482 = vrot.slane %v205, 4
    %484 = vrot.lane.b32.xlu0 %v211, 32
    %v485 = vpop.permute.xlu0 %484
    %486 = vrot.lane.b32.xlu0 %v213, 32
    %v487 = vpop.permute.xlu0 %486
    %v488 = vsel %vm223, %v485, %v487
    %v490 = vsel %vm226, %v482, %v488
    %v491 = vsel %vm223, %v478, 0
    %493 = vmatprep.subr.mxu0 0.0
    %494 = vmatpush1.msra.mxu0 0.0
    %495 = vmatprep.subr.mxu0 0.0
    %496 = vmatpush1.msra.mxu0 0.0
    %497 = vmatprep.subr.mxu0 0.0
    %498 = vmatpush1.msra.mxu0 0.0
    %499 = vmatprep.subr.mxu0 0.0
    %500 = vmatpush1.msra.mxu0 0.0
    %501 = vmatprep.subr.mxu0 0.0
    %502 = vmatpush1.msra.mxu0 0.0
    %503 = vmatprep.subr.mxu0 0.0
    %504 = vmatpush1.msra.mxu0 0.0
    %505 = vmatprep.subr.mxu0 0.0
    %506 = vmatpush1.msra.mxu0 0.0
    %507 = vmatprep.subr.mxu0 0.0
    %508 = vmatpush1.msra.mxu0 0.0
    %509 = vmatprep.subr.mxu0 0.0
    %510 = vmatpush1.msra.mxu0 0.0
    %511 = vmatprep.subr.mxu0 0.0
    %512 = vmatpush1.msra.mxu0 0.0
    %513 = vmatprep.subr.mxu0 0.0
    %514 = vmatpush1.msra.mxu0 0.0
    %515 = vmatprep.subr.mxu0 0.0
    %516 = vmatpush1.msra.mxu0 0.0
    %517 = vmatprep.subr.mxu0 %v117
    %518 = vmatpush1.msra.mxu0 %v116
    %519 = vmatprep.subr.mxu0 %v115
    %520 = vmatpush1.msra.mxu0 %v114
    %521 = vmatprep.subr.mxu0 %v113
    %522 = vmatpush1.msra.mxu0 %v112
    %523 = vmatprep.subr.mxu0 %v111
    %524 = vmatpush1.msra.mxu0 %v110
    %525 = vmatprep.subr.mxu0 0.0
    %526 = vmatpush2.msra.mxu0 0.0
    %527 = vmatprep.subr.mxu0 0.0
    %528 = vmatpush2.msra.mxu0 0.0
    %529 = vmatprep.subr.mxu0 0.0
    %530 = vmatpush2.msra.mxu0 0.0
    %531 = vmatprep.subr.mxu0 0.0
    %532 = vmatpush2.msra.mxu0 0.0
    %533 = vmatprep.subr.mxu0 0.0
    %534 = vmatpush2.msra.mxu0 0.0
    %535 = vmatprep.subr.mxu0 0.0
    %536 = vmatpush2.msra.mxu0 0.0
    %537 = vmatprep.subr.mxu0 0.0
    %538 = vmatpush2.msra.mxu0 0.0
    %539 = vmatprep.subr.mxu0 0.0
    %540 = vmatpush2.msra.mxu0 0.0
    %541 = vmatprep.subr.mxu0 0.0
    %542 = vmatpush2.msra.mxu0 0.0
    %543 = vmatprep.subr.mxu0 0.0
    %544 = vmatpush2.msra.mxu0 0.0
    %545 = vmatprep.subr.mxu0 0.0
    %546 = vmatpush2.msra.mxu0 0.0
    %547 = vmatprep.subr.mxu0 0.0
    %548 = vmatpush2.msra.mxu0 0.0
    %549 = vmatprep.subr.mxu0 0.0
    %550 = vmatpush2.msra.mxu0 0.0
    %551 = vmatprep.subr.mxu0 0.0
    %552 = vmatpush2.msra.mxu0 0.0
    %553 = vmatprep.subr.mxu0 0.0
    %554 = vmatpush2.msra.mxu0 0.0
    %555 = vmatprep.subr.mxu0 0.0
    %556 = vmatpush2.msra.mxu0 0.0
    %557 = vmatprep.mubr.f32.mxu0 0.0
    %558 = vmatmul.mubr.f32.gmra.mxu0 %v491
    %v559 = vpop.f32.mrf.mxu0
    %v560 = vadd.f32 %v232, %v559
    %v561 = vpop.f32.mrf.mxu0
    %v562 = vadd.f32 %v236, %v561
    %563 = vdwg.mxu0
    %566 = vrot.lane.b32.xlu0 %v560, 32
    %v567 = vpop.permute.xlu0 %566
    %568 = vrot.lane.b32.xlu0 %v562, 32
    %v569 = vpop.permute.xlu0 %568
    %v570 = vsel %vm223, %v567, %v569
    %v572 = vsel %vm226, %v560, %v570
    %v573 = vadd.f32 %v490, %v572
    %v574 = vxor.u32 %v573, 2147483648
    %v575 = vmul.f32 %v574, 1.442695
    %v576 = vpow.pop %v575
    %v577 = vadd.f32 %v576, 1.0
    %v578 = vrcp.pop %v577
    %v579 = vmul.f32 1.0, %v578
    %581 = vrot.lane.b32.xlu0 %v572, 64
    %v582 = vpop.permute.xlu0 %581
    %v584 = vmul.f32 %v579, %v582
    %586 = vrot.lane.b32.xlu0 %v584, 64
    %v587 = vpop.permute.xlu0 %586
    %v589 = vadd.f32 %v490, %v587
    %v590 = vtanh.pop %v589
    %v591 = vsub.f32 1.0, %v579
    %593 = vrot.lane.b32.xlu0 %v590, 96
    %v594 = vpop.permute.xlu0 %593
    %v596 = vmul.f32 %v591, %v594
    %v597 = vmul.f32 %v579, %v475
    %v598 = vadd.f32 %v596, %v597
    %600 = vrot.lane.b32.xlu0 %v598, 96
    %v601 = vpop.permute.xlu0 %600
    %603 = vst.msk [vmem:[#allocation2 + $0x4] sm:$0x3] %vm352, %v601
    %604 = vst.msk [vmem:[#allocation2 + $0x8] sm:$0xc] %vm354, %v598
    %v605 = vrot.slane %v205, 6
    %v607 = vrot.slane %v211, 6
    %v608 = vrot.slane %v213, 6
    %609 = vrot.lane.b32.xlu0 %v607, 32
    %v610 = vpop.permute.xlu0 %609
    %611 = vrot.lane.b32.xlu0 %v608, 32
    %v612 = vpop.permute.xlu0 %611
    %v613 = vsel %vm223, %v610, %v612
    %v615 = vsel %vm226, %v605, %v613
    %v616 = vsel %vm223, %v601, 0
    %618 = vmatprep.subr.mxu0 0.0
    %619 = vmatpush1.msra.mxu0 0.0
    %620 = vmatprep.subr.mxu0 0.0
    %621 = vmatpush1.msra.mxu0 0.0
    %622 = vmatprep.subr.mxu0 0.0
    %623 = vmatpush1.msra.mxu0 0.0
    %624 = vmatprep.subr.mxu0 0.0
    %625 = vmatpush1.msra.mxu0 0.0
    %626 = vmatprep.subr.mxu0 0.0
    %627 = vmatpush1.msra.mxu0 0.0
    %628 = vmatprep.subr.mxu0 0.0
    %629 = vmatpush1.msra.mxu0 0.0
    %630 = vmatprep.subr.mxu0 0.0
    %631 = vmatpush1.msra.mxu0 0.0
    %632 = vmatprep.subr.mxu0 0.0
    %633 = vmatpush1.msra.mxu0 0.0
    %634 = vmatprep.subr.mxu0 0.0
    %635 = vmatpush1.msra.mxu0 0.0
    %636 = vmatprep.subr.mxu0 0.0
    %637 = vmatpush1.msra.mxu0 0.0
    %638 = vmatprep.subr.mxu0 0.0
    %639 = vmatpush1.msra.mxu0 0.0
    %640 = vmatprep.subr.mxu0 0.0
    %641 = vmatpush1.msra.mxu0 0.0
    %642 = vmatprep.subr.mxu0 %v117
    %643 = vmatpush1.msra.mxu0 %v116
    %644 = vmatprep.subr.mxu0 %v115
    %645 = vmatpush1.msra.mxu0 %v114
    %646 = vmatprep.subr.mxu0 %v113
    %647 = vmatpush1.msra.mxu0 %v112
    %648 = vmatprep.subr.mxu0 %v111
    %649 = vmatpush1.msra.mxu0 %v110
    %650 = vmatprep.subr.mxu0 0.0
    %651 = vmatpush2.msra.mxu0 0.0
    %652 = vmatprep.subr.mxu0 0.0
    %653 = vmatpush2.msra.mxu0 0.0
    %654 = vmatprep.subr.mxu0 0.0
    %655 = vmatpush2.msra.mxu0 0.0
    %656 = vmatprep.subr.mxu0 0.0
    %657 = vmatpush2.msra.mxu0 0.0
    %658 = vmatprep.subr.mxu0 0.0
    %659 = vmatpush2.msra.mxu0 0.0
    %660 = vmatprep.subr.mxu0 0.0
    %661 = vmatpush2.msra.mxu0 0.0
    %662 = vmatprep.subr.mxu0 0.0
    %663 = vmatpush2.msra.mxu0 0.0
    %664 = vmatprep.subr.mxu0 0.0
    %665 = vmatpush2.msra.mxu0 0.0
    %666 = vmatprep.subr.mxu0 0.0
    %667 = vmatpush2.msra.mxu0 0.0
    %668 = vmatprep.subr.mxu0 0.0
    %669 = vmatpush2.msra.mxu0 0.0
    %670 = vmatprep.subr.mxu0 0.0
    %671 = vmatpush2.msra.mxu0 0.0
    %672 = vmatprep.subr.mxu0 0.0
    %673 = vmatpush2.msra.mxu0 0.0
    %674 = vmatprep.subr.mxu0 0.0
    %675 = vmatpush2.msra.mxu0 0.0
    %676 = vmatprep.subr.mxu0 0.0
    %677 = vmatpush2.msra.mxu0 0.0
    %678 = vmatprep.subr.mxu0 0.0
    %679 = vmatpush2.msra.mxu0 0.0
    %680 = vmatprep.subr.mxu0 0.0
    %681 = vmatpush2.msra.mxu0 0.0
    %682 = vmatprep.mubr.f32.mxu0 0.0
    %683 = vmatmul.mubr.f32.gmra.mxu0 %v616
    %v684 = vpop.f32.mrf.mxu0
    %v685 = vadd.f32 %v232, %v684
    %v686 = vpop.f32.mrf.mxu0
    %v687 = vadd.f32 %v236, %v686
    %688 = vdwg.mxu0
    %691 = vrot.lane.b32.xlu0 %v685, 32
    %v692 = vpop.permute.xlu0 %691
    %693 = vrot.lane.b32.xlu0 %v687, 32
    %v694 = vpop.permute.xlu0 %693
    %v695 = vsel %vm223, %v692, %v694
    %v697 = vsel %vm226, %v685, %v695
    %v698 = vadd.f32 %v615, %v697
    %v699 = vxor.u32 %v698, 2147483648
    %v700 = vmul.f32 %v699, 1.442695
    %v701 = vpow.pop %v700
    %v702 = vadd.f32 %v701, 1.0
    %v703 = vrcp.pop %v702
    %v704 = vmul.f32 1.0, %v703
    %706 = vrot.lane.b32.xlu0 %v697, 64
    %v707 = vpop.permute.xlu0 %706
    %v709 = vmul.f32 %v704, %v707
    %711 = vrot.lane.b32.xlu0 %v709, 64
    %v712 = vpop.permute.xlu0 %711
    %v714 = vadd.f32 %v615, %v712
    %v715 = vtanh.pop %v714
    %v716 = vsub.f32 1.0, %v704
    %718 = vrot.lane.b32.xlu0 %v715, 96
    %v719 = vpop.permute.xlu0 %718
    %v721 = vmul.f32 %v716, %v719
    %v722 = vmul.f32 %v704, %v598
    %v723 = vadd.f32 %v721, %v722
    %725 = vrot.lane.b32.xlu0 %v723, 96
    %v726 = vpop.permute.xlu0 %725
    %728 = vst.msk [vmem:[#allocation2 + $0x6] sm:$0x3] %vm352, %v726
    %729 = vst.msk [vmem:[#allocation2 + $0x6] sm:$0xc] %vm354, %v723
    %v731 = vrot.slane %v207, 4
    %732 = vrot.lane.b32.xlu0 %v482, 32
    %v733 = vpop.permute.xlu0 %732
    %734 = vrot.lane.b32.xlu0 %v731, 32
    %v735 = vpop.permute.xlu0 %734
    %v736 = vsel %vm223, %v733, %v735
    %v738 = vsel %vm226, %v211, %v736
    %v739 = vsel %vm223, %v726, 0
    %741 = vmatprep.subr.mxu0 0.0
    %742 = vmatpush1.msra.mxu0 0.0
    %743 = vmatprep.subr.mxu0 0.0
    %744 = vmatpush1.msra.mxu0 0.0
    %745 = vmatprep.subr.mxu0 0.0
    %746 = vmatpush1.msra.mxu0 0.0
    %747 = vmatprep.subr.mxu0 0.0
    %748 = vmatpush1.msra.mxu0 0.0
    %749 = vmatprep.subr.mxu0 0.0
    %750 = vmatpush1.msra.mxu0 0.0
    %751 = vmatprep.subr.mxu0 0.0
    %752 = vmatpush1.msra.mxu0 0.0
    %753 = vmatprep.subr.mxu0 0.0
    %754 = vmatpush1.msra.mxu0 0.0
    %755 = vmatprep.subr.mxu0 0.0
    %756 = vmatpush1.msra.mxu0 0.0
    %757 = vmatprep.subr.mxu0 0.0
    %758 = vmatpush1.msra.mxu0 0.0
    %759 = vmatprep.subr.mxu0 0.0
    %760 = vmatpush1.msra.mxu0 0.0
    %761 = vmatprep.subr.mxu0 0.0
    %762 = vmatpush1.msra.mxu0 0.0
    %763 = vmatprep.subr.mxu0 0.0
    %764 = vmatpush1.msra.mxu0 0.0
    %765 = vmatprep.subr.mxu0 %v117
    %766 = vmatpush1.msra.mxu0 %v116
    %767 = vmatprep.subr.mxu0 %v115
    %768 = vmatpush1.msra.mxu0 %v114
    %769 = vmatprep.subr.mxu0 %v113
    %770 = vmatpush1.msra.mxu0 %v112
    %771 = vmatprep.subr.mxu0 %v111
    %772 = vmatpush1.msra.mxu0 %v110
    %773 = vmatprep.subr.mxu0 0.0
    %774 = vmatpush2.msra.mxu0 0.0
    %775 = vmatprep.subr.mxu0 0.0
    %776 = vmatpush2.msra.mxu0 0.0
    %777 = vmatprep.subr.mxu0 0.0
    %778 = vmatpush2.msra.mxu0 0.0
    %779 = vmatprep.subr.mxu0 0.0
    %780 = vmatpush2.msra.mxu0 0.0
    %781 = vmatprep.subr.mxu0 0.0
    %782 = vmatpush2.msra.mxu0 0.0
    %783 = vmatprep.subr.mxu0 0.0
    %784 = vmatpush2.msra.mxu0 0.0
    %785 = vmatprep.subr.mxu0 0.0
    %786 = vmatpush2.msra.mxu0 0.0
    %787 = vmatprep.subr.mxu0 0.0
    %788 = vmatpush2.msra.mxu0 0.0
    %789 = vmatprep.subr.mxu0 0.0
    %790 = vmatpush2.msra.mxu0 0.0
    %791 = vmatprep.subr.mxu0 0.0
    %792 = vmatpush2.msra.mxu0 0.0
    %793 = vmatprep.subr.mxu0 0.0
    %794 = vmatpush2.msra.mxu0 0.0
    %795 = vmatprep.subr.mxu0 0.0
    %796 = vmatpush2.msra.mxu0 0.0
    %797 = vmatprep.subr.mxu0 0.0
    %798 = vmatpush2.msra.mxu0 0.0
    %799 = vmatprep.subr.mxu0 0.0
    %800 = vmatpush2.msra.mxu0 0.0
    %801 = vmatprep.subr.mxu0 0.0
    %802 = vmatpush2.msra.mxu0 0.0
    %803 = vmatprep.subr.mxu0 0.0
    %804 = vmatpush2.msra.mxu0 0.0
    %805 = vmatprep.mubr.f32.mxu0 0.0
    %806 = vmatmul.mubr.f32.gmra.mxu0 %v739
    %v807 = vpop.f32.mrf.mxu0
    %v808 = vadd.f32 %v232, %v807
    %v809 = vpop.f32.mrf.mxu0
    %v810 = vadd.f32 %v236, %v809
    %811 = vdwg.mxu0
    %814 = vrot.lane.b32.xlu0 %v808, 32
    %v815 = vpop.permute.xlu0 %814
    %816 = vrot.lane.b32.xlu0 %v810, 32
    %v817 = vpop.permute.xlu0 %816
    %v818 = vsel %vm223, %v815, %v817
    %v820 = vsel %vm226, %v808, %v818
    %v821 = vadd.f32 %v738, %v820
    %v822 = vxor.u32 %v821, 2147483648
    %v823 = vmul.f32 %v822, 1.442695
    %v824 = vpow.pop %v823
    %v825 = vadd.f32 %v824, 1.0
    %v826 = vrcp.pop %v825
    %v827 = vmul.f32 1.0, %v826
    %829 = vrot.lane.b32.xlu0 %v820, 64
    %v830 = vpop.permute.xlu0 %829
    %v832 = vmul.f32 %v827, %v830
    %834 = vrot.lane.b32.xlu0 %v832, 64
    %v835 = vpop.permute.xlu0 %834
    %v837 = vadd.f32 %v738, %v835
    %v838 = vtanh.pop %v837
    %v839 = vsub.f32 1.0, %v827
    %841 = vrot.lane.b32.xlu0 %v838, 96
    %v842 = vpop.permute.xlu0 %841
    %v844 = vmul.f32 %v839, %v842
    %v845 = vmul.f32 %v827, %v723
    %v846 = vadd.f32 %v844, %v845
    %848 = vrot.lane.b32.xlu0 %v846, 96
    %v849 = vpop.permute.xlu0 %848
    %851 = vst.msk [vmem:[#allocation2 + $0x8] sm:$0x3] %vm352, %v849
    %852 = vst.msk [vmem:[#allocation2 + $0x4] sm:$0xc] %vm354, %v846
    %v854 = vrot.slane %v207, 2
    %855 = vrot.lane.b32.xlu0 %v357, 32
    %v856 = vpop.permute.xlu0 %855
    %857 = vrot.lane.b32.xlu0 %v854, 32
    %v858 = vpop.permute.xlu0 %857
    %v859 = vsel %vm223, %v856, %v858
    %v861 = vsel %vm226, %v359, %v859
    %v862 = vsel %vm223, %v849, 0
    %864 = vmatprep.subr.mxu0 0.0
    %865 = vmatpush1.msra.mxu0 0.0
    %866 = vmatprep.subr.mxu0 0.0
    %867 = vmatpush1.msra.mxu0 0.0
    %868 = vmatprep.subr.mxu0 0.0
    %869 = vmatpush1.msra.mxu0 0.0
    %870 = vmatprep.subr.mxu0 0.0
    %871 = vmatpush1.msra.mxu0 0.0
    %872 = vmatprep.subr.mxu0 0.0
    %873 = vmatpush1.msra.mxu0 0.0
    %874 = vmatprep.subr.mxu0 0.0
    %875 = vmatpush1.msra.mxu0 0.0
    %876 = vmatprep.subr.mxu0 0.0
    %877 = vmatpush1.msra.mxu0 0.0
    %878 = vmatprep.subr.mxu0 0.0
    %879 = vmatpush1.msra.mxu0 0.0
    %880 = vmatprep.subr.mxu0 0.0
    %881 = vmatpush1.msra.mxu0 0.0
    %882 = vmatprep.subr.mxu0 0.0
    %883 = vmatpush1.msra.mxu0 0.0
    %884 = vmatprep.subr.mxu0 0.0
    %885 = vmatpush1.msra.mxu0 0.0
    %886 = vmatprep.subr.mxu0 0.0
    %887 = vmatpush1.msra.mxu0 0.0
    %888 = vmatprep.subr.mxu0 %v117
    %889 = vmatpush1.msra.mxu0 %v116
    %890 = vmatprep.subr.mxu0 %v115
    %891 = vmatpush1.msra.mxu0 %v114
    %892 = vmatprep.subr.mxu0 %v113
    %893 = vmatpush1.msra.mxu0 %v112
    %894 = vmatprep.subr.mxu0 %v111
    %895 = vmatpush1.msra.mxu0 %v110
    %896 = vmatprep.subr.mxu0 0.0
    %897 = vmatpush2.msra.mxu0 0.0
    %898 = vmatprep.subr.mxu0 0.0
    %899 = vmatpush2.msra.mxu0 0.0
    %900 = vmatprep.subr.mxu0 0.0
    %901 = vmatpush2.msra.mxu0 0.0
    %902 = vmatprep.subr.mxu0 0.0
    %903 = vmatpush2.msra.mxu0 0.0
    %904 = vmatprep.subr.mxu0 0.0
    %905 = vmatpush2.msra.mxu0 0.0
    %906 = vmatprep.subr.mxu0 0.0
    %907 = vmatpush2.msra.mxu0 0.0
    %908 = vmatprep.subr.mxu0 0.0
    %909 = vmatpush2.msra.mxu0 0.0
    %910 = vmatprep.subr.mxu0 0.0
    %911 = vmatpush2.msra.mxu0 0.0
    %912 = vmatprep.subr.mxu0 0.0
    %913 = vmatpush2.msra.mxu0 0.0
    %914 = vmatprep.subr.mxu0 0.0
    %915 = vmatpush2.msra.mxu0 0.0
    %916 = vmatprep.subr.mxu0 0.0
    %917 = vmatpush2.msra.mxu0 0.0
    %918 = vmatprep.subr.mxu0 0.0
    %919 = vmatpush2.msra.mxu0 0.0
    %920 = vmatprep.subr.mxu0 0.0
    %921 = vmatpush2.msra.mxu0 0.0
    %922 = vmatprep.subr.mxu0 0.0
    %923 = vmatpush2.msra.mxu0 0.0
    %924 = vmatprep.subr.mxu0 0.0
    %925 = vmatpush2.msra.mxu0 0.0
    %926 = vmatprep.subr.mxu0 0.0
    %927 = vmatpush2.msra.mxu0 0.0
    %928 = vmatprep.mubr.f32.mxu0 0.0
    %929 = vmatmul.mubr.f32.gmra.mxu0 %v862
    %v930 = vpop.f32.mrf.mxu0
    %v931 = vadd.f32 %v232, %v930
    %v932 = vpop.f32.mrf.mxu0
    %v933 = vadd.f32 %v236, %v932
    %934 = vdwg.mxu0
    %937 = vrot.lane.b32.xlu0 %v931, 32
    %v938 = vpop.permute.xlu0 %937
    %939 = vrot.lane.b32.xlu0 %v933, 32
    %v940 = vpop.permute.xlu0 %939
    %v941 = vsel %vm223, %v938, %v940
    %v943 = vsel %vm226, %v931, %v941
    %v944 = vadd.f32 %v861, %v943
    %v945 = vxor.u32 %v944, 2147483648
    %v946 = vmul.f32 %v945, 1.442695
    %v947 = vpow.pop %v946
    %v948 = vadd.f32 %v947, 1.0
    %v949 = vrcp.pop %v948
    %v950 = vmul.f32 1.0, %v949
    %952 = vrot.lane.b32.xlu0 %v943, 64
    %v953 = vpop.permute.xlu0 %952
    %v955 = vmul.f32 %v950, %v953
    %957 = vrot.lane.b32.xlu0 %v955, 64
    %v958 = vpop.permute.xlu0 %957
    %v960 = vadd.f32 %v861, %v958
    %v961 = vtanh.pop %v960
    %v962 = vsub.f32 1.0, %v950
    %964 = vrot.lane.b32.xlu0 %v961, 96
    %v965 = vpop.permute.xlu0 %964
    %v967 = vmul.f32 %v962, %v965
    %v968 = vmul.f32 %v950, %v846
    %v969 = vadd.f32 %v967, %v968
    %971 = vrot.lane.b32.xlu0 %v969, 96
    %v972 = vpop.permute.xlu0 %971
    %974 = vst.msk [vmem:[#allocation2 + $0xa] sm:$0x3] %vm352, %v972
    %975 = vst.msk [vmem:[#allocation2 + $0x2] sm:$0xc] %vm354, %v969
    %977 = vrot.lane.b32.xlu0 %v205, 32
    %v978 = vpop.permute.xlu0 %977
    %979 = vrot.lane.b32.xlu0 %v207, 32
    %v980 = vpop.permute.xlu0 %979
    %v981 = vsel %vm223, %v978, %v980
    %v983 = vsel %vm226, %v217, %v981
    %v984 = vsel %vm223, %v972, 0
    %986 = vmatprep.subr.mxu0 0.0
    %987 = vmatpush1.msra.mxu0 0.0
    %988 = vmatprep.subr.mxu0 0.0
    %989 = vmatpush1.msra.mxu0 0.0
    %990 = vmatprep.subr.mxu0 0.0
    %991 = vmatpush1.msra.mxu0 0.0
    %992 = vmatprep.subr.mxu0 0.0
    %993 = vmatpush1.msra.mxu0 0.0
    %994 = vmatprep.subr.mxu0 0.0
    %995 = vmatpush1.msra.mxu0 0.0
    %996 = vmatprep.subr.mxu0 0.0
    %997 = vmatpush1.msra.mxu0 0.0
    %998 = vmatprep.subr.mxu0 0.0
    %999 = vmatpush1.msra.mxu0 0.0
    %1000 = vmatprep.subr.mxu0 0.0
    %1001 = vmatpush1.msra.mxu0 0.0
    %1002 = vmatprep.subr.mxu0 0.0
    %1003 = vmatpush1.msra.mxu0 0.0
    %1004 = vmatprep.subr.mxu0 0.0
    %1005 = vmatpush1.msra.mxu0 0.0
    %1006 = vmatprep.subr.mxu0 0.0
    %1007 = vmatpush1.msra.mxu0 0.0
    %1008 = vmatprep.subr.mxu0 0.0
    %1009 = vmatpush1.msra.mxu0 0.0
    %1010 = vmatprep.subr.mxu0 %v117
    %1011 = vmatpush1.msra.mxu0 %v116
    %1012 = vmatprep.subr.mxu0 %v115
    %1013 = vmatpush1.msra.mxu0 %v114
    %1014 = vmatprep.subr.mxu0 %v113
    %1015 = vmatpush1.msra.mxu0 %v112
    %1016 = vmatprep.subr.mxu0 %v111
    %1017 = vmatpush1.msra.mxu0 %v110
    %1018 = vmatprep.subr.mxu0 0.0
    %1019 = vmatpush2.msra.mxu0 0.0
    %1020 = vmatprep.subr.mxu0 0.0
    %1021 = vmatpush2.msra.mxu0 0.0
    %1022 = vmatprep.subr.mxu0 0.0
    %1023 = vmatpush2.msra.mxu0 0.0
    %1024 = vmatprep.subr.mxu0 0.0
    %1025 = vmatpush2.msra.mxu0 0.0
    %1026 = vmatprep.subr.mxu0 0.0
    %1027 = vmatpush2.msra.mxu0 0.0
    %1028 = vmatprep.subr.mxu0 0.0
    %1029 = vmatpush2.msra.mxu0 0.0
    %1030 = vmatprep.subr.mxu0 0.0
    %1031 = vmatpush2.msra.mxu0 0.0
    %1032 = vmatprep.subr.mxu0 0.0
    %1033 = vmatpush2.msra.mxu0 0.0
    %1034 = vmatprep.subr.mxu0 0.0
    %1035 = vmatpush2.msra.mxu0 0.0
    %1036 = vmatprep.subr.mxu0 0.0
    %1037 = vmatpush2.msra.mxu0 0.0
    %1038 = vmatprep.subr.mxu0 0.0
    %1039 = vmatpush2.msra.mxu0 0.0
    %1040 = vmatprep.subr.mxu0 0.0
    %1041 = vmatpush2.msra.mxu0 0.0
    %1042 = vmatprep.subr.mxu0 0.0
    %1043 = vmatpush2.msra.mxu0 0.0
    %1044 = vmatprep.subr.mxu0 0.0
    %1045 = vmatpush2.msra.mxu0 0.0
    %1046 = vmatprep.subr.mxu0 0.0
    %1047 = vmatpush2.msra.mxu0 0.0
    %1048 = vmatprep.subr.mxu0 0.0
    %1049 = vmatpush2.msra.mxu0 0.0
    %1050 = vmatprep.mubr.f32.mxu0 0.0
    %1051 = vmatmul.mubr.f32.gmra.mxu0 %v984
    %v1052 = vpop.f32.mrf.mxu0
    %v1053 = vadd.f32 %v232, %v1052
    %v1054 = vpop.f32.mrf.mxu0
    %v1055 = vadd.f32 %v236, %v1054
    %1056 = vdwg.mxu0
    %1059 = vrot.lane.b32.xlu0 %v1053, 32
    %v1060 = vpop.permute.xlu0 %1059
    %1061 = vrot.lane.b32.xlu0 %v1055, 32
    %v1062 = vpop.permute.xlu0 %1061
    %v1063 = vsel %vm223, %v1060, %v1062
    %v1065 = vsel %vm226, %v1053, %v1063
    %v1066 = vadd.f32 %v983, %v1065
    %v1067 = vxor.u32 %v1066, 2147483648
    %v1068 = vmul.f32 %v1067, 1.442695
    %v1069 = vpow.pop %v1068
    %v1070 = vadd.f32 %v1069, 1.0
    %v1071 = vrcp.pop %v1070
    %v1072 = vmul.f32 1.0, %v1071
    %1074 = vrot.lane.b32.xlu0 %v1065, 64
    %v1075 = vpop.permute.xlu0 %1074
    %v1077 = vmul.f32 %v1072, %v1075
    %1079 = vrot.lane.b32.xlu0 %v1077, 64
    %v1080 = vpop.permute.xlu0 %1079
    %v1082 = vadd.f32 %v983, %v1080
    %v1083 = vtanh.pop %v1082
    %v1084 = vsub.f32 1.0, %v1072
    %1086 = vrot.lane.b32.xlu0 %v1083, 96
    %v1087 = vpop.permute.xlu0 %1086
    %v1089 = vmul.f32 %v1084, %v1087
    %v1090 = vmul.f32 %v1072, %v969
    %v1091 = vadd.f32 %v1089, %v1090
    %1093 = vrot.lane.b32.xlu0 %v1091, 96
    %v1094 = vpop.permute.xlu0 %1093
    %1096 = vst.msk [vmem:[#allocation2 + $0xc] sm:$0x3] %vm352, %v1094
    %1097 = vst.msk [vmem:[#allocation2] sm:$0xc] %vm354, %v1091
    %v1099 = vrot.slane %v207, 6
    %1100 = vrot.lane.b32.xlu0 %v605, 32
    %v1101 = vpop.permute.xlu0 %1100
    %1102 = vrot.lane.b32.xlu0 %v1099, 32
    %v1103 = vpop.permute.xlu0 %1102
    %v1104 = vsel %vm223, %v1101, %v1103
    %v1106 = vsel %vm226, %v607, %v1104
    %v1107 = vsel %vm223, %v1094, 0
    %1109 = vmatprep.subr.mxu0 0.0
    %1110 = vmatpush1.msra.mxu0 0.0
    %1111 = vmatprep.subr.mxu0 0.0
    %1112 = vmatpush1.msra.mxu0 0.0
    %1113 = vmatprep.subr.mxu0 0.0
    %1114 = vmatpush1.msra.mxu0 0.0
    %1115 = vmatprep.subr.mxu0 0.0
    %1116 = vmatpush1.msra.mxu0 0.0
    %1117 = vmatprep.subr.mxu0 0.0
    %1118 = vmatpush1.msra.mxu0 0.0
    %1119 = vmatprep.subr.mxu0 0.0
    %1120 = vmatpush1.msra.mxu0 0.0
    %1121 = vmatprep.subr.mxu0 0.0
    %1122 = vmatpush1.msra.mxu0 0.0
    %1123 = vmatprep.subr.mxu0 0.0
    %1124 = vmatpush1.msra.mxu0 0.0
    %1125 = vmatprep.subr.mxu0 0.0
    %1126 = vmatpush1.msra.mxu0 0.0
    %1127 = vmatprep.subr.mxu0 0.0
    %1128 = vmatpush1.msra.mxu0 0.0
    %1129 = vmatprep.subr.mxu0 0.0
    %1130 = vmatpush1.msra.mxu0 0.0
    %1131 = vmatprep.subr.mxu0 0.0
    %1132 = vmatpush1.msra.mxu0 0.0
    %1133 = vmatprep.subr.mxu0 %v117
    %1134 = vmatpush1.msra.mxu0 %v116
    %1135 = vmatprep.subr.mxu0 %v115
    %1136 = vmatpush1.msra.mxu0 %v114
    %1137 = vmatprep.subr.mxu0 %v113
    %1138 = vmatpush1.msra.mxu0 %v112
    %1139 = vmatprep.subr.mxu0 %v111
    %1140 = vmatpush1.msra.mxu0 %v110
    %1141 = vmatprep.subr.mxu0 0.0
    %1142 = vmatpush2.msra.mxu0 0.0
    %1143 = vmatprep.subr.mxu0 0.0
    %1144 = vmatpush2.msra.mxu0 0.0
    %1145 = vmatprep.subr.mxu0 0.0
    %1146 = vmatpush2.msra.mxu0 0.0
    %1147 = vmatprep.subr.mxu0 0.0
    %1148 = vmatpush2.msra.mxu0 0.0
    %1149 = vmatprep.subr.mxu0 0.0
    %1150 = vmatpush2.msra.mxu0 0.0
    %1151 = vmatprep.subr.mxu0 0.0
    %1152 = vmatpush2.msra.mxu0 0.0
    %1153 = vmatprep.subr.mxu0 0.0
    %1154 = vmatpush2.msra.mxu0 0.0
    %1155 = vmatprep.subr.mxu0 0.0
    %1156 = vmatpush2.msra.mxu0 0.0
    %1157 = vmatprep.subr.mxu0 0.0
    %1158 = vmatpush2.msra.mxu0 0.0
    %1159 = vmatprep.subr.mxu0 0.0
    %1160 = vmatpush2.msra.mxu0 0.0
    %1161 = vmatprep.subr.mxu0 0.0
    %1162 = vmatpush2.msra.mxu0 0.0
    %1163 = vmatprep.subr.mxu0 0.0
    %1164 = vmatpush2.msra.mxu0 0.0
    %1165 = vmatprep.subr.mxu0 0.0
    %1166 = vmatpush2.msra.mxu0 0.0
    %1167 = vmatprep.subr.mxu0 0.0
    %1168 = vmatpush2.msra.mxu0 0.0
    %1169 = vmatprep.subr.mxu0 0.0
    %1170 = vmatpush2.msra.mxu0 0.0
    %1171 = vmatprep.subr.mxu0 0.0
    %1172 = vmatpush2.msra.mxu0 0.0
    %1173 = vmatprep.mubr.f32.mxu0 0.0
    %1174 = vmatmul.mubr.f32.gmra.mxu0 %v1107
    %v1175 = vpop.f32.mrf.mxu0
    %v1176 = vadd.f32 %v232, %v1175
    %v1177 = vpop.f32.mrf.mxu0
    %v1178 = vadd.f32 %v236, %v1177
    %1179 = vdwg.mxu0
    %1182 = vrot.lane.b32.xlu0 %v1176, 32
    %v1183 = vpop.permute.xlu0 %1182
    %1184 = vrot.lane.b32.xlu0 %v1178, 32
    %v1185 = vpop.permute.xlu0 %1184
    %v1186 = vsel %vm223, %v1183, %v1185
    %v1188 = vsel %vm226, %v1176, %v1186
    %v1189 = vadd.f32 %v1106, %v1188
    %v1190 = vxor.u32 %v1189, 2147483648
    %v1191 = vmul.f32 %v1190, 1.442695
    %v1192 = vpow.pop %v1191
    %v1193 = vadd.f32 %v1192, 1.0
    %v1194 = vrcp.pop %v1193
    %v1195 = vmul.f32 1.0, %v1194
    %1197 = vrot.lane.b32.xlu0 %v1188, 64
    %v1198 = vpop.permute.xlu0 %1197
    %v1200 = vmul.f32 %v1195, %v1198
    %1202 = vrot.lane.b32.xlu0 %v1200, 64
    %v1203 = vpop.permute.xlu0 %1202
    %v1205 = vadd.f32 %v1106, %v1203
    %v1206 = vtanh.pop %v1205
    %v1207 = vsub.f32 1.0, %v1195
    %1209 = vrot.lane.b32.xlu0 %v1206, 96
    %v1210 = vpop.permute.xlu0 %1209
    %v1212 = vmul.f32 %v1207, %v1210
    %v1213 = vmul.f32 %v1195, %v1091
    %v1214 = vadd.f32 %v1212, %v1213
    %1216 = vrot.lane.b32.xlu0 %v1214, 96
    %v1217 = vpop.permute.xlu0 %1216
    %1219 = vst.msk [vmem:[#allocation2 + $0xe] sm:$0x3] %vm352, %v1217
    %1220 = vst.msk [vmem:[#allocation2 - $0x2] sm:$0xc] %vm354, %v1214
    %v1221 = vld [vmem:[#allocation2] sm:$0xff]
    %v1222 = vld [vmem:[#allocation2 + $0x8] sm:$0xff]
    %v1223 = vld [vmem:[#allocation9] sm:$0xff]
    %v1224 = vld [vmem:[#allocation9 + $0x8] sm:$0xff]
    %v1225 = vld [vmem:[#allocation9 + $0x10] sm:$0xff]
    %v1226 = vld [vmem:[#allocation9 + $0x18] sm:$0xff]
    %v1227 = vld [vmem:[#allocation9 + $0x20] sm:$0xff]
    %v1228 = vld [vmem:[#allocation9 + $0x28] sm:$0xff]
    %v1229 = vld [vmem:[#allocation9 + $0x30] sm:$0xff]
    %v1230 = vld [vmem:[#allocation9 + $0x38] sm:$0xff]
    %v1231 = vld [vmem:[#allocation9 + $0x40] sm:$0xff]
    %v1232 = vld [vmem:[#allocation9 + $0x48] sm:$0xff]
    %v1233 = vld [vmem:[#allocation9 + $0x50] sm:$0xff]
    %v1234 = vld [vmem:[#allocation9 + $0x58] sm:$0xff]
    %v1235 = vld [vmem:[#allocation9 + $0x60] sm:$0xff]
    %v1236 = vld [vmem:[#allocation9 + $0x68] sm:$0xff]
    %v1237 = vld [vmem:[#allocation9 + $0x70] sm:$0xff]
    %v1238 = vld [vmem:[#allocation9 + $0x78] sm:$0xff]
    %v1239 = vld [vmem:[#allocation11] sm:$0xff]
    %v1240 = vld [vmem:[#allocation11 + $0x8] sm:$0xff]
    %v1241 = vld [vmem:[#allocation11 + $0x10] sm:$0xff]
    %v1242 = vld [vmem:[#allocation11 + $0x18] sm:$0xff]
    %v1243 = vld [vmem:[#allocation11 + $0x20] sm:$0xff]
    %v1244 = vld [vmem:[#allocation11 + $0x28] sm:$0xff]
    %v1245 = vld [vmem:[#allocation11 + $0x30] sm:$0xff]
    %v1246 = vld [vmem:[#allocation11 + $0x38] sm:$0xff]
    %v1247 = vld [vmem:[%s7] sm:$0x3]
    %v1248 = vld [vmem:[%s8] sm:$0x3]
    %v1250 = vlaneseq
    %v1251 = vshrl.u32 %v1250, 7
    %v1252 = vsub.s32 0, %v1251
    %v1253 = vrot.slane %v1247, %v1252
    %v1254 = vlaneseq
    %v1255 = vshrl.u32 %v1254, 7
    %v1256 = vsub.s32 1, %v1255
    %v1257 = vrot.slane %v1247, %v1256
    %vm1260 = vcmask 523264
    %v1262 = vsel %vm1260, %v1221, 0
    %v1265 = vsel %vm1260, %v1222, 0
    %1267 = vmatprep.subr.mxu0 0.0
    %1268 = vmatpush1.msra.mxu0 0.0
    %1269 = vmatprep.subr.mxu0 0.0
    %1270 = vmatpush1.msra.mxu0 0.0
    %1271 = vmatprep.subr.mxu0 0.0
    %1272 = vmatpush1.msra.mxu0 0.0
    %1273 = vmatprep.subr.mxu0 0.0
    %1274 = vmatpush1.msra.mxu0 0.0
    %1275 = vmatprep.subr.mxu0 0.0
    %1276 = vmatpush1.msra.mxu0 0.0
    %1277 = vmatprep.subr.mxu0 0.0
    %1278 = vmatpush1.msra.mxu0 0.0
    %1279 = vmatprep.subr.mxu0 0.0
    %1280 = vmatpush1.msra.mxu0 0.0
    %1281 = vmatprep.subr.mxu0 0.0
    %1282 = vmatpush1.msra.mxu0 0.0
    %1283 = vmatprep.subr.mxu0 %v1238
    %1284 = vmatpush1.msra.mxu0 %v1237
    %1285 = vmatprep.subr.mxu0 %v1236
    %1286 = vmatpush1.msra.mxu0 %v1235
    %1287 = vmatprep.subr.mxu0 %v1234
    %1288 = vmatpush1.msra.mxu0 %v1233
    %1289 = vmatprep.subr.mxu0 %v1232
    %1290 = vmatpush1.msra.mxu0 %v1231
    %1291 = vmatprep.subr.mxu0 %v1230
    %1292 = vmatpush1.msra.mxu0 %v1229
    %1293 = vmatprep.subr.mxu0 %v1228
    %1294 = vmatpush1.msra.mxu0 %v1227
    %1295 = vmatprep.subr.mxu0 %v1226
    %1296 = vmatpush1.msra.mxu0 %v1225
    %1297 = vmatprep.subr.mxu0 %v1224
    %1298 = vmatpush1.msra.mxu0 %v1223
    %1299 = vmatprep.subr.mxu0 0.0
    %1300 = vmatpush2.msra.mxu0 0.0
    %1301 = vmatprep.subr.mxu0 0.0
    %1302 = vmatpush2.msra.mxu0 0.0
    %1303 = vmatprep.subr.mxu0 0.0
    %1304 = vmatpush2.msra.mxu0 0.0
    %1305 = vmatprep.subr.mxu0 0.0
    %1306 = vmatpush2.msra.mxu0 0.0
    %1307 = vmatprep.subr.mxu0 0.0
    %1308 = vmatpush2.msra.mxu0 0.0
    %1309 = vmatprep.subr.mxu0 0.0
    %1310 = vmatpush2.msra.mxu0 0.0
    %1311 = vmatprep.subr.mxu0 0.0
    %1312 = vmatpush2.msra.mxu0 0.0
    %1313 = vmatprep.subr.mxu0 0.0
    %1314 = vmatpush2.msra.mxu0 0.0
    %1315 = vmatprep.subr.mxu0 0.0
    %1316 = vmatpush2.msra.mxu0 0.0
    %1317 = vmatprep.subr.mxu0 0.0
    %1318 = vmatpush2.msra.mxu0 0.0
    %1319 = vmatprep.subr.mxu0 0.0
    %1320 = vmatpush2.msra.mxu0 0.0
    %1321 = vmatprep.subr.mxu0 0.0
    %1322 = vmatpush2.msra.mxu0 0.0
    %1323 = vmatprep.subr.mxu0 0.0
    %1324 = vmatpush2.msra.mxu0 0.0
    %1325 = vmatprep.subr.mxu0 0.0
    %1326 = vmatpush2.msra.mxu0 0.0
    %1327 = vmatprep.subr.mxu0 0.0
    %1328 = vmatpush2.msra.mxu0 0.0
    %1329 = vmatprep.subr.mxu0 0.0
    %1330 = vmatpush2.msra.mxu0 0.0
    %1331 = vmatprep.mubr.f32.mxu0 0.0
    %1332 = vmatmul.mubr.f32.gmra.mxu0 %v1262
    %v1333 = vpop.f32.mrf.mxu0
    %v1334 = vadd.f32 %v1253, %v1333
    %v1335 = vpop.f32.mrf.mxu0
    %v1336 = vadd.f32 %v1257, %v1335
    %1337 = vmatprep.mubr.f32.mxu0 0.0
    %1338 = vmatmul.mubr.f32.gmra.mxu0 %v1265
    %v1339 = vpop.f32.mrf.mxu0
    %v1340 = vadd.f32 %v1253, %v1339
    %v1341 = vpop.f32.mrf.mxu0
    %v1342 = vadd.f32 %v1257, %v1341
    %1343 = vdwg.mxu0
    %v1346 = vrot.slane %v1340, 4
    %v1347 = vrot.slane %v1342, 4
    %1348 = vrot.lane.b32.xlu0 %v1346, 32
    %v1349 = vpop.permute.xlu0 %1348
    %1350 = vrot.lane.b32.xlu0 %v1347, 32
    %v1351 = vpop.permute.xlu0 %1350
    %v1352 = vsel %vm223, %v1349, %v1351
    %v1354 = vsel %vm226, %v1334, %v1352
    %v1356 = vlaneseq
    %v1357 = vshrl.u32 %v1356, 7
    %v1358 = vsub.s32 0, %v1357
    %v1359 = vrot.slane %v1248, %v1358
    %v1360 = vlaneseq
    %v1361 = vshrl.u32 %v1360, 7
    %v1362 = vsub.s32 1, %v1361
    %v1363 = vrot.slane %v1248, %v1362
    %1366 = vmatprep.subr.mxu0 0.0
    %1367 = vmatpush1.msra.mxu0 0.0
    %1368 = vmatprep.subr.mxu0 0.0
    %1369 = vmatpush1.msra.mxu0 0.0
    %1370 = vmatprep.subr.mxu0 0.0
    %1371 = vmatpush1.msra.mxu0 0.0
    %1372 = vmatprep.subr.mxu0 0.0
    %1373 = vmatpush1.msra.mxu0 0.0
    %1374 = vmatprep.subr.mxu0 0.0
    %1375 = vmatpush1.msra.mxu0 0.0
    %1376 = vmatprep.subr.mxu0 0.0
    %1377 = vmatpush1.msra.mxu0 0.0
    %1378 = vmatprep.subr.mxu0 0.0
    %1379 = vmatpush1.msra.mxu0 0.0
    %1380 = vmatprep.subr.mxu0 0.0
    %1381 = vmatpush1.msra.mxu0 0.0
    %1382 = vmatprep.subr.mxu0 0.0
    %1383 = vmatpush1.msra.mxu0 0.0
    %1384 = vmatprep.subr.mxu0 0.0
    %1385 = vmatpush1.msra.mxu0 0.0
    %1386 = vmatprep.subr.mxu0 0.0
    %1387 = vmatpush1.msra.mxu0 0.0
    %1388 = vmatprep.subr.mxu0 0.0
    %1389 = vmatpush1.msra.mxu0 0.0
    %1390 = vmatprep.subr.mxu0 %v1246
    %1391 = vmatpush1.msra.mxu0 %v1245
    %1392 = vmatprep.subr.mxu0 %v1244
    %1393 = vmatpush1.msra.mxu0 %v1243
    %1394 = vmatprep.subr.mxu0 %v1242
    %1395 = vmatpush1.msra.mxu0 %v1241
    %1396 = vmatprep.subr.mxu0 %v1240
    %1397 = vmatpush1.msra.mxu0 %v1239
    %1398 = vmatprep.subr.mxu0 0.0
    %1399 = vmatpush2.msra.mxu0 0.0
    %1400 = vmatprep.subr.mxu0 0.0
    %1401 = vmatpush2.msra.mxu0 0.0
    %1402 = vmatprep.subr.mxu0 0.0
    %1403 = vmatpush2.msra.mxu0 0.0
    %1404 = vmatprep.subr.mxu0 0.0
    %1405 = vmatpush2.msra.mxu0 0.0
    %1406 = vmatprep.subr.mxu0 0.0
    %1407 = vmatpush2.msra.mxu0 0.0
    %1408 = vmatprep.subr.mxu0 0.0
    %1409 = vmatpush2.msra.mxu0 0.0
    %1410 = vmatprep.subr.mxu0 0.0
    %1411 = vmatpush2.msra.mxu0 0.0
    %1412 = vmatprep.subr.mxu0 0.0
    %1413 = vmatpush2.msra.mxu0 0.0
    %1414 = vmatprep.subr.mxu0 0.0
    %1415 = vmatpush2.msra.mxu0 0.0
    %1416 = vmatprep.subr.mxu0 0.0
    %1417 = vmatpush2.msra.mxu0 0.0
    %1418 = vmatprep.subr.mxu0 0.0
    %1419 = vmatpush2.msra.mxu0 0.0
    %1420 = vmatprep.subr.mxu0 0.0
    %1421 = vmatpush2.msra.mxu0 0.0
    %1422 = vmatprep.subr.mxu0 0.0
    %1423 = vmatpush2.msra.mxu0 0.0
    %1424 = vmatprep.subr.mxu0 0.0
    %1425 = vmatpush2.msra.mxu0 0.0
    %1426 = vmatprep.subr.mxu0 0.0
    %1427 = vmatpush2.msra.mxu0 0.0
    %1428 = vmatprep.subr.mxu0 0.0
    %1429 = vmatpush2.msra.mxu0 0.0
    %1430 = vmatprep.mubr.f32.mxu0 0.0
    %1431 = vmatmul.mubr.f32.gmra.mxu0 %v240
    %v1432 = vpop.f32.mrf.mxu0
    %v1433 = vadd.f32 %v1359, %v1432
    %v1434 = vpop.f32.mrf.mxu0
    %v1435 = vadd.f32 %v1363, %v1434
    %1436 = vdwg.mxu0
    %1439 = vrot.lane.b32.xlu0 %v1433, 32
    %v1440 = vpop.permute.xlu0 %1439
    %1441 = vrot.lane.b32.xlu0 %v1435, 32
    %v1442 = vpop.permute.xlu0 %1441
    %v1443 = vsel %vm223, %v1440, %v1442
    %v1445 = vsel %vm226, %v1433, %v1443
    %v1446 = vadd.f32 %v1354, %v1445
    %v1447 = vxor.u32 %v1446, 2147483648
    %v1448 = vmul.f32 %v1447, 1.442695
    %v1449 = vpow.pop %v1448
    %v1450 = vadd.f32 %v1449, 1.0
    %v1451 = vrcp.pop %v1450
    %v1452 = vmul.f32 1.0, %v1451
    %1454 = vrot.lane.b32.xlu0 %v1445, 64
    %v1455 = vpop.permute.xlu0 %1454
    %v1457 = vmul.f32 %v1452, %v1455
    %1459 = vrot.lane.b32.xlu0 %v1457, 64
    %v1460 = vpop.permute.xlu0 %1459
    %v1462 = vadd.f32 %v1354, %v1460
    %v1463 = vtanh.pop %v1462
    %v1464 = vsub.f32 1.0, %v1452
    %1466 = vrot.lane.b32.xlu0 %v1463, 96
    %v1467 = vpop.permute.xlu0 %1466
    %v1469 = vmul.f32 %v1464, %v1467
    %v1470 = vmul.f32 %v1452, 0.001
    %v1471 = vadd.f32 %v1469, %v1470
    %1473 = vrot.lane.b32.xlu0 %v1471, 96
    %v1474 = vpop.permute.xlu0 %1473
    %1476 = vst.msk [vmem:[#allocation12] sm:$0x3] %vm352, %v1474
    %1477 = vst.msk [vmem:[#allocation12 + $0xc] sm:$0xc] %vm354, %v1471
    %v1479 = vrot.slane %v1334, 2
    %v1481 = vrot.slane %v1340, 2
    %v1482 = vrot.slane %v1342, 2
    %1483 = vrot.lane.b32.xlu0 %v1481, 32
    %v1484 = vpop.permute.xlu0 %1483
    %1485 = vrot.lane.b32.xlu0 %v1482, 32
    %v1486 = vpop.permute.xlu0 %1485
    %v1487 = vsel %vm223, %v1484, %v1486
    %v1489 = vsel %vm226, %v1479, %v1487
    %v1490 = vsel %vm223, %v1474, 0
    %1492 = vmatprep.subr.mxu0 0.0
    %1493 = vmatpush1.msra.mxu0 0.0
    %1494 = vmatprep.subr.mxu0 0.0
    %1495 = vmatpush1.msra.mxu0 0.0
    %1496 = vmatprep.subr.mxu0 0.0
    %1497 = vmatpush1.msra.mxu0 0.0
    %1498 = vmatprep.subr.mxu0 0.0
    %1499 = vmatpush1.msra.mxu0 0.0
    %1500 = vmatprep.subr.mxu0 0.0
    %1501 = vmatpush1.msra.mxu0 0.0
    %1502 = vmatprep.subr.mxu0 0.0
    %1503 = vmatpush1.msra.mxu0 0.0
    %1504 = vmatprep.subr.mxu0 0.0
    %1505 = vmatpush1.msra.mxu0 0.0
    %1506 = vmatprep.subr.mxu0 0.0
    %1507 = vmatpush1.msra.mxu0 0.0
    %1508 = vmatprep.subr.mxu0 0.0
    %1509 = vmatpush1.msra.mxu0 0.0
    %1510 = vmatprep.subr.mxu0 0.0
    %1511 = vmatpush1.msra.mxu0 0.0
    %1512 = vmatprep.subr.mxu0 0.0
    %1513 = vmatpush1.msra.mxu0 0.0
    %1514 = vmatprep.subr.mxu0 0.0
    %1515 = vmatpush1.msra.mxu0 0.0
    %1516 = vmatprep.subr.mxu0 %v1246
    %1517 = vmatpush1.msra.mxu0 %v1245
    %1518 = vmatprep.subr.mxu0 %v1244
    %1519 = vmatpush1.msra.mxu0 %v1243
    %1520 = vmatprep.subr.mxu0 %v1242
    %1521 = vmatpush1.msra.mxu0 %v1241
    %1522 = vmatprep.subr.mxu0 %v1240
    %1523 = vmatpush1.msra.mxu0 %v1239
    %1524 = vmatprep.subr.mxu0 0.0
    %1525 = vmatpush2.msra.mxu0 0.0
    %1526 = vmatprep.subr.mxu0 0.0
    %1527 = vmatpush2.msra.mxu0 0.0
    %1528 = vmatprep.subr.mxu0 0.0
    %1529 = vmatpush2.msra.mxu0 0.0
    %1530 = vmatprep.subr.mxu0 0.0
    %1531 = vmatpush2.msra.mxu0 0.0
    %1532 = vmatprep.subr.mxu0 0.0
    %1533 = vmatpush2.msra.mxu0 0.0
    %1534 = vmatprep.subr.mxu0 0.0
    %1535 = vmatpush2.msra.mxu0 0.0
    %1536 = vmatprep.subr.mxu0 0.0
    %1537 = vmatpush2.msra.mxu0 0.0
    %1538 = vmatprep.subr.mxu0 0.0
    %1539 = vmatpush2.msra.mxu0 0.0
    %1540 = vmatprep.subr.mxu0 0.0
    %1541 = vmatpush2.msra.mxu0 0.0
    %1542 = vmatprep.subr.mxu0 0.0
    %1543 = vmatpush2.msra.mxu0 0.0
    %1544 = vmatprep.subr.mxu0 0.0
    %1545 = vmatpush2.msra.mxu0 0.0
    %1546 = vmatprep.subr.mxu0 0.0
    %1547 = vmatpush2.msra.mxu0 0.0
    %1548 = vmatprep.subr.mxu0 0.0
    %1549 = vmatpush2.msra.mxu0 0.0
    %1550 = vmatprep.subr.mxu0 0.0
    %1551 = vmatpush2.msra.mxu0 0.0
    %1552 = vmatprep.subr.mxu0 0.0
    %1553 = vmatpush2.msra.mxu0 0.0
    %1554 = vmatprep.subr.mxu0 0.0
    %1555 = vmatpush2.msra.mxu0 0.0
    %1556 = vmatprep.mubr.f32.mxu0 0.0
    %1557 = vmatmul.mubr.f32.gmra.mxu0 %v1490
    %v1558 = vpop.f32.mrf.mxu0
    %v1559 = vadd.f32 %v1359, %v1558
    %v1560 = vpop.f32.mrf.mxu0
    %v1561 = vadd.f32 %v1363, %v1560
    %1562 = vdwg.mxu0
    %1565 = vrot.lane.b32.xlu0 %v1559, 32
    %v1566 = vpop.permute.xlu0 %1565
    %1567 = vrot.lane.b32.xlu0 %v1561, 32
    %v1568 = vpop.permute.xlu0 %1567
    %v1569 = vsel %vm223, %v1566, %v1568
    %v1571 = vsel %vm226, %v1559, %v1569
    %v1572 = vadd.f32 %v1489, %v1571
    %v1573 = vxor.u32 %v1572, 2147483648
    %v1574 = vmul.f32 %v1573, 1.442695
    %v1575 = vpow.pop %v1574
    %v1576 = vadd.f32 %v1575, 1.0
    %v1577 = vrcp.pop %v1576
    %v1578 = vmul.f32 1.0, %v1577
    %1580 = vrot.lane.b32.xlu0 %v1571, 64
    %v1581 = vpop.permute.xlu0 %1580
    %v1583 = vmul.f32 %v1578, %v1581
    %1585 = vrot.lane.b32.xlu0 %v1583, 64
    %v1586 = vpop.permute.xlu0 %1585
    %v1588 = vadd.f32 %v1489, %v1586
    %v1589 = vtanh.pop %v1588
    %v1590 = vsub.f32 1.0, %v1578
    %1592 = vrot.lane.b32.xlu0 %v1589, 96
    %v1593 = vpop.permute.xlu0 %1592
    %v1595 = vmul.f32 %v1590, %v1593
    %v1596 = vmul.f32 %v1578, %v1471
    %v1597 = vadd.f32 %v1595, %v1596
    %1599 = vrot.lane.b32.xlu0 %v1597, 96
    %v1600 = vpop.permute.xlu0 %1599
    %1602 = vst.msk [vmem:[#allocation12 + $0x2] sm:$0x3] %vm352, %v1600
    %1603 = vst.msk [vmem:[#allocation12 + $0xa] sm:$0xc] %vm354, %v1597
    %v1604 = vrot.slane %v1334, 4
    %1606 = vrot.lane.b32.xlu0 %v1340, 32
    %v1607 = vpop.permute.xlu0 %1606
    %1608 = vrot.lane.b32.xlu0 %v1342, 32
    %v1609 = vpop.permute.xlu0 %1608
    %v1610 = vsel %vm223, %v1607, %v1609
    %v1612 = vsel %vm226, %v1604, %v1610
    %v1613 = vsel %vm223, %v1600, 0
    %1615 = vmatprep.subr.mxu0 0.0
    %1616 = vmatpush1.msra.mxu0 0.0
    %1617 = vmatprep.subr.mxu0 0.0
    %1618 = vmatpush1.msra.mxu0 0.0
    %1619 = vmatprep.subr.mxu0 0.0
    %1620 = vmatpush1.msra.mxu0 0.0
    %1621 = vmatprep.subr.mxu0 0.0
    %1622 = vmatpush1.msra.mxu0 0.0
    %1623 = vmatprep.subr.mxu0 0.0
    %1624 = vmatpush1.msra.mxu0 0.0
    %1625 = vmatprep.subr.mxu0 0.0
    %1626 = vmatpush1.msra.mxu0 0.0
    %1627 = vmatprep.subr.mxu0 0.0
    %1628 = vmatpush1.msra.mxu0 0.0
    %1629 = vmatprep.subr.mxu0 0.0
    %1630 = vmatpush1.msra.mxu0 0.0
    %1631 = vmatprep.subr.mxu0 0.0
    %1632 = vmatpush1.msra.mxu0 0.0
    %1633 = vmatprep.subr.mxu0 0.0
    %1634 = vmatpush1.msra.mxu0 0.0
    %1635 = vmatprep.subr.mxu0 0.0
    %1636 = vmatpush1.msra.mxu0 0.0
    %1637 = vmatprep.subr.mxu0 0.0
    %1638 = vmatpush1.msra.mxu0 0.0
    %1639 = vmatprep.subr.mxu0 %v1246
    %1640 = vmatpush1.msra.mxu0 %v1245
    %1641 = vmatprep.subr.mxu0 %v1244
    %1642 = vmatpush1.msra.mxu0 %v1243
    %1643 = vmatprep.subr.mxu0 %v1242
    %1644 = vmatpush1.msra.mxu0 %v1241
    %1645 = vmatprep.subr.mxu0 %v1240
    %1646 = vmatpush1.msra.mxu0 %v1239
    %1647 = vmatprep.subr.mxu0 0.0
    %1648 = vmatpush2.msra.mxu0 0.0
    %1649 = vmatprep.subr.mxu0 0.0
    %1650 = vmatpush2.msra.mxu0 0.0
    %1651 = vmatprep.subr.mxu0 0.0
    %1652 = vmatpush2.msra.mxu0 0.0
    %1653 = vmatprep.subr.mxu0 0.0
    %1654 = vmatpush2.msra.mxu0 0.0
    %1655 = vmatprep.subr.mxu0 0.0
    %1656 = vmatpush2.msra.mxu0 0.0
    %1657 = vmatprep.subr.mxu0 0.0
    %1658 = vmatpush2.msra.mxu0 0.0
    %1659 = vmatprep.subr.mxu0 0.0
    %1660 = vmatpush2.msra.mxu0 0.0
    %1661 = vmatprep.subr.mxu0 0.0
    %1662 = vmatpush2.msra.mxu0 0.0
    %1663 = vmatprep.subr.mxu0 0.0
    %1664 = vmatpush2.msra.mxu0 0.0
    %1665 = vmatprep.subr.mxu0 0.0
    %1666 = vmatpush2.msra.mxu0 0.0
    %1667 = vmatprep.subr.mxu0 0.0
    %1668 = vmatpush2.msra.mxu0 0.0
    %1669 = vmatprep.subr.mxu0 0.0
    %1670 = vmatpush2.msra.mxu0 0.0
    %1671 = vmatprep.subr.mxu0 0.0
    %1672 = vmatpush2.msra.mxu0 0.0
    %1673 = vmatprep.subr.mxu0 0.0
    %1674 = vmatpush2.msra.mxu0 0.0
    %1675 = vmatprep.subr.mxu0 0.0
    %1676 = vmatpush2.msra.mxu0 0.0
    %1677 = vmatprep.subr.mxu0 0.0
    %1678 = vmatpush2.msra.mxu0 0.0
    %1679 = vmatprep.mubr.f32.mxu0 0.0
    %1680 = vmatmul.mubr.f32.gmra.mxu0 %v1613
    %v1681 = vpop.f32.mrf.mxu0
    %v1682 = vadd.f32 %v1359, %v1681
    %v1683 = vpop.f32.mrf.mxu0
    %v1684 = vadd.f32 %v1363, %v1683
    %1685 = vdwg.mxu0
    %1688 = vrot.lane.b32.xlu0 %v1682, 32
    %v1689 = vpop.permute.xlu0 %1688
    %1690 = vrot.lane.b32.xlu0 %v1684, 32
    %v1691 = vpop.permute.xlu0 %1690
    %v1692 = vsel %vm223, %v1689, %v1691
    %v1694 = vsel %vm226, %v1682, %v1692
    %v1695 = vadd.f32 %v1612, %v1694
    %v1696 = vxor.u32 %v1695, 2147483648
    %v1697 = vmul.f32 %v1696, 1.442695
    %v1698 = vpow.pop %v1697
    %v1699 = vadd.f32 %v1698, 1.0
    %v1700 = vrcp.pop %v1699
    %v1701 = vmul.f32 1.0, %v1700
    %1703 = vrot.lane.b32.xlu0 %v1694, 64
    %v1704 = vpop.permute.xlu0 %1703
    %v1706 = vmul.f32 %v1701, %v1704
    %1708 = vrot.lane.b32.xlu0 %v1706, 64
    %v1709 = vpop.permute.xlu0 %1708
    %v1711 = vadd.f32 %v1612, %v1709
    %v1712 = vtanh.pop %v1711
    %v1713 = vsub.f32 1.0, %v1701
    %1715 = vrot.lane.b32.xlu0 %v1712, 96
    %v1716 = vpop.permute.xlu0 %1715
    %v1718 = vmul.f32 %v1713, %v1716
    %v1719 = vmul.f32 %v1701, %v1597
    %v1720 = vadd.f32 %v1718, %v1719
    %1722 = vrot.lane.b32.xlu0 %v1720, 96
    %v1723 = vpop.permute.xlu0 %1722
    %1725 = vst.msk [vmem:[#allocation12 + $0x4] sm:$0x3] %vm352, %v1723
    %1726 = vst.msk [vmem:[#allocation12 + $0x8] sm:$0xc] %vm354, %v1720
    %v1727 = vrot.slane %v1334, 6
    %v1729 = vrot.slane %v1340, 6
    %v1730 = vrot.slane %v1342, 6
    %1731 = vrot.lane.b32.xlu0 %v1729, 32
    %v1732 = vpop.permute.xlu0 %1731
    %1733 = vrot.lane.b32.xlu0 %v1730, 32
    %v1734 = vpop.permute.xlu0 %1733
    %v1735 = vsel %vm223, %v1732, %v1734
    %v1737 = vsel %vm226, %v1727, %v1735
    %v1738 = vsel %vm223, %v1723, 0
    %1740 = vmatprep.subr.mxu0 0.0
    %1741 = vmatpush1.msra.mxu0 0.0
    %1742 = vmatprep.subr.mxu0 0.0
    %1743 = vmatpush1.msra.mxu0 0.0
    %1744 = vmatprep.subr.mxu0 0.0
    %1745 = vmatpush1.msra.mxu0 0.0
    %1746 = vmatprep.subr.mxu0 0.0
    %1747 = vmatpush1.msra.mxu0 0.0
    %1748 = vmatprep.subr.mxu0 0.0
    %1749 = vmatpush1.msra.mxu0 0.0
    %1750 = vmatprep.subr.mxu0 0.0
    %1751 = vmatpush1.msra.mxu0 0.0
    %1752 = vmatprep.subr.mxu0 0.0
    %1753 = vmatpush1.msra.mxu0 0.0
    %1754 = vmatprep.subr.mxu0 0.0
    %1755 = vmatpush1.msra.mxu0 0.0
    %1756 = vmatprep.subr.mxu0 0.0
    %1757 = vmatpush1.msra.mxu0 0.0
    %1758 = vmatprep.subr.mxu0 0.0
    %1759 = vmatpush1.msra.mxu0 0.0
    %1760 = vmatprep.subr.mxu0 0.0
    %1761 = vmatpush1.msra.mxu0 0.0
    %1762 = vmatprep.subr.mxu0 0.0
    %1763 = vmatpush1.msra.mxu0 0.0
    %1764 = vmatprep.subr.mxu0 %v1246
    %1765 = vmatpush1.msra.mxu0 %v1245
    %1766 = vmatprep.subr.mxu0 %v1244
    %1767 = vmatpush1.msra.mxu0 %v1243
    %1768 = vmatprep.subr.mxu0 %v1242
    %1769 = vmatpush1.msra.mxu0 %v1241
    %1770 = vmatprep.subr.mxu0 %v1240
    %1771 = vmatpush1.msra.mxu0 %v1239
    %1772 = vmatprep.subr.mxu0 0.0
    %1773 = vmatpush2.msra.mxu0 0.0
    %1774 = vmatprep.subr.mxu0 0.0
    %1775 = vmatpush2.msra.mxu0 0.0
    %1776 = vmatprep.subr.mxu0 0.0
    %1777 = vmatpush2.msra.mxu0 0.0
    %1778 = vmatprep.subr.mxu0 0.0
    %1779 = vmatpush2.msra.mxu0 0.0
    %1780 = vmatprep.subr.mxu0 0.0
    %1781 = vmatpush2.msra.mxu0 0.0
    %1782 = vmatprep.subr.mxu0 0.0
    %1783 = vmatpush2.msra.mxu0 0.0
    %1784 = vmatprep.subr.mxu0 0.0
    %1785 = vmatpush2.msra.mxu0 0.0
    %1786 = vmatprep.subr.mxu0 0.0
    %1787 = vmatpush2.msra.mxu0 0.0
    %1788 = vmatprep.subr.mxu0 0.0
    %1789 = vmatpush2.msra.mxu0 0.0
    %1790 = vmatprep.subr.mxu0 0.0
    %1791 = vmatpush2.msra.mxu0 0.0
    %1792 = vmatprep.subr.mxu0 0.0
    %1793 = vmatpush2.msra.mxu0 0.0
    %1794 = vmatprep.subr.mxu0 0.0
    %1795 = vmatpush2.msra.mxu0 0.0
    %1796 = vmatprep.subr.mxu0 0.0
    %1797 = vmatpush2.msra.mxu0 0.0
    %1798 = vmatprep.subr.mxu0 0.0
    %1799 = vmatpush2.msra.mxu0 0.0
    %1800 = vmatprep.subr.mxu0 0.0
    %1801 = vmatpush2.msra.mxu0 0.0
    %1802 = vmatprep.subr.mxu0 0.0
    %1803 = vmatpush2.msra.mxu0 0.0
    %1804 = vmatprep.mubr.f32.mxu0 0.0
    %1805 = vmatmul.mubr.f32.gmra.mxu0 %v1738
    %v1806 = vpop.f32.mrf.mxu0
    %v1807 = vadd.f32 %v1359, %v1806
    %v1808 = vpop.f32.mrf.mxu0
    %v1809 = vadd.f32 %v1363, %v1808
    %1810 = vdwg.mxu0
    %1813 = vrot.lane.b32.xlu0 %v1807, 32
    %v1814 = vpop.permute.xlu0 %1813
    %1815 = vrot.lane.b32.xlu0 %v1809, 32
    %v1816 = vpop.permute.xlu0 %1815
    %v1817 = vsel %vm223, %v1814, %v1816
    %v1819 = vsel %vm226, %v1807, %v1817
    %v1820 = vadd.f32 %v1737, %v1819
    %v1821 = vxor.u32 %v1820, 2147483648
    %v1822 = vmul.f32 %v1821, 1.442695
    %v1823 = vpow.pop %v1822
    %v1824 = vadd.f32 %v1823, 1.0
    %v1825 = vrcp.pop %v1824
    %v1826 = vmul.f32 1.0, %v1825
    %1828 = vrot.lane.b32.xlu0 %v1819, 64
    %v1829 = vpop.permute.xlu0 %1828
    %v1831 = vmul.f32 %v1826, %v1829
    %1833 = vrot.lane.b32.xlu0 %v1831, 64
    %v1834 = vpop.permute.xlu0 %1833
    %v1836 = vadd.f32 %v1737, %v1834
    %v1837 = vtanh.pop %v1836
    %v1838 = vsub.f32 1.0, %v1826
    %1840 = vrot.lane.b32.xlu0 %v1837, 96
    %v1841 = vpop.permute.xlu0 %1840
    %v1843 = vmul.f32 %v1838, %v1841
    %v1844 = vmul.f32 %v1826, %v1720
    %v1845 = vadd.f32 %v1843, %v1844
    %1847 = vrot.lane.b32.xlu0 %v1845, 96
    %v1848 = vpop.permute.xlu0 %1847
    %1850 = vst.msk [vmem:[#allocation12 + $0x6] sm:$0x3] %vm352, %v1848
    %1851 = vst.msk [vmem:[#allocation12 + $0x6] sm:$0xc] %vm354, %v1845
    %v1853 = vrot.slane %v1336, 4
    %1854 = vrot.lane.b32.xlu0 %v1604, 32
    %v1855 = vpop.permute.xlu0 %1854
    %1856 = vrot.lane.b32.xlu0 %v1853, 32
    %v1857 = vpop.permute.xlu0 %1856
    %v1858 = vsel %vm223, %v1855, %v1857
    %v1860 = vsel %vm226, %v1340, %v1858
    %v1861 = vsel %vm223, %v1848, 0
    %1863 = vmatprep.subr.mxu0 0.0
    %1864 = vmatpush1.msra.mxu0 0.0
    %1865 = vmatprep.subr.mxu0 0.0
    %1866 = vmatpush1.msra.mxu0 0.0
    %1867 = vmatprep.subr.mxu0 0.0
    %1868 = vmatpush1.msra.mxu0 0.0
    %1869 = vmatprep.subr.mxu0 0.0
    %1870 = vmatpush1.msra.mxu0 0.0
    %1871 = vmatprep.subr.mxu0 0.0
    %1872 = vmatpush1.msra.mxu0 0.0
    %1873 = vmatprep.subr.mxu0 0.0
    %1874 = vmatpush1.msra.mxu0 0.0
    %1875 = vmatprep.subr.mxu0 0.0
    %1876 = vmatpush1.msra.mxu0 0.0
    %1877 = vmatprep.subr.mxu0 0.0
    %1878 = vmatpush1.msra.mxu0 0.0
    %1879 = vmatprep.subr.mxu0 0.0
    %1880 = vmatpush1.msra.mxu0 0.0
    %1881 = vmatprep.subr.mxu0 0.0
    %1882 = vmatpush1.msra.mxu0 0.0
    %1883 = vmatprep.subr.mxu0 0.0
    %1884 = vmatpush1.msra.mxu0 0.0
    %1885 = vmatprep.subr.mxu0 0.0
    %1886 = vmatpush1.msra.mxu0 0.0
    %1887 = vmatprep.subr.mxu0 %v1246
    %1888 = vmatpush1.msra.mxu0 %v1245
    %1889 = vmatprep.subr.mxu0 %v1244
    %1890 = vmatpush1.msra.mxu0 %v1243
    %1891 = vmatprep.subr.mxu0 %v1242
    %1892 = vmatpush1.msra.mxu0 %v1241
    %1893 = vmatprep.subr.mxu0 %v1240
    %1894 = vmatpush1.msra.mxu0 %v1239
    %1895 = vmatprep.subr.mxu0 0.0
    %1896 = vmatpush2.msra.mxu0 0.0
    %1897 = vmatprep.subr.mxu0 0.0
    %1898 = vmatpush2.msra.mxu0 0.0
    %1899 = vmatprep.subr.mxu0 0.0
    %1900 = vmatpush2.msra.mxu0 0.0
    %1901 = vmatprep.subr.mxu0 0.0
    %1902 = vmatpush2.msra.mxu0 0.0
    %1903 = vmatprep.subr.mxu0 0.0
    %1904 = vmatpush2.msra.mxu0 0.0
    %1905 = vmatprep.subr.mxu0 0.0
    %1906 = vmatpush2.msra.mxu0 0.0
    %1907 = vmatprep.subr.mxu0 0.0
    %1908 = vmatpush2.msra.mxu0 0.0
    %1909 = vmatprep.subr.mxu0 0.0
    %1910 = vmatpush2.msra.mxu0 0.0
    %1911 = vmatprep.subr.mxu0 0.0
    %1912 = vmatpush2.msra.mxu0 0.0
    %1913 = vmatprep.subr.mxu0 0.0
    %1914 = vmatpush2.msra.mxu0 0.0
    %1915 = vmatprep.subr.mxu0 0.0
    %1916 = vmatpush2.msra.mxu0 0.0
    %1917 = vmatprep.subr.mxu0 0.0
    %1918 = vmatpush2.msra.mxu0 0.0
    %1919 = vmatprep.subr.mxu0 0.0
    %1920 = vmatpush2.msra.mxu0 0.0
    %1921 = vmatprep.subr.mxu0 0.0
    %1922 = vmatpush2.msra.mxu0 0.0
    %1923 = vmatprep.subr.mxu0 0.0
    %1924 = vmatpush2.msra.mxu0 0.0
    %1925 = vmatprep.subr.mxu0 0.0
    %1926 = vmatpush2.msra.mxu0 0.0
    %1927 = vmatprep.mubr.f32.mxu0 0.0
    %1928 = vmatmul.mubr.f32.gmra.mxu0 %v1861
    %v1929 = vpop.f32.mrf.mxu0
    %v1930 = vadd.f32 %v1359, %v1929
    %v1931 = vpop.f32.mrf.mxu0
    %v1932 = vadd.f32 %v1363, %v1931
    %1933 = vdwg.mxu0
    %1936 = vrot.lane.b32.xlu0 %v1930, 32
    %v1937 = vpop.permute.xlu0 %1936
    %1938 = vrot.lane.b32.xlu0 %v1932, 32
    %v1939 = vpop.permute.xlu0 %1938
    %v1940 = vsel %vm223, %v1937, %v1939
    %v1942 = vsel %vm226, %v1930, %v1940
    %v1943 = vadd.f32 %v1860, %v1942
    %v1944 = vxor.u32 %v1943, 2147483648
    %v1945 = vmul.f32 %v1944, 1.442695
    %v1946 = vpow.pop %v1945
    %v1947 = vadd.f32 %v1946, 1.0
    %v1948 = vrcp.pop %v1947
    %v1949 = vmul.f32 1.0, %v1948
    %1951 = vrot.lane.b32.xlu0 %v1942, 64
    %v1952 = vpop.permute.xlu0 %1951
    %v1954 = vmul.f32 %v1949, %v1952
    %1956 = vrot.lane.b32.xlu0 %v1954, 64
    %v1957 = vpop.permute.xlu0 %1956
    %v1959 = vadd.f32 %v1860, %v1957
    %v1960 = vtanh.pop %v1959
    %v1961 = vsub.f32 1.0, %v1949
    %1963 = vrot.lane.b32.xlu0 %v1960, 96
    %v1964 = vpop.permute.xlu0 %1963
    %v1966 = vmul.f32 %v1961, %v1964
    %v1967 = vmul.f32 %v1949, %v1845
    %v1968 = vadd.f32 %v1966, %v1967
    %1970 = vrot.lane.b32.xlu0 %v1968, 96
    %v1971 = vpop.permute.xlu0 %1970
    %1973 = vst.msk [vmem:[#allocation12 + $0x8] sm:$0x3] %vm352, %v1971
    %1974 = vst.msk [vmem:[#allocation12 + $0x4] sm:$0xc] %vm354, %v1968
    %v1976 = vrot.slane %v1336, 2
    %1977 = vrot.lane.b32.xlu0 %v1479, 32
    %v1978 = vpop.permute.xlu0 %1977
    %1979 = vrot.lane.b32.xlu0 %v1976, 32
    %v1980 = vpop.permute.xlu0 %1979
    %v1981 = vsel %vm223, %v1978, %v1980
    %v1983 = vsel %vm226, %v1481, %v1981
    %v1984 = vsel %vm223, %v1971, 0
    %1986 = vmatprep.subr.mxu0 0.0
    %1987 = vmatpush1.msra.mxu0 0.0
    %1988 = vmatprep.subr.mxu0 0.0
    %1989 = vmatpush1.msra.mxu0 0.0
    %1990 = vmatprep.subr.mxu0 0.0
    %1991 = vmatpush1.msra.mxu0 0.0
    %1992 = vmatprep.subr.mxu0 0.0
    %1993 = vmatpush1.msra.mxu0 0.0
    %1994 = vmatprep.subr.mxu0 0.0
    %1995 = vmatpush1.msra.mxu0 0.0
    %1996 = vmatprep.subr.mxu0 0.0
    %1997 = vmatpush1.msra.mxu0 0.0
    %1998 = vmatprep.subr.mxu0 0.0
    %1999 = vmatpush1.msra.mxu0 0.0
    %2000 = vmatprep.subr.mxu0 0.0
    %2001 = vmatpush1.msra.mxu0 0.0
    %2002 = vmatprep.subr.mxu0 0.0
    %2003 = vmatpush1.msra.mxu0 0.0
    %2004 = vmatprep.subr.mxu0 0.0
    %2005 = vmatpush1.msra.mxu0 0.0
    %2006 = vmatprep.subr.mxu0 0.0
    %2007 = vmatpush1.msra.mxu0 0.0
    %2008 = vmatprep.subr.mxu0 0.0
    %2009 = vmatpush1.msra.mxu0 0.0
    %2010 = vmatprep.subr.mxu0 %v1246
    %2011 = vmatpush1.msra.mxu0 %v1245
    %2012 = vmatprep.subr.mxu0 %v1244
    %2013 = vmatpush1.msra.mxu0 %v1243
    %2014 = vmatprep.subr.mxu0 %v1242
    %2015 = vmatpush1.msra.mxu0 %v1241
    %2016 = vmatprep.subr.mxu0 %v1240
    %2017 = vmatpush1.msra.mxu0 %v1239
    %2018 = vmatprep.subr.mxu0 0.0
    %2019 = vmatpush2.msra.mxu0 0.0
    %2020 = vmatprep.subr.mxu0 0.0
    %2021 = vmatpush2.msra.mxu0 0.0
    %2022 = vmatprep.subr.mxu0 0.0
    %2023 = vmatpush2.msra.mxu0 0.0
    %2024 = vmatprep.subr.mxu0 0.0
    %2025 = vmatpush2.msra.mxu0 0.0
    %2026 = vmatprep.subr.mxu0 0.0
    %2027 = vmatpush2.msra.mxu0 0.0
    %2028 = vmatprep.subr.mxu0 0.0
    %2029 = vmatpush2.msra.mxu0 0.0
    %2030 = vmatprep.subr.mxu0 0.0
    %2031 = vmatpush2.msra.mxu0 0.0
    %2032 = vmatprep.subr.mxu0 0.0
    %2033 = vmatpush2.msra.mxu0 0.0
    %2034 = vmatprep.subr.mxu0 0.0
    %2035 = vmatpush2.msra.mxu0 0.0
    %2036 = vmatprep.subr.mxu0 0.0
    %2037 = vmatpush2.msra.mxu0 0.0
    %2038 = vmatprep.subr.mxu0 0.0
    %2039 = vmatpush2.msra.mxu0 0.0
    %2040 = vmatprep.subr.mxu0 0.0
    %2041 = vmatpush2.msra.mxu0 0.0
    %2042 = vmatprep.subr.mxu0 0.0
    %2043 = vmatpush2.msra.mxu0 0.0
    %2044 = vmatprep.subr.mxu0 0.0
    %2045 = vmatpush2.msra.mxu0 0.0
    %2046 = vmatprep.subr.mxu0 0.0
    %2047 = vmatpush2.msra.mxu0 0.0
    %2048 = vmatprep.subr.mxu0 0.0
    %2049 = vmatpush2.msra.mxu0 0.0
    %2050 = vmatprep.mubr.f32.mxu0 0.0
    %2051 = vmatmul.mubr.f32.gmra.mxu0 %v1984
    %v2052 = vpop.f32.mrf.mxu0
    %v2053 = vadd.f32 %v1359, %v2052
    %v2054 = vpop.f32.mrf.mxu0
    %v2055 = vadd.f32 %v1363, %v2054
    %2056 = vdwg.mxu0
    %2059 = vrot.lane.b32.xlu0 %v2053, 32
    %v2060 = vpop.permute.xlu0 %2059
    %2061 = vrot.lane.b32.xlu0 %v2055, 32
    %v2062 = vpop.permute.xlu0 %2061
    %v2063 = vsel %vm223, %v2060, %v2062
    %v2065 = vsel %vm226, %v2053, %v2063
    %v2066 = vadd.f32 %v1983, %v2065
    %v2067 = vxor.u32 %v2066, 2147483648
    %v2068 = vmul.f32 %v2067, 1.442695
    %v2069 = vpow.pop %v2068
    %v2070 = vadd.f32 %v2069, 1.0
    %v2071 = vrcp.pop %v2070
    %v2072 = vmul.f32 1.0, %v2071
    %2074 = vrot.lane.b32.xlu0 %v2065, 64
    %v2075 = vpop.permute.xlu0 %2074
    %v2077 = vmul.f32 %v2072, %v2075
    %2079 = vrot.lane.b32.xlu0 %v2077, 64
    %v2080 = vpop.permute.xlu0 %2079
    %v2082 = vadd.f32 %v1983, %v2080
    %v2083 = vtanh.pop %v2082
    %v2084 = vsub.f32 1.0, %v2072
    %2086 = vrot.lane.b32.xlu0 %v2083, 96
    %v2087 = vpop.permute.xlu0 %2086
    %v2089 = vmul.f32 %v2084, %v2087
    %v2090 = vmul.f32 %v2072, %v1968
    %v2091 = vadd.f32 %v2089, %v2090
    %2093 = vrot.lane.b32.xlu0 %v2091, 96
    %v2094 = vpop.permute.xlu0 %2093
    %2096 = vst.msk [vmem:[#allocation12 + $0xa] sm:$0x3] %vm352, %v2094
    %2097 = vst.msk [vmem:[#allocation12 + $0x2] sm:$0xc] %vm354, %v2091
    %2099 = vrot.lane.b32.xlu0 %v1334, 32
    %v2100 = vpop.permute.xlu0 %2099
    %2101 = vrot.lane.b32.xlu0 %v1336, 32
    %v2102 = vpop.permute.xlu0 %2101
    %v2103 = vsel %vm223, %v2100, %v2102
    %v2105 = vsel %vm226, %v1346, %v2103
    %v2106 = vsel %vm223, %v2094, 0
    %2108 = vmatprep.subr.mxu0 0.0
    %2109 = vmatpush1.msra.mxu0 0.0
    %2110 = vmatprep.subr.mxu0 0.0
    %2111 = vmatpush1.msra.mxu0 0.0
    %2112 = vmatprep.subr.mxu0 0.0
    %2113 = vmatpush1.msra.mxu0 0.0
    %2114 = vmatprep.subr.mxu0 0.0
    %2115 = vmatpush1.msra.mxu0 0.0
    %2116 = vmatprep.subr.mxu0 0.0
    %2117 = vmatpush1.msra.mxu0 0.0
    %2118 = vmatprep.subr.mxu0 0.0
    %2119 = vmatpush1.msra.mxu0 0.0
    %2120 = vmatprep.subr.mxu0 0.0
    %2121 = vmatpush1.msra.mxu0 0.0
    %2122 = vmatprep.subr.mxu0 0.0
    %2123 = vmatpush1.msra.mxu0 0.0
    %2124 = vmatprep.subr.mxu0 0.0
    %2125 = vmatpush1.msra.mxu0 0.0
    %2126 = vmatprep.subr.mxu0 0.0
    %2127 = vmatpush1.msra.mxu0 0.0
    %2128 = vmatprep.subr.mxu0 0.0
    %2129 = vmatpush1.msra.mxu0 0.0
    %2130 = vmatprep.subr.mxu0 0.0
    %2131 = vmatpush1.msra.mxu0 0.0
    %2132 = vmatprep.subr.mxu0 %v1246
    %2133 = vmatpush1.msra.mxu0 %v1245
    %2134 = vmatprep.subr.mxu0 %v1244
    %2135 = vmatpush1.msra.mxu0 %v1243
    %2136 = vmatprep.subr.mxu0 %v1242
    %2137 = vmatpush1.msra.mxu0 %v1241
    %2138 = vmatprep.subr.mxu0 %v1240
    %2139 = vmatpush1.msra.mxu0 %v1239
    %2140 = vmatprep.subr.mxu0 0.0
    %2141 = vmatpush2.msra.mxu0 0.0
    %2142 = vmatprep.subr.mxu0 0.0
    %2143 = vmatpush2.msra.mxu0 0.0
    %2144 = vmatprep.subr.mxu0 0.0
    %2145 = vmatpush2.msra.mxu0 0.0
    %2146 = vmatprep.subr.mxu0 0.0
    %2147 = vmatpush2.msra.mxu0 0.0
    %2148 = vmatprep.subr.mxu0 0.0
    %2149 = vmatpush2.msra.mxu0 0.0
    %2150 = vmatprep.subr.mxu0 0.0
    %2151 = vmatpush2.msra.mxu0 0.0
    %2152 = vmatprep.subr.mxu0 0.0
    %2153 = vmatpush2.msra.mxu0 0.0
    %2154 = vmatprep.subr.mxu0 0.0
    %2155 = vmatpush2.msra.mxu0 0.0
    %2156 = vmatprep.subr.mxu0 0.0
    %2157 = vmatpush2.msra.mxu0 0.0
    %2158 = vmatprep.subr.mxu0 0.0
    %2159 = vmatpush2.msra.mxu0 0.0
    %2160 = vmatprep.subr.mxu0 0.0
    %2161 = vmatpush2.msra.mxu0 0.0
    %2162 = vmatprep.subr.mxu0 0.0
    %2163 = vmatpush2.msra.mxu0 0.0
    %2164 = vmatprep.subr.mxu0 0.0
    %2165 = vmatpush2.msra.mxu0 0.0
    %2166 = vmatprep.subr.mxu0 0.0
    %2167 = vmatpush2.msra.mxu0 0.0
    %2168 = vmatprep.subr.mxu0 0.0
    %2169 = vmatpush2.msra.mxu0 0.0
    %2170 = vmatprep.subr.mxu0 0.0
    %2171 = vmatpush2.msra.mxu0 0.0
    %2172 = vmatprep.mubr.f32.mxu0 0.0
    %2173 = vmatmul.mubr.f32.gmra.mxu0 %v2106
    %v2174 = vpop.f32.mrf.mxu0
    %v2175 = vadd.f32 %v1359, %v2174
    %v2176 = vpop.f32.mrf.mxu0
    %v2177 = vadd.f32 %v1363, %v2176
    %2178 = vdwg.mxu0
    %2181 = vrot.lane.b32.xlu0 %v2175, 32
    %v2182 = vpop.permute.xlu0 %2181
    %2183 = vrot.lane.b32.xlu0 %v2177, 32
    %v2184 = vpop.permute.xlu0 %2183
    %v2185 = vsel %vm223, %v2182, %v2184
    %v2187 = vsel %vm226, %v2175, %v2185
    %v2188 = vadd.f32 %v2105, %v2187
    %v2189 = vxor.u32 %v2188, 2147483648
    %v2190 = vmul.f32 %v2189, 1.442695
    %v2191 = vpow.pop %v2190
    %v2192 = vadd.f32 %v2191, 1.0
    %v2193 = vrcp.pop %v2192
    %v2194 = vmul.f32 1.0, %v2193
    %2196 = vrot.lane.b32.xlu0 %v2187, 64
    %v2197 = vpop.permute.xlu0 %2196
    %v2199 = vmul.f32 %v2194, %v2197
    %2201 = vrot.lane.b32.xlu0 %v2199, 64
    %v2202 = vpop.permute.xlu0 %2201
    %v2204 = vadd.f32 %v2105, %v2202
    %v2205 = vtanh.pop %v2204
    %v2206 = vsub.f32 1.0, %v2194
    %2208 = vrot.lane.b32.xlu0 %v2205, 96
    %v2209 = vpop.permute.xlu0 %2208
    %v2211 = vmul.f32 %v2206, %v2209
    %v2212 = vmul.f32 %v2194, %v2091
    %v2213 = vadd.f32 %v2211, %v2212
    %2215 = vrot.lane.b32.xlu0 %v2213, 96
    %v2216 = vpop.permute.xlu0 %2215
    %2218 = vst.msk [vmem:[#allocation12 + $0xc] sm:$0x3] %vm352, %v2216
    %2219 = vst.msk [vmem:[#allocation12] sm:$0xc] %vm354, %v2213
    %v2221 = vrot.slane %v1336, 6
    %2222 = vrot.lane.b32.xlu0 %v1727, 32
    %v2223 = vpop.permute.xlu0 %2222
    %2224 = vrot.lane.b32.xlu0 %v2221, 32
    %v2225 = vpop.permute.xlu0 %2224
    %v2226 = vsel %vm223, %v2223, %v2225
    %v2228 = vsel %vm226, %v1729, %v2226
    %v2229 = vsel %vm223, %v2216, 0
    %2231 = vmatprep.subr.mxu0 0.0
    %2232 = vmatpush1.msra.mxu0 0.0
    %2233 = vmatprep.subr.mxu0 0.0
    %2234 = vmatpush1.msra.mxu0 0.0
    %2235 = vmatprep.subr.mxu0 0.0
    %2236 = vmatpush1.msra.mxu0 0.0
    %2237 = vmatprep.subr.mxu0 0.0
    %2238 = vmatpush1.msra.mxu0 0.0
    %2239 = vmatprep.subr.mxu0 0.0
    %2240 = vmatpush1.msra.mxu0 0.0
    %2241 = vmatprep.subr.mxu0 0.0
    %2242 = vmatpush1.msra.mxu0 0.0
    %2243 = vmatprep.subr.mxu0 0.0
    %2244 = vmatpush1.msra.mxu0 0.0
    %2245 = vmatprep.subr.mxu0 0.0
    %2246 = vmatpush1.msra.mxu0 0.0
    %2247 = vmatprep.subr.mxu0 0.0
    %2248 = vmatpush1.msra.mxu0 0.0
    %2249 = vmatprep.subr.mxu0 0.0
    %2250 = vmatpush1.msra.mxu0 0.0
    %2251 = vmatprep.subr.mxu0 0.0
    %2252 = vmatpush1.msra.mxu0 0.0
    %2253 = vmatprep.subr.mxu0 0.0
    %2254 = vmatpush1.msra.mxu0 0.0
    %2255 = vmatprep.subr.mxu0 %v1246
    %2256 = vmatpush1.msra.mxu0 %v1245
    %2257 = vmatprep.subr.mxu0 %v1244
    %2258 = vmatpush1.msra.mxu0 %v1243
    %2259 = vmatprep.subr.mxu0 %v1242
    %2260 = vmatpush1.msra.mxu0 %v1241
    %2261 = vmatprep.subr.mxu0 %v1240
    %2262 = vmatpush1.msra.mxu0 %v1239
    %2263 = vmatprep.subr.mxu0 0.0
    %2264 = vmatpush2.msra.mxu0 0.0
    %2265 = vmatprep.subr.mxu0 0.0
    %2266 = vmatpush2.msra.mxu0 0.0
    %2267 = vmatprep.subr.mxu0 0.0
    %2268 = vmatpush2.msra.mxu0 0.0
    %2269 = vmatprep.subr.mxu0 0.0
    %2270 = vmatpush2.msra.mxu0 0.0
    %2271 = vmatprep.subr.mxu0 0.0
    %2272 = vmatpush2.msra.mxu0 0.0
    %2273 = vmatprep.subr.mxu0 0.0
    %2274 = vmatpush2.msra.mxu0 0.0
    %2275 = vmatprep.subr.mxu0 0.0
    %2276 = vmatpush2.msra.mxu0 0.0
    %2277 = vmatprep.subr.mxu0 0.0
    %2278 = vmatpush2.msra.mxu0 0.0
    %2279 = vmatprep.subr.mxu0 0.0
    %2280 = vmatpush2.msra.mxu0 0.0
    %2281 = vmatprep.subr.mxu0 0.0
    %2282 = vmatpush2.msra.mxu0 0.0
    %2283 = vmatprep.subr.mxu0 0.0
    %2284 = vmatpush2.msra.mxu0 0.0
    %2285 = vmatprep.subr.mxu0 0.0
    %2286 = vmatpush2.msra.mxu0 0.0
    %2287 = vmatprep.subr.mxu0 0.0
    %2288 = vmatpush2.msra.mxu0 0.0
    %2289 = vmatprep.subr.mxu0 0.0
    %2290 = vmatpush2.msra.mxu0 0.0
    %2291 = vmatprep.subr.mxu0 0.0
    %2292 = vmatpush2.msra.mxu0 0.0
    %2293 = vmatprep.subr.mxu0 0.0
    %2294 = vmatpush2.msra.mxu0 0.0
    %2295 = vmatprep.mubr.f32.mxu0 0.0
    %2296 = vmatmul.mubr.f32.gmra.mxu0 %v2229
    %v2297 = vpop.f32.mrf.mxu0
    %v2298 = vadd.f32 %v1359, %v2297
    %v2299 = vpop.f32.mrf.mxu0
    %v2300 = vadd.f32 %v1363, %v2299
    %2301 = vdwg.mxu0
    %2304 = vrot.lane.b32.xlu0 %v2298, 32
    %v2305 = vpop.permute.xlu0 %2304
    %2306 = vrot.lane.b32.xlu0 %v2300, 32
    %v2307 = vpop.permute.xlu0 %2306
    %v2308 = vsel %vm223, %v2305, %v2307
    %v2310 = vsel %vm226, %v2298, %v2308
    %v2311 = vadd.f32 %v2228, %v2310
    %v2312 = vxor.u32 %v2311, 2147483648
    %v2313 = vmul.f32 %v2312, 1.442695
    %v2314 = vpow.pop %v2313
    %v2315 = vadd.f32 %v2314, 1.0
    %v2316 = vrcp.pop %v2315
    %v2317 = vmul.f32 1.0, %v2316
    %2319 = vrot.lane.b32.xlu0 %v2310, 64
    %v2320 = vpop.permute.xlu0 %2319
    %v2322 = vmul.f32 %v2317, %v2320
    %2324 = vrot.lane.b32.xlu0 %v2322, 64
    %v2325 = vpop.permute.xlu0 %2324
    %v2327 = vadd.f32 %v2228, %v2325
    %v2328 = vtanh.pop %v2327
    %v2329 = vsub.f32 1.0, %v2317
    %2331 = vrot.lane.b32.xlu0 %v2328, 96
    %v2332 = vpop.permute.xlu0 %2331
    %v2334 = vmul.f32 %v2329, %v2332
    %v2335 = vmul.f32 %v2317, %v2213
    %v2336 = vadd.f32 %v2334, %v2335
    %2338 = vrot.lane.b32.xlu0 %v2336, 96
    %v2339 = vpop.permute.xlu0 %2338
    %2341 = vst.msk [vmem:[#allocation12 + $0xe] sm:$0x3] %vm352, %v2339
    %2342 = vst.msk [vmem:[#allocation12 - $0x2] sm:$0xc] %vm354, %v2336
    %vm2343 = vcmask 257024
    %2344 = vst.msk [vmem:[#allocation13] sm:$0xf] %vm2343, %v2339
    // Predicated region
    $region58: #{tpu_custom_call.1} parent=1 // pred_check
      _
    $region59: #{tpu_custom_call.1} parent=1 // pred_check_branch
      %2346 = sbr.rel (0) target = $region61
    $region60: #{tpu_custom_call.1} parent=1 // pred_region
      %s2348 = ssub.s32 256, 256
      %2349 = vsyncadd [#allocation5], %s2348
      %s2350 = sshll.u32 [#allocation12], 4
      %s2351 = int_to_ptr.vmem [resolvable:$true] %s2350
      %2356 = dma.vmem_to_hbm [thread:$0]  %s2351, 256, %s9, [#allocation5], 128, 128, 8
    $region61: #{tpu_custom_call.1} parent=1 // pred_fallthru
      _
    // Predicated region
    $region62: #{tpu_custom_call.1} parent=1 // pred_check
      _
    $region63: #{tpu_custom_call.1} parent=1 // pred_check_branch
      %2358 = sbr.rel (0) target = $region65
    $region64: #{tpu_custom_call.1} parent=1 // pred_region
      %s2360 = ssub.s32 64, 64
      %2361 = vsyncadd [#allocation14], %s2360
      %s2363 = sshll.u32 [#allocation13], 4
      %s2364 = int_to_ptr.vmem [resolvable:$true] %s2363
      %2366 = dma.vmem_to_hbm [thread:$0]  %s2364, 64, %s10, [#allocation14]
    $region65: #{tpu_custom_call.1} parent=1 // pred_fallthru
      _
    // Predicated region
    $region66: #{tpu_custom_call.1} parent=1 // pred_check
      _
    $region67: #{tpu_custom_call.1} parent=1 // pred_check_branch
      %2368 = sbr.rel (0) target = $region69
    $region68: #{tpu_custom_call.1} parent=1 // pred_region
      %2369 = dma.done [#allocation5], 256
    $region69: #{tpu_custom_call.1} parent=1 // pred_fallthru
      _
    // Predicated region
    $region70: #{tpu_custom_call.1} parent=1 // pred_check
      _
    $region71: #{tpu_custom_call.1} parent=1 // pred_check_branch
      %2371 = sbr.rel (0) target = $region73
    $region72: #{tpu_custom_call.1} parent=1 // pred_region
      %2372 = dma.done [#allocation14], 64
    $region73: #{tpu_custom_call.1} parent=1 // pred_fallthru
      _
    %2373 = vsyncpa [#allocation4], 1
    %2374 = vsyncpa [#allocation7], 1
    %2375 = vsyncpa [#allocation10], 1
    %2376 = vsyncpa [#allocation5], 1
    %2377 = vsyncpa [#allocation14], 1

</llo_original>
